<compile_context>
chip_gen: v7x
topology: tpu7x:2x2x1
jax: 0.10.0
libtpu: 0.0.40
codegen_flags: <defaults>
</compile_context>

<pallas_src>
from functools import partial

import jax
import jax.numpy as jnp
from jax.experimental import pallas as pl
from jax.experimental.pallas import tpu as pltpu

SQRT_HALF = 0.7071067811865476      # 1/sqrt(2)
TANH_GELU_C = 0.7978845608028654    # sqrt(2/pi)


def convnext_block_kernel(x_ref, wdw_ref, bdw_ref, gnw_ref, gnb_ref,
                          w1_ref, b1_ref, w2_ref, b2_ref, o_ref, xpad_ref,
                          *, H, W, C, hb, eps, gelu_approx):
    # One grid step == one batch sample. All refs live in VMEM.
    Hp, Wp = H + 6, W + 6
    f32 = jnp.float32
    x = x_ref[0]                        # (H, W, C); also serves as the residual.

    # ---- zero-padded window for the 7x7 depthwise conv (padding=3) ----
    # Zero only the halo strips (interior is fully overwritten below); done
    # every step so each TensorCore's private scratch is valid under a
    # megacore ("parallel") split of the batch axis.  Tiny VMEM-only stores.
    xpad_ref[0:3] = jnp.zeros((3, Wp, C), f32)
    xpad_ref[H + 3:Hp] = jnp.zeros((3, Wp, C), f32)
    xpad_ref[:, 0:3, :] = jnp.zeros((Hp, 3, C), f32)
    xpad_ref[:, W + 3:Wp, :] = jnp.zeros((Hp, 3, C), f32)
    # TODO(synk): route this interior copy through the DMA engine
    # (pltpu.make_async_copy) to keep the vst slot free for the conv/output.
    xpad_ref[3:3 + H, 3:3 + W, :] = x

    # ---- depthwise 7x7 conv (groups == C), f32 accumulate on the VPU ----
    # Slice the sublane (W) axis ONCE per kw from the ref (7 offset loads);
    # the inner loop slices only the free leading H axis of that value,
    # instead of 49 tile-boundary-crossing copies.
    wdw = wdw_ref[...]                  # (7, 7, C)
    acc = jnp.broadcast_to(bdw_ref[0], (H, W, C))   # conv bias as accumulator init
    for kw in range(7):
        col = xpad_ref[:, kw:kw + W, :]              # (Hp, W, C)
        for kh in range(7):
            acc = acc + col[kh:kh + H] * wdw[kh, kw]

    # ---- GroupNorm(num_groups=1), eps=1e-6: centered two-pass statistics ----
    n = float(H * W * C)
    mean = jnp.sum(acc) / n
    cent = acc - mean
    var = jnp.sum(cent * cent) / n                   # biased variance (torch)
    inv = jax.lax.rsqrt(var + eps)
    scale = gnw_ref[0] * inv                         # (C,)
    shift = gnb_ref[0] - mean * scale                # (C,)

    # ---- fold the GN affine into the first pointwise matmul ----
    mm_dtype = w1_ref.dtype             # f32, or bf16 (pre-cast by the wrapper)
    w1f = w1_ref[...].astype(f32)       # (C, 4C)
    w1_eff = (w1f * scale[:, None]).astype(mm_dtype)           # (C, 4C)
    b1_eff = b1_ref[0] + jnp.sum(shift[:, None] * w1f, axis=0)  # (4C,)
    w2 = w2_ref[...]                    # (4C, C)
    b2 = b2_ref[0]                      # (C,)

    # ---- pointwise MLP + residual, tiled over `hb` image rows per step ----
    # Bounds the live (rows, 4C) GELU intermediate without starving the MXU
    # (hb*W targeted at ~512 rows).
    # TODO(synk): for C not a multiple of 128 (e.g. 96/192) present a
    # lane-dense (B, H, W*C) output block so these stores are unmasked vst.
    for t in range(H // hb):
        h0 = t * hb
        blk = acc[h0:h0 + hb].reshape(hb * W, C).astype(mm_dtype)
        h1 = jnp.dot(blk, w1_eff, preferred_element_type=f32) + b1_eff
        if gelu_approx:
            # tanh-based GELU -> EUP slot (perf option; == torch GELU('tanh')).
            h1 = 0.5 * h1 * (1.0 + jnp.tanh(
                TANH_GELU_C * (h1 + 0.044715 * h1 * h1 * h1)))
        else:
            # exact erf GELU == torch.nn.GELU() default.
            h1 = 0.5 * h1 * (1.0 + jax.lax.erf(h1 * SQRT_HALF))
        h2 = jnp.dot(h1.astype(mm_dtype), w2, preferred_element_type=f32) + b2
        # residual add (gamma / drop_path are disabled by the module defaults)
        o_ref[0, h0:h0 + hb] = (x[h0:h0 + hb]
                                + h2.reshape(hb, W, C)).astype(o_ref.dtype)


def _pick_row_tile(H, W, target_rows=512):
    """Largest divisor hb of H with hb*W <= target_rows (falls back to 1)."""
    cands = [hb for hb in range(1, H + 1) if H % hb == 0 and hb * W <= target_rows]
    return max(cands) if cands else 1


def convnext_block_nhwc(x_nhwc, params, *, matmul_dtype=jnp.float32,
                        gelu_approx=False, eps=1e-6):
    """NHWC-native forward: (B, H, W, C) -> (B, H, W, C). No layout glue.

    matmul_dtype=jnp.bfloat16 + gelu_approx=True is the recommended perf
    configuration on v6e/v7x; defaults keep the fp32 / exact-erf semantics of
    the PyTorch module.
    """
    B, H, W, C = x_nhwc.shape
    Hp, Wp = H + 6, W + 6
    hb = _pick_row_tile(H, W)
    x = x_nhwc.astype(jnp.float32)

    # Parameter plumbing (weights only -- tiny, constant-folded under jit).
    wdw = jnp.transpose(params["dw_w"][:, 0], (1, 2, 0))     # (C,1,7,7)->(7,7,C)
    bdw = params["dw_b"].reshape(1, C)
    gnw = params["gn_w"].reshape(1, C)
    gnb = params["gn_b"].reshape(1, C)
    w1 = params["w1"].T.astype(matmul_dtype)                 # (4C, C) -> (C, 4C)
    b1 = params["b1"].reshape(1, 4 * C)
    w2 = params["w2"].T.astype(matmul_dtype)                 # (C, 4C) -> (4C, C)
    b2 = params["b2"].reshape(1, C)

    # VMEM estimate: double-buffered activation blocks + weights + pad scratch
    # + conv column copies + the per-tile MLP intermediates.
    wbytes = jnp.dtype(matmul_dtype).itemsize
    act = H * W * C * 4
    weights = (49 * C + 12 * C) * 4 + 8 * C * C * wbytes
    conv_live = (Hp * Wp * C + 7 * Hp * W * C + 2 * H * W * C) * 4
    mlp_live = 3 * hb * W * 4 * C * 4 + 8 * C * C * (4 + wbytes)
    need = 4 * act + 2 * weights + conv_live + mlp_live + (4 << 20)
    # Clamp against the physical VMEM of this chip (128 MiB v5e/v6e, 64 MiB v7x).
    try:
        phys = int(pltpu.get_tpu_info().vmem_capacity_bytes)
    except Exception:
        phys = 64 << 20                                       # v7x-safe fallback
    vmem = int(min(max(need, 16 << 20), (phys * 3) // 4))

    kernel = partial(convnext_block_kernel, H=H, W=W, C=C, hb=hb, eps=eps,
                     gelu_approx=gelu_approx)
    # NOTE: grid=(B,) gives megacore one sample per core; B >= 2 per chip keeps
    # both v7x TensorCores busy (a spatial parallel axis would need a 3-row
    # halo and a cross-step GroupNorm reduction, so it is not done here).
    # NOTE: weight blocks are grid-invariant so they are only fetched once;
    # single-buffering them (pipeline_mode=pl.Buffered(1)) is the next VMEM
    # lever for C>=768 on v7x.
    return pl.pallas_call(
        kernel,
        out_shape=jax.ShapeDtypeStruct((B, H, W, C), jnp.float32),
        grid=(B,),
        in_specs=[
            pl.BlockSpec((1, H, W, C), lambda b: (b, 0, 0, 0)),   # activation
            pl.BlockSpec((7, 7, C), lambda b: (0, 0, 0)),         # dw weight
            pl.BlockSpec((1, C), lambda b: (0, 0)),               # dw bias
            pl.BlockSpec((1, C), lambda b: (0, 0)),               # gn weight
            pl.BlockSpec((1, C), lambda b: (0, 0)),               # gn bias
            pl.BlockSpec((C, 4 * C), lambda b: (0, 0)),           # pwconv1 W^T
            pl.BlockSpec((1, 4 * C), lambda b: (0, 0)),           # pwconv1 b
            pl.BlockSpec((4 * C, C), lambda b: (0, 0)),           # pwconv2 W^T
            pl.BlockSpec((1, C), lambda b: (0, 0)),               # pwconv2 b
        ],
        out_specs=pl.BlockSpec((1, H, W, C), lambda b: (b, 0, 0, 0)),
        scratch_shapes=[pltpu.VMEM((Hp, Wp, C), jnp.float32)],    # padded window
        compiler_params=pltpu.CompilerParams(
            dimension_semantics=("parallel",),
            vmem_limit_bytes=vmem),
    )(x, wdw, bdw, gnw, gnb, w1, b1, w2, b2)


def convnext_block(x_nchw, params, **kwargs):
    """NCHW compatibility wrapper (matches the PyTorch Conv2d convention).

    In a real model keep the surrounding layers in NHWC and call
    `convnext_block_nhwc` directly so these two transposes disappear.
    """
    x = jnp.transpose(x_nchw, (0, 2, 3, 1))
    y = convnext_block_nhwc(x, params, **kwargs)
    return jnp.transpose(y, (0, 3, 1, 2))


def reference(x, params):
    """Plain-JAX reference of the PyTorch forward (NCHW)."""
    B, C, H, W = x.shape
    dw = jax.lax.conv_general_dilated(
        x, params["dw_w"], window_strides=(1, 1), padding=((3, 3), (3, 3)),
        feature_group_count=C, dimension_numbers=("NCHW", "OIHW", "NCHW"))
    dw = dw + params["dw_b"].reshape(1, C, 1, 1)
    mean = dw.mean(axis=(1, 2, 3), keepdims=True)
    var = ((dw - mean) ** 2).mean(axis=(1, 2, 3), keepdims=True)
    xn = (dw - mean) / jnp.sqrt(var + 1e-6)
    xn = xn * params["gn_w"].reshape(1, C, 1, 1) + params["gn_b"].reshape(1, C, 1, 1)
    y = jnp.transpose(xn, (0, 2, 3, 1))
    y = y @ params["w1"].T + params["b1"]
    y = jax.nn.gelu(y, approximate=False)
    y = y @ params["w2"].T + params["b2"]
    y = jnp.transpose(y, (0, 3, 1, 2))
    return x + y


def init_params(key, C):
    ks = jax.random.split(key, 6)
    return {
        "dw_w": 0.1 * jax.random.normal(ks[0], (C, 1, 7, 7), jnp.float32),
        "dw_b": 0.1 * jax.random.normal(ks[1], (C,), jnp.float32),
        "gn_w": jnp.ones((C,), jnp.float32),
        "gn_b": jnp.zeros((C,), jnp.float32),
        "w1": 0.1 * jax.random.normal(ks[2], (4 * C, C), jnp.float32),
        "b1": 0.1 * jax.random.normal(ks[3], (4 * C,), jnp.float32),
        "w2": 0.1 * jax.random.normal(ks[4], (C, 4 * C), jnp.float32),
        "b2": 0.1 * jax.random.normal(ks[5], (C,), jnp.float32),
    }


if __name__ == "__main__":
    key = jax.random.PRNGKey(0)
    kx, kp = jax.random.split(key)
    B, C, H, W = 2, 4, 16, 16
    x = jax.random.normal(kx, (B, C, H, W), jnp.float32)
    params = init_params(kp, C)

    ref = jax.block_until_ready(reference(x, params))

    # fp32 / exact-GELU path: matches the fp32 PyTorch module to f32-matmul
    # accuracy (TPU f32 matmuls are multi-pass bf16, so close but not bitwise).
    out = jax.block_until_ready(convnext_block(x, params))
    assert out.shape == (B, C, H, W)
    assert jnp.allclose(out, ref, atol=1e-4, rtol=1e-4), (
        float(jnp.max(jnp.abs(out - ref))))

    # Recommended perf configuration on v6e/v7x: bf16 MXU operands (f32
    # accumulate) + tanh-approx GELU on the EUP -> looser tolerance.
    out_fast = jax.block_until_ready(
        convnext_block(x, params, matmul_dtype=jnp.bfloat16, gelu_approx=True))
    assert jnp.allclose(out_fast, ref, atol=5e-2, rtol=5e-2), (
        float(jnp.max(jnp.abs(out_fast - ref))))

    print("KERNEL_OK")
</pallas_src>

<mosaic_0001>
module attributes {stable_mosaic.version = 11 : i64} {
  func.func @convnext_block_kernel(%arg0: i32, %arg1: memref<1x16x16x4xf32, #tpu.memory_space<vmem>>, %arg2: memref<7x7x4xf32, #tpu.memory_space<vmem>>, %arg3: memref<1x4xf32, #tpu.memory_space<vmem>>, %arg4: memref<1x4xf32, #tpu.memory_space<vmem>>, %arg5: memref<1x4xf32, #tpu.memory_space<vmem>>, %arg6: memref<4x16xf32, #tpu.memory_space<vmem>>, %arg7: memref<1x16xf32, #tpu.memory_space<vmem>>, %arg8: memref<16x4xf32, #tpu.memory_space<vmem>>, %arg9: memref<1x4xf32, #tpu.memory_space<vmem>>, %arg10: memref<1x16x16x4xf32, #tpu.memory_space<vmem>>, %arg11: memref<22x22x4xf32, #tpu.memory_space<vmem>>) attributes {dimension_semantics = [#tpu.dimension_semantics<parallel>], iteration_bounds = array<i64: 2>, scalar_prefetch = 0 : i64, scratch_operands = 1 : i64, tpu.core_type = #tpu.core_type<tc>, window_params = [{transform_indices = @transform_0, window_bounds = array<i64: 1, 16, 16, 4>}, {pipeline_mode = #tpu.pipeline_mode<synchronous>, transform_indices = @transform_1, window_bounds = array<i64: 7, 7, 4>}, {pipeline_mode = #tpu.pipeline_mode<synchronous>, transform_indices = @transform_2, window_bounds = array<i64: 1, 4>}, {pipeline_mode = #tpu.pipeline_mode<synchronous>, transform_indices = @transform_3, window_bounds = array<i64: 1, 4>}, {pipeline_mode = #tpu.pipeline_mode<synchronous>, transform_indices = @transform_4, window_bounds = array<i64: 1, 4>}, {pipeline_mode = #tpu.pipeline_mode<synchronous>, transform_indices = @transform_5, window_bounds = array<i64: 4, 16>}, {pipeline_mode = #tpu.pipeline_mode<synchronous>, transform_indices = @transform_6, window_bounds = array<i64: 1, 16>}, {pipeline_mode = #tpu.pipeline_mode<synchronous>, transform_indices = @transform_7, window_bounds = array<i64: 16, 4>}, {pipeline_mode = #tpu.pipeline_mode<synchronous>, transform_indices = @transform_8, window_bounds = array<i64: 1, 4>}, {transform_indices = @transform_9, window_bounds = array<i64: 1, 16, 16, 4>}]} {
    %c0 = arith.constant 0 : index
    %c0_0 = arith.constant 0 : index
    %c0_1 = arith.constant 0 : index
    %c0_2 = arith.constant 0 : index
    %0 = vector.load %arg1[%c0, %c0_0, %c0_1, %c0_2] : memref<1x16x16x4xf32, #tpu.memory_space<vmem>>, vector<1x16x16x4xf32>
    %1 = vector.shape_cast %0 : vector<1x16x16x4xf32> to vector<16x16x4xf32>
    %cst = arith.constant 0.000000e+00 : f32
    %2 = vector.broadcast %cst : f32 to vector<3x22x4xf32>
    %c0_3 = arith.constant 0 : index
    %c0_4 = arith.constant 0 : index
    %c0_5 = arith.constant 0 : index
    %3 = vector.load %arg11[%c0_3, %c0_4, %c0_5] : memref<22x22x4xf32, #tpu.memory_space<vmem>>, vector<3x22x4xf32>
    tpu.vector_store %arg11[%c0_3, %c0_4, %c0_5], %2 {strides = array<i32>} : memref<22x22x4xf32, #tpu.memory_space<vmem>>, vector<3x22x4xf32>,
    %cst_6 = arith.constant 0.000000e+00 : f32
    %4 = vector.broadcast %cst_6 : f32 to vector<3x22x4xf32>
    %c19 = arith.constant 19 : index
    %c0_7 = arith.constant 0 : index
    %c0_8 = arith.constant 0 : index
    %5 = vector.load %arg11[%c19, %c0_7, %c0_8] : memref<22x22x4xf32, #tpu.memory_space<vmem>>, vector<3x22x4xf32>
    tpu.vector_store %arg11[%c19, %c0_7, %c0_8], %4 {strides = array<i32>} : memref<22x22x4xf32, #tpu.memory_space<vmem>>, vector<3x22x4xf32>,
    %cst_9 = arith.constant 0.000000e+00 : f32
    %6 = vector.broadcast %cst_9 : f32 to vector<22x3x4xf32>
    %c0_10 = arith.constant 0 : index
    %c0_11 = arith.constant 0 : index
    %c0_12 = arith.constant 0 : index
    %7 = vector.load %arg11[%c0_10, %c0_11, %c0_12] : memref<22x22x4xf32, #tpu.memory_space<vmem>>, vector<22x3x4xf32>
    tpu.vector_store %arg11[%c0_10, %c0_11, %c0_12], %6 {strides = array<i32>} : memref<22x22x4xf32, #tpu.memory_space<vmem>>, vector<22x3x4xf32>,
    %cst_13 = arith.constant 0.000000e+00 : f32
    %8 = vector.broadcast %cst_13 : f32 to vector<22x3x4xf32>
    %c0_14 = arith.constant 0 : index
    %c19_15 = arith.constant 19 : index
    %c0_16 = arith.constant 0 : index
    %9 = vector.load %arg11[%c0_14, %c19_15, %c0_16] : memref<22x22x4xf32, #tpu.memory_space<vmem>>, vector<22x3x4xf32>
    tpu.vector_store %arg11[%c0_14, %c19_15, %c0_16], %8 {strides = array<i32>} : memref<22x22x4xf32, #tpu.memory_space<vmem>>, vector<22x3x4xf32>,
    %c3 = arith.constant 3 : index
    %c3_17 = arith.constant 3 : index
    %c0_18 = arith.constant 0 : index
    %10 = vector.load %arg11[%c3, %c3_17, %c0_18] : memref<22x22x4xf32, #tpu.memory_space<vmem>>, vector<16x16x4xf32>
    tpu.vector_store %arg11[%c3, %c3_17, %c0_18], %1 {strides = array<i32>} : memref<22x22x4xf32, #tpu.memory_space<vmem>>, vector<16x16x4xf32>,
    %c0_19 = arith.constant 0 : index
    %c0_20 = arith.constant 0 : index
    %c0_21 = arith.constant 0 : index
    %11 = vector.load %arg2[%c0_19, %c0_20, %c0_21] : memref<7x7x4xf32, #tpu.memory_space<vmem>>, vector<7x7x4xf32>
    %c0_22 = arith.constant 0 : index
    %c0_23 = arith.constant 0 : index
    %12 = vector.load %arg3[%c0_22, %c0_23] : memref<1x4xf32, #tpu.memory_space<vmem>>, vector<1x4xf32>
    %13 = vector.shape_cast %12 : vector<1x4xf32> to vector<4xf32>
    %14 = vector.shape_cast %13 : vector<4xf32> to vector<1x1x4xf32>
    %15 = vector.broadcast %14 : vector<1x1x4xf32> to vector<16x16x4xf32>
    %c0_24 = arith.constant 0 : index
    %c0_25 = arith.constant 0 : index
    %c0_26 = arith.constant 0 : index
    %16 = vector.load %arg11[%c0_24, %c0_25, %c0_26] : memref<22x22x4xf32, #tpu.memory_space<vmem>>, vector<22x16x4xf32>
    %17 = vector.extract_strided_slice %16 {offsets = [0, 0, 0], sizes = [16, 16, 4], strides = [1, 1, 1]} : vector<22x16x4xf32> to vector<16x16x4xf32>
    %18 = vector.extract_strided_slice %11 {offsets = [0, 0, 0], sizes = [1, 1, 4], strides = [1, 1, 1]} : vector<7x7x4xf32> to vector<1x1x4xf32>
    %19 = vector.shape_cast %18 : vector<1x1x4xf32> to vector<4xf32>
    %20 = vector.shape_cast %19 : vector<4xf32> to vector<1x1x4xf32>
    %21 = vector.broadcast %20 : vector<1x1x4xf32> to vector<16x16x4xf32>
    %22 = arith.mulf %17, %21 : vector<16x16x4xf32>
    %23 = arith.addf %15, %22 : vector<16x16x4xf32>
    %24 = vector.extract_strided_slice %16 {offsets = [1, 0, 0], sizes = [16, 16, 4], strides = [1, 1, 1]} : vector<22x16x4xf32> to vector<16x16x4xf32>
    %25 = vector.extract_strided_slice %11 {offsets = [1, 0, 0], sizes = [1, 1, 4], strides = [1, 1, 1]} : vector<7x7x4xf32> to vector<1x1x4xf32>
    %26 = vector.shape_cast %25 : vector<1x1x4xf32> to vector<4xf32>
    %27 = vector.shape_cast %26 : vector<4xf32> to vector<1x1x4xf32>
    %28 = vector.broadcast %27 : vector<1x1x4xf32> to vector<16x16x4xf32>
    %29 = arith.mulf %24, %28 : vector<16x16x4xf32>
    %30 = arith.addf %23, %29 : vector<16x16x4xf32>
    %31 = vector.extract_strided_slice %16 {offsets = [2, 0, 0], sizes = [16, 16, 4], strides = [1, 1, 1]} : vector<22x16x4xf32> to vector<16x16x4xf32>
    %32 = vector.extract_strided_slice %11 {offsets = [2, 0, 0], sizes = [1, 1, 4], strides = [1, 1, 1]} : vector<7x7x4xf32> to vector<1x1x4xf32>
    %33 = vector.shape_cast %32 : vector<1x1x4xf32> to vector<4xf32>
    %34 = vector.shape_cast %33 : vector<4xf32> to vector<1x1x4xf32>
    %35 = vector.broadcast %34 : vector<1x1x4xf32> to vector<16x16x4xf32>
    %36 = arith.mulf %31, %35 : vector<16x16x4xf32>
    %37 = arith.addf %30, %36 : vector<16x16x4xf32>
    %38 = vector.extract_strided_slice %16 {offsets = [3, 0, 0], sizes = [16, 16, 4], strides = [1, 1, 1]} : vector<22x16x4xf32> to vector<16x16x4xf32>
    %39 = vector.extract_strided_slice %11 {offsets = [3, 0, 0], sizes = [1, 1, 4], strides = [1, 1, 1]} : vector<7x7x4xf32> to vector<1x1x4xf32>
    %40 = vector.shape_cast %39 : vector<1x1x4xf32> to vector<4xf32>
    %41 = vector.shape_cast %40 : vector<4xf32> to vector<1x1x4xf32>
    %42 = vector.broadcast %41 : vector<1x1x4xf32> to vector<16x16x4xf32>
    %43 = arith.mulf %38, %42 : vector<16x16x4xf32>
    %44 = arith.addf %37, %43 : vector<16x16x4xf32>
    %45 = vector.extract_strided_slice %16 {offsets = [4, 0, 0], sizes = [16, 16, 4], strides = [1, 1, 1]} : vector<22x16x4xf32> to vector<16x16x4xf32>
    %46 = vector.extract_strided_slice %11 {offsets = [4, 0, 0], sizes = [1, 1, 4], strides = [1, 1, 1]} : vector<7x7x4xf32> to vector<1x1x4xf32>
    %47 = vector.shape_cast %46 : vector<1x1x4xf32> to vector<4xf32>
    %48 = vector.shape_cast %47 : vector<4xf32> to vector<1x1x4xf32>
    %49 = vector.broadcast %48 : vector<1x1x4xf32> to vector<16x16x4xf32>
    %50 = arith.mulf %45, %49 : vector<16x16x4xf32>
    %51 = arith.addf %44, %50 : vector<16x16x4xf32>
    %52 = vector.extract_strided_slice %16 {offsets = [5, 0, 0], sizes = [16, 16, 4], strides = [1, 1, 1]} : vector<22x16x4xf32> to vector<16x16x4xf32>
    %53 = vector.extract_strided_slice %11 {offsets = [5, 0, 0], sizes = [1, 1, 4], strides = [1, 1, 1]} : vector<7x7x4xf32> to vector<1x1x4xf32>
    %54 = vector.shape_cast %53 : vector<1x1x4xf32> to vector<4xf32>
    %55 = vector.shape_cast %54 : vector<4xf32> to vector<1x1x4xf32>
    %56 = vector.broadcast %55 : vector<1x1x4xf32> to vector<16x16x4xf32>
    %57 = arith.mulf %52, %56 : vector<16x16x4xf32>
    %58 = arith.addf %51, %57 : vector<16x16x4xf32>
    %59 = vector.extract_strided_slice %16 {offsets = [6, 0, 0], sizes = [16, 16, 4], strides = [1, 1, 1]} : vector<22x16x4xf32> to vector<16x16x4xf32>
    %60 = vector.extract_strided_slice %11 {offsets = [6, 0, 0], sizes = [1, 1, 4], strides = [1, 1, 1]} : vector<7x7x4xf32> to vector<1x1x4xf32>
    %61 = vector.shape_cast %60 : vector<1x1x4xf32> to vector<4xf32>
    %62 = vector.shape_cast %61 : vector<4xf32> to vector<1x1x4xf32>
    %63 = vector.broadcast %62 : vector<1x1x4xf32> to vector<16x16x4xf32>
    %64 = arith.mulf %59, %63 : vector<16x16x4xf32>
    %65 = arith.addf %58, %64 : vector<16x16x4xf32>
    %c0_27 = arith.constant 0 : index
    %c1 = arith.constant 1 : index
    %c0_28 = arith.constant 0 : index
    %66 = vector.load %arg11[%c0_27, %c1, %c0_28] : memref<22x22x4xf32, #tpu.memory_space<vmem>>, vector<22x16x4xf32>
    %67 = vector.extract_strided_slice %66 {offsets = [0, 0, 0], sizes = [16, 16, 4], strides = [1, 1, 1]} : vector<22x16x4xf32> to vector<16x16x4xf32>
    %68 = vector.extract_strided_slice %11 {offsets = [0, 1, 0], sizes = [1, 1, 4], strides = [1, 1, 1]} : vector<7x7x4xf32> to vector<1x1x4xf32>
    %69 = vector.shape_cast %68 : vector<1x1x4xf32> to vector<4xf32>
    %70 = vector.shape_cast %69 : vector<4xf32> to vector<1x1x4xf32>
    %71 = vector.broadcast %70 : vector<1x1x4xf32> to vector<16x16x4xf32>
    %72 = arith.mulf %67, %71 : vector<16x16x4xf32>
    %73 = arith.addf %65, %72 : vector<16x16x4xf32>
    %74 = vector.extract_strided_slice %66 {offsets = [1, 0, 0], sizes = [16, 16, 4], strides = [1, 1, 1]} : vector<22x16x4xf32> to vector<16x16x4xf32>
    %75 = vector.extract_strided_slice %11 {offsets = [1, 1, 0], sizes = [1, 1, 4], strides = [1, 1, 1]} : vector<7x7x4xf32> to vector<1x1x4xf32>
    %76 = vector.shape_cast %75 : vector<1x1x4xf32> to vector<4xf32>
    %77 = vector.shape_cast %76 : vector<4xf32> to vector<1x1x4xf32>
    %78 = vector.broadcast %77 : vector<1x1x4xf32> to vector<16x16x4xf32>
    %79 = arith.mulf %74, %78 : vector<16x16x4xf32>
    %80 = arith.addf %73, %79 : vector<16x16x4xf32>
    %81 = vector.extract_strided_slice %66 {offsets = [2, 0, 0], sizes = [16, 16, 4], strides = [1, 1, 1]} : vector<22x16x4xf32> to vector<16x16x4xf32>
    %82 = vector.extract_strided_slice %11 {offsets = [2, 1, 0], sizes = [1, 1, 4], strides = [1, 1, 1]} : vector<7x7x4xf32> to vector<1x1x4xf32>
    %83 = vector.shape_cast %82 : vector<1x1x4xf32> to vector<4xf32>
    %84 = vector.shape_cast %83 : vector<4xf32> to vector<1x1x4xf32>
    %85 = vector.broadcast %84 : vector<1x1x4xf32> to vector<16x16x4xf32>
    %86 = arith.mulf %81, %85 : vector<16x16x4xf32>
    %87 = arith.addf %80, %86 : vector<16x16x4xf32>
    %88 = vector.extract_strided_slice %66 {offsets = [3, 0, 0], sizes = [16, 16, 4], strides = [1, 1, 1]} : vector<22x16x4xf32> to vector<16x16x4xf32>
    %89 = vector.extract_strided_slice %11 {offsets = [3, 1, 0], sizes = [1, 1, 4], strides = [1, 1, 1]} : vector<7x7x4xf32> to vector<1x1x4xf32>
    %90 = vector.shape_cast %89 : vector<1x1x4xf32> to vector<4xf32>
    %91 = vector.shape_cast %90 : vector<4xf32> to vector<1x1x4xf32>
    %92 = vector.broadcast %91 : vector<1x1x4xf32> to vector<16x16x4xf32>
    %93 = arith.mulf %88, %92 : vector<16x16x4xf32>
    %94 = arith.addf %87, %93 : vector<16x16x4xf32>
    %95 = vector.extract_strided_slice %66 {offsets = [4, 0, 0], sizes = [16, 16, 4], strides = [1, 1, 1]} : vector<22x16x4xf32> to vector<16x16x4xf32>
    %96 = vector.extract_strided_slice %11 {offsets = [4, 1, 0], sizes = [1, 1, 4], strides = [1, 1, 1]} : vector<7x7x4xf32> to vector<1x1x4xf32>
    %97 = vector.shape_cast %96 : vector<1x1x4xf32> to vector<4xf32>
    %98 = vector.shape_cast %97 : vector<4xf32> to vector<1x1x4xf32>
    %99 = vector.broadcast %98 : vector<1x1x4xf32> to vector<16x16x4xf32>
    %100 = arith.mulf %95, %99 : vector<16x16x4xf32>
    %101 = arith.addf %94, %100 : vector<16x16x4xf32>
    %102 = vector.extract_strided_slice %66 {offsets = [5, 0, 0], sizes = [16, 16, 4], strides = [1, 1, 1]} : vector<22x16x4xf32> to vector<16x16x4xf32>
    %103 = vector.extract_strided_slice %11 {offsets = [5, 1, 0], sizes = [1, 1, 4], strides = [1, 1, 1]} : vector<7x7x4xf32> to vector<1x1x4xf32>
    %104 = vector.shape_cast %103 : vector<1x1x4xf32> to vector<4xf32>
    %105 = vector.shape_cast %104 : vector<4xf32> to vector<1x1x4xf32>
    %106 = vector.broadcast %105 : vector<1x1x4xf32> to vector<16x16x4xf32>
    %107 = arith.mulf %102, %106 : vector<16x16x4xf32>
    %108 = arith.addf %101, %107 : vector<16x16x4xf32>
    %109 = vector.extract_strided_slice %66 {offsets = [6, 0, 0], sizes = [16, 16, 4], strides = [1, 1, 1]} : vector<22x16x4xf32> to vector<16x16x4xf32>
    %110 = vector.extract_strided_slice %11 {offsets = [6, 1, 0], sizes = [1, 1, 4], strides = [1, 1, 1]} : vector<7x7x4xf32> to vector<1x1x4xf32>
    %111 = vector.shape_cast %110 : vector<1x1x4xf32> to vector<4xf32>
    %112 = vector.shape_cast %111 : vector<4xf32> to vector<1x1x4xf32>
    %113 = vector.broadcast %112 : vector<1x1x4xf32> to vector<16x16x4xf32>
    %114 = arith.mulf %109, %113 : vector<16x16x4xf32>
    %115 = arith.addf %108, %114 : vector<16x16x4xf32>
    %c0_29 = arith.constant 0 : index
    %c2 = arith.constant 2 : index
    %c0_30 = arith.constant 0 : index
    %116 = vector.load %arg11[%c0_29, %c2, %c0_30] : memref<22x22x4xf32, #tpu.memory_space<vmem>>, vector<22x16x4xf32>
    %117 = vector.extract_strided_slice %116 {offsets = [0, 0, 0], sizes = [16, 16, 4], strides = [1, 1, 1]} : vector<22x16x4xf32> to vector<16x16x4xf32>
    %118 = vector.extract_strided_slice %11 {offsets = [0, 2, 0], sizes = [1, 1, 4], strides = [1, 1, 1]} : vector<7x7x4xf32> to vector<1x1x4xf32>
    %119 = vector.shape_cast %118 : vector<1x1x4xf32> to vector<4xf32>
    %120 = vector.shape_cast %119 : vector<4xf32> to vector<1x1x4xf32>
    %121 = vector.broadcast %120 : vector<1x1x4xf32> to vector<16x16x4xf32>
    %122 = arith.mulf %117, %121 : vector<16x16x4xf32>
    %123 = arith.addf %115, %122 : vector<16x16x4xf32>
    %124 = vector.extract_strided_slice %116 {offsets = [1, 0, 0], sizes = [16, 16, 4], strides = [1, 1, 1]} : vector<22x16x4xf32> to vector<16x16x4xf32>
    %125 = vector.extract_strided_slice %11 {offsets = [1, 2, 0], sizes = [1, 1, 4], strides = [1, 1, 1]} : vector<7x7x4xf32> to vector<1x1x4xf32>
    %126 = vector.shape_cast %125 : vector<1x1x4xf32> to vector<4xf32>
    %127 = vector.shape_cast %126 : vector<4xf32> to vector<1x1x4xf32>
    %128 = vector.broadcast %127 : vector<1x1x4xf32> to vector<16x16x4xf32>
    %129 = arith.mulf %124, %128 : vector<16x16x4xf32>
    %130 = arith.addf %123, %129 : vector<16x16x4xf32>
    %131 = vector.extract_strided_slice %116 {offsets = [2, 0, 0], sizes = [16, 16, 4], strides = [1, 1, 1]} : vector<22x16x4xf32> to vector<16x16x4xf32>
    %132 = vector.extract_strided_slice %11 {offsets = [2, 2, 0], sizes = [1, 1, 4], strides = [1, 1, 1]} : vector<7x7x4xf32> to vector<1x1x4xf32>
    %133 = vector.shape_cast %132 : vector<1x1x4xf32> to vector<4xf32>
    %134 = vector.shape_cast %133 : vector<4xf32> to vector<1x1x4xf32>
    %135 = vector.broadcast %134 : vector<1x1x4xf32> to vector<16x16x4xf32>
    %136 = arith.mulf %131, %135 : vector<16x16x4xf32>
    %137 = arith.addf %130, %136 : vector<16x16x4xf32>
    %138 = vector.extract_strided_slice %116 {offsets = [3, 0, 0], sizes = [16, 16, 4], strides = [1, 1, 1]} : vector<22x16x4xf32> to vector<16x16x4xf32>
    %139 = vector.extract_strided_slice %11 {offsets = [3, 2, 0], sizes = [1, 1, 4], strides = [1, 1, 1]} : vector<7x7x4xf32> to vector<1x1x4xf32>
    %140 = vector.shape_cast %139 : vector<1x1x4xf32> to vector<4xf32>
    %141 = vector.shape_cast %140 : vector<4xf32> to vector<1x1x4xf32>
    %142 = vector.broadcast %141 : vector<1x1x4xf32> to vector<16x16x4xf32>
    %143 = arith.mulf %138, %142 : vector<16x16x4xf32>
    %144 = arith.addf %137, %143 : vector<16x16x4xf32>
    %145 = vector.extract_strided_slice %116 {offsets = [4, 0, 0], sizes = [16, 16, 4], strides = [1, 1, 1]} : vector<22x16x4xf32> to vector<16x16x4xf32>
    %146 = vector.extract_strided_slice %11 {offsets = [4, 2, 0], sizes = [1, 1, 4], strides = [1, 1, 1]} : vector<7x7x4xf32> to vector<1x1x4xf32>
    %147 = vector.shape_cast %146 : vector<1x1x4xf32> to vector<4xf32>
    %148 = vector.shape_cast %147 : vector<4xf32> to vector<1x1x4xf32>
    %149 = vector.broadcast %148 : vector<1x1x4xf32> to vector<16x16x4xf32>
    %150 = arith.mulf %145, %149 : vector<16x16x4xf32>
    %151 = arith.addf %144, %150 : vector<16x16x4xf32>
    %152 = vector.extract_strided_slice %116 {offsets = [5, 0, 0], sizes = [16, 16, 4], strides = [1, 1, 1]} : vector<22x16x4xf32> to vector<16x16x4xf32>
    %153 = vector.extract_strided_slice %11 {offsets = [5, 2, 0], sizes = [1, 1, 4], strides = [1, 1, 1]} : vector<7x7x4xf32> to vector<1x1x4xf32>
    %154 = vector.shape_cast %153 : vector<1x1x4xf32> to vector<4xf32>
    %155 = vector.shape_cast %154 : vector<4xf32> to vector<1x1x4xf32>
    %156 = vector.broadcast %155 : vector<1x1x4xf32> to vector<16x16x4xf32>
    %157 = arith.mulf %152, %156 : vector<16x16x4xf32>
    %158 = arith.addf %151, %157 : vector<16x16x4xf32>
    %159 = vector.extract_strided_slice %116 {offsets = [6, 0, 0], sizes = [16, 16, 4], strides = [1, 1, 1]} : vector<22x16x4xf32> to vector<16x16x4xf32>
    %160 = vector.extract_strided_slice %11 {offsets = [6, 2, 0], sizes = [1, 1, 4], strides = [1, 1, 1]} : vector<7x7x4xf32> to vector<1x1x4xf32>
    %161 = vector.shape_cast %160 : vector<1x1x4xf32> to vector<4xf32>
    %162 = vector.shape_cast %161 : vector<4xf32> to vector<1x1x4xf32>
    %163 = vector.broadcast %162 : vector<1x1x4xf32> to vector<16x16x4xf32>
    %164 = arith.mulf %159, %163 : vector<16x16x4xf32>
    %165 = arith.addf %158, %164 : vector<16x16x4xf32>
    %c0_31 = arith.constant 0 : index
    %c3_32 = arith.constant 3 : index
    %c0_33 = arith.constant 0 : index
    %166 = vector.load %arg11[%c0_31, %c3_32, %c0_33] : memref<22x22x4xf32, #tpu.memory_space<vmem>>, vector<22x16x4xf32>
    %167 = vector.extract_strided_slice %166 {offsets = [0, 0, 0], sizes = [16, 16, 4], strides = [1, 1, 1]} : vector<22x16x4xf32> to vector<16x16x4xf32>
    %168 = vector.extract_strided_slice %11 {offsets = [0, 3, 0], sizes = [1, 1, 4], strides = [1, 1, 1]} : vector<7x7x4xf32> to vector<1x1x4xf32>
    %169 = vector.shape_cast %168 : vector<1x1x4xf32> to vector<4xf32>
    %170 = vector.shape_cast %169 : vector<4xf32> to vector<1x1x4xf32>
    %171 = vector.broadcast %170 : vector<1x1x4xf32> to vector<16x16x4xf32>
    %172 = arith.mulf %167, %171 : vector<16x16x4xf32>
    %173 = arith.addf %165, %172 : vector<16x16x4xf32>
    %174 = vector.extract_strided_slice %166 {offsets = [1, 0, 0], sizes = [16, 16, 4], strides = [1, 1, 1]} : vector<22x16x4xf32> to vector<16x16x4xf32>
    %175 = vector.extract_strided_slice %11 {offsets = [1, 3, 0], sizes = [1, 1, 4], strides = [1, 1, 1]} : vector<7x7x4xf32> to vector<1x1x4xf32>
    %176 = vector.shape_cast %175 : vector<1x1x4xf32> to vector<4xf32>
    %177 = vector.shape_cast %176 : vector<4xf32> to vector<1x1x4xf32>
    %178 = vector.broadcast %177 : vector<1x1x4xf32> to vector<16x16x4xf32>
    %179 = arith.mulf %174, %178 : vector<16x16x4xf32>
    %180 = arith.addf %173, %179 : vector<16x16x4xf32>
    %181 = vector.extract_strided_slice %166 {offsets = [2, 0, 0], sizes = [16, 16, 4], strides = [1, 1, 1]} : vector<22x16x4xf32> to vector<16x16x4xf32>
    %182 = vector.extract_strided_slice %11 {offsets = [2, 3, 0], sizes = [1, 1, 4], strides = [1, 1, 1]} : vector<7x7x4xf32> to vector<1x1x4xf32>
    %183 = vector.shape_cast %182 : vector<1x1x4xf32> to vector<4xf32>
    %184 = vector.shape_cast %183 : vector<4xf32> to vector<1x1x4xf32>
    %185 = vector.broadcast %184 : vector<1x1x4xf32> to vector<16x16x4xf32>
    %186 = arith.mulf %181, %185 : vector<16x16x4xf32>
    %187 = arith.addf %180, %186 : vector<16x16x4xf32>
    %188 = vector.extract_strided_slice %166 {offsets = [3, 0, 0], sizes = [16, 16, 4], strides = [1, 1, 1]} : vector<22x16x4xf32> to vector<16x16x4xf32>
    %189 = vector.extract_strided_slice %11 {offsets = [3, 3, 0], sizes = [1, 1, 4], strides = [1, 1, 1]} : vector<7x7x4xf32> to vector<1x1x4xf32>
    %190 = vector.shape_cast %189 : vector<1x1x4xf32> to vector<4xf32>
    %191 = vector.shape_cast %190 : vector<4xf32> to vector<1x1x4xf32>
    %192 = vector.broadcast %191 : vector<1x1x4xf32> to vector<16x16x4xf32>
    %193 = arith.mulf %188, %192 : vector<16x16x4xf32>
    %194 = arith.addf %187, %193 : vector<16x16x4xf32>
    %195 = vector.extract_strided_slice %166 {offsets = [4, 0, 0], sizes = [16, 16, 4], strides = [1, 1, 1]} : vector<22x16x4xf32> to vector<16x16x4xf32>
    %196 = vector.extract_strided_slice %11 {offsets = [4, 3, 0], sizes = [1, 1, 4], strides = [1, 1, 1]} : vector<7x7x4xf32> to vector<1x1x4xf32>
    %197 = vector.shape_cast %196 : vector<1x1x4xf32> to vector<4xf32>
    %198 = vector.shape_cast %197 : vector<4xf32> to vector<1x1x4xf32>
    %199 = vector.broadcast %198 : vector<1x1x4xf32> to vector<16x16x4xf32>
    %200 = arith.mulf %195, %199 : vector<16x16x4xf32>
    %201 = arith.addf %194, %200 : vector<16x16x4xf32>
    %202 = vector.extract_strided_slice %166 {offsets = [5, 0, 0], sizes = [16, 16, 4], strides = [1, 1, 1]} : vector<22x16x4xf32> to vector<16x16x4xf32>
    %203 = vector.extract_strided_slice %11 {offsets = [5, 3, 0], sizes = [1, 1, 4], strides = [1, 1, 1]} : vector<7x7x4xf32> to vector<1x1x4xf32>
    %204 = vector.shape_cast %203 : vector<1x1x4xf32> to vector<4xf32>
    %205 = vector.shape_cast %204 : vector<4xf32> to vector<1x1x4xf32>
    %206 = vector.broadcast %205 : vector<1x1x4xf32> to vector<16x16x4xf32>
    %207 = arith.mulf %202, %206 : vector<16x16x4xf32>
    %208 = arith.addf %201, %207 : vector<16x16x4xf32>
    %209 = vector.extract_strided_slice %166 {offsets = [6, 0, 0], sizes = [16, 16, 4], strides = [1, 1, 1]} : vector<22x16x4xf32> to vector<16x16x4xf32>
    %210 = vector.extract_strided_slice %11 {offsets = [6, 3, 0], sizes = [1, 1, 4], strides = [1, 1, 1]} : vector<7x7x4xf32> to vector<1x1x4xf32>
    %211 = vector.shape_cast %210 : vector<1x1x4xf32> to vector<4xf32>
    %212 = vector.shape_cast %211 : vector<4xf32> to vector<1x1x4xf32>
    %213 = vector.broadcast %212 : vector<1x1x4xf32> to vector<16x16x4xf32>
    %214 = arith.mulf %209, %213 : vector<16x16x4xf32>
    %215 = arith.addf %208, %214 : vector<16x16x4xf32>
    %c0_34 = arith.constant 0 : index
    %c4 = arith.constant 4 : index
    %c0_35 = arith.constant 0 : index
    %216 = vector.load %arg11[%c0_34, %c4, %c0_35] : memref<22x22x4xf32, #tpu.memory_space<vmem>>, vector<22x16x4xf32>
    %217 = vector.extract_strided_slice %216 {offsets = [0, 0, 0], sizes = [16, 16, 4], strides = [1, 1, 1]} : vector<22x16x4xf32> to vector<16x16x4xf32>
    %218 = vector.extract_strided_slice %11 {offsets = [0, 4, 0], sizes = [1, 1, 4], strides = [1, 1, 1]} : vector<7x7x4xf32> to vector<1x1x4xf32>
    %219 = vector.shape_cast %218 : vector<1x1x4xf32> to vector<4xf32>
    %220 = vector.shape_cast %219 : vector<4xf32> to vector<1x1x4xf32>
    %221 = vector.broadcast %220 : vector<1x1x4xf32> to vector<16x16x4xf32>
    %222 = arith.mulf %217, %221 : vector<16x16x4xf32>
    %223 = arith.addf %215, %222 : vector<16x16x4xf32>
    %224 = vector.extract_strided_slice %216 {offsets = [1, 0, 0], sizes = [16, 16, 4], strides = [1, 1, 1]} : vector<22x16x4xf32> to vector<16x16x4xf32>
    %225 = vector.extract_strided_slice %11 {offsets = [1, 4, 0], sizes = [1, 1, 4], strides = [1, 1, 1]} : vector<7x7x4xf32> to vector<1x1x4xf32>
    %226 = vector.shape_cast %225 : vector<1x1x4xf32> to vector<4xf32>
    %227 = vector.shape_cast %226 : vector<4xf32> to vector<1x1x4xf32>
    %228 = vector.broadcast %227 : vector<1x1x4xf32> to vector<16x16x4xf32>
    %229 = arith.mulf %224, %228 : vector<16x16x4xf32>
    %230 = arith.addf %223, %229 : vector<16x16x4xf32>
    %231 = vector.extract_strided_slice %216 {offsets = [2, 0, 0], sizes = [16, 16, 4], strides = [1, 1, 1]} : vector<22x16x4xf32> to vector<16x16x4xf32>
    %232 = vector.extract_strided_slice %11 {offsets = [2, 4, 0], sizes = [1, 1, 4], strides = [1, 1, 1]} : vector<7x7x4xf32> to vector<1x1x4xf32>
    %233 = vector.shape_cast %232 : vector<1x1x4xf32> to vector<4xf32>
    %234 = vector.shape_cast %233 : vector<4xf32> to vector<1x1x4xf32>
    %235 = vector.broadcast %234 : vector<1x1x4xf32> to vector<16x16x4xf32>
    %236 = arith.mulf %231, %235 : vector<16x16x4xf32>
    %237 = arith.addf %230, %236 : vector<16x16x4xf32>
    %238 = vector.extract_strided_slice %216 {offsets = [3, 0, 0], sizes = [16, 16, 4], strides = [1, 1, 1]} : vector<22x16x4xf32> to vector<16x16x4xf32>
    %239 = vector.extract_strided_slice %11 {offsets = [3, 4, 0], sizes = [1, 1, 4], strides = [1, 1, 1]} : vector<7x7x4xf32> to vector<1x1x4xf32>
    %240 = vector.shape_cast %239 : vector<1x1x4xf32> to vector<4xf32>
    %241 = vector.shape_cast %240 : vector<4xf32> to vector<1x1x4xf32>
    %242 = vector.broadcast %241 : vector<1x1x4xf32> to vector<16x16x4xf32>
    %243 = arith.mulf %238, %242 : vector<16x16x4xf32>
    %244 = arith.addf %237, %243 : vector<16x16x4xf32>
    %245 = vector.extract_strided_slice %216 {offsets = [4, 0, 0], sizes = [16, 16, 4], strides = [1, 1, 1]} : vector<22x16x4xf32> to vector<16x16x4xf32>
    %246 = vector.extract_strided_slice %11 {offsets = [4, 4, 0], sizes = [1, 1, 4], strides = [1, 1, 1]} : vector<7x7x4xf32> to vector<1x1x4xf32>
    %247 = vector.shape_cast %246 : vector<1x1x4xf32> to vector<4xf32>
    %248 = vector.shape_cast %247 : vector<4xf32> to vector<1x1x4xf32>
    %249 = vector.broadcast %248 : vector<1x1x4xf32> to vector<16x16x4xf32>
    %250 = arith.mulf %245, %249 : vector<16x16x4xf32>
    %251 = arith.addf %244, %250 : vector<16x16x4xf32>
    %252 = vector.extract_strided_slice %216 {offsets = [5, 0, 0], sizes = [16, 16, 4], strides = [1, 1, 1]} : vector<22x16x4xf32> to vector<16x16x4xf32>
    %253 = vector.extract_strided_slice %11 {offsets = [5, 4, 0], sizes = [1, 1, 4], strides = [1, 1, 1]} : vector<7x7x4xf32> to vector<1x1x4xf32>
    %254 = vector.shape_cast %253 : vector<1x1x4xf32> to vector<4xf32>
    %255 = vector.shape_cast %254 : vector<4xf32> to vector<1x1x4xf32>
    %256 = vector.broadcast %255 : vector<1x1x4xf32> to vector<16x16x4xf32>
    %257 = arith.mulf %252, %256 : vector<16x16x4xf32>
    %258 = arith.addf %251, %257 : vector<16x16x4xf32>
    %259 = vector.extract_strided_slice %216 {offsets = [6, 0, 0], sizes = [16, 16, 4], strides = [1, 1, 1]} : vector<22x16x4xf32> to vector<16x16x4xf32>
    %260 = vector.extract_strided_slice %11 {offsets = [6, 4, 0], sizes = [1, 1, 4], strides = [1, 1, 1]} : vector<7x7x4xf32> to vector<1x1x4xf32>
    %261 = vector.shape_cast %260 : vector<1x1x4xf32> to vector<4xf32>
    %262 = vector.shape_cast %261 : vector<4xf32> to vector<1x1x4xf32>
    %263 = vector.broadcast %262 : vector<1x1x4xf32> to vector<16x16x4xf32>
    %264 = arith.mulf %259, %263 : vector<16x16x4xf32>
    %265 = arith.addf %258, %264 : vector<16x16x4xf32>
    %c0_36 = arith.constant 0 : index
    %c5 = arith.constant 5 : index
    %c0_37 = arith.constant 0 : index
    %266 = vector.load %arg11[%c0_36, %c5, %c0_37] : memref<22x22x4xf32, #tpu.memory_space<vmem>>, vector<22x16x4xf32>
    %267 = vector.extract_strided_slice %266 {offsets = [0, 0, 0], sizes = [16, 16, 4], strides = [1, 1, 1]} : vector<22x16x4xf32> to vector<16x16x4xf32>
    %268 = vector.extract_strided_slice %11 {offsets = [0, 5, 0], sizes = [1, 1, 4], strides = [1, 1, 1]} : vector<7x7x4xf32> to vector<1x1x4xf32>
    %269 = vector.shape_cast %268 : vector<1x1x4xf32> to vector<4xf32>
    %270 = vector.shape_cast %269 : vector<4xf32> to vector<1x1x4xf32>
    %271 = vector.broadcast %270 : vector<1x1x4xf32> to vector<16x16x4xf32>
    %272 = arith.mulf %267, %271 : vector<16x16x4xf32>
    %273 = arith.addf %265, %272 : vector<16x16x4xf32>
    %274 = vector.extract_strided_slice %266 {offsets = [1, 0, 0], sizes = [16, 16, 4], strides = [1, 1, 1]} : vector<22x16x4xf32> to vector<16x16x4xf32>
    %275 = vector.extract_strided_slice %11 {offsets = [1, 5, 0], sizes = [1, 1, 4], strides = [1, 1, 1]} : vector<7x7x4xf32> to vector<1x1x4xf32>
    %276 = vector.shape_cast %275 : vector<1x1x4xf32> to vector<4xf32>
    %277 = vector.shape_cast %276 : vector<4xf32> to vector<1x1x4xf32>
    %278 = vector.broadcast %277 : vector<1x1x4xf32> to vector<16x16x4xf32>
    %279 = arith.mulf %274, %278 : vector<16x16x4xf32>
    %280 = arith.addf %273, %279 : vector<16x16x4xf32>
    %281 = vector.extract_strided_slice %266 {offsets = [2, 0, 0], sizes = [16, 16, 4], strides = [1, 1, 1]} : vector<22x16x4xf32> to vector<16x16x4xf32>
    %282 = vector.extract_strided_slice %11 {offsets = [2, 5, 0], sizes = [1, 1, 4], strides = [1, 1, 1]} : vector<7x7x4xf32> to vector<1x1x4xf32>
    %283 = vector.shape_cast %282 : vector<1x1x4xf32> to vector<4xf32>
    %284 = vector.shape_cast %283 : vector<4xf32> to vector<1x1x4xf32>
    %285 = vector.broadcast %284 : vector<1x1x4xf32> to vector<16x16x4xf32>
    %286 = arith.mulf %281, %285 : vector<16x16x4xf32>
    %287 = arith.addf %280, %286 : vector<16x16x4xf32>
    %288 = vector.extract_strided_slice %266 {offsets = [3, 0, 0], sizes = [16, 16, 4], strides = [1, 1, 1]} : vector<22x16x4xf32> to vector<16x16x4xf32>
    %289 = vector.extract_strided_slice %11 {offsets = [3, 5, 0], sizes = [1, 1, 4], strides = [1, 1, 1]} : vector<7x7x4xf32> to vector<1x1x4xf32>
    %290 = vector.shape_cast %289 : vector<1x1x4xf32> to vector<4xf32>
    %291 = vector.shape_cast %290 : vector<4xf32> to vector<1x1x4xf32>
    %292 = vector.broadcast %291 : vector<1x1x4xf32> to vector<16x16x4xf32>
    %293 = arith.mulf %288, %292 : vector<16x16x4xf32>
    %294 = arith.addf %287, %293 : vector<16x16x4xf32>
    %295 = vector.extract_strided_slice %266 {offsets = [4, 0, 0], sizes = [16, 16, 4], strides = [1, 1, 1]} : vector<22x16x4xf32> to vector<16x16x4xf32>
    %296 = vector.extract_strided_slice %11 {offsets = [4, 5, 0], sizes = [1, 1, 4], strides = [1, 1, 1]} : vector<7x7x4xf32> to vector<1x1x4xf32>
    %297 = vector.shape_cast %296 : vector<1x1x4xf32> to vector<4xf32>
    %298 = vector.shape_cast %297 : vector<4xf32> to vector<1x1x4xf32>
    %299 = vector.broadcast %298 : vector<1x1x4xf32> to vector<16x16x4xf32>
    %300 = arith.mulf %295, %299 : vector<16x16x4xf32>
    %301 = arith.addf %294, %300 : vector<16x16x4xf32>
    %302 = vector.extract_strided_slice %266 {offsets = [5, 0, 0], sizes = [16, 16, 4], strides = [1, 1, 1]} : vector<22x16x4xf32> to vector<16x16x4xf32>
    %303 = vector.extract_strided_slice %11 {offsets = [5, 5, 0], sizes = [1, 1, 4], strides = [1, 1, 1]} : vector<7x7x4xf32> to vector<1x1x4xf32>
    %304 = vector.shape_cast %303 : vector<1x1x4xf32> to vector<4xf32>
    %305 = vector.shape_cast %304 : vector<4xf32> to vector<1x1x4xf32>
    %306 = vector.broadcast %305 : vector<1x1x4xf32> to vector<16x16x4xf32>
    %307 = arith.mulf %302, %306 : vector<16x16x4xf32>
    %308 = arith.addf %301, %307 : vector<16x16x4xf32>
    %309 = vector.extract_strided_slice %266 {offsets = [6, 0, 0], sizes = [16, 16, 4], strides = [1, 1, 1]} : vector<22x16x4xf32> to vector<16x16x4xf32>
    %310 = vector.extract_strided_slice %11 {offsets = [6, 5, 0], sizes = [1, 1, 4], strides = [1, 1, 1]} : vector<7x7x4xf32> to vector<1x1x4xf32>
    %311 = vector.shape_cast %310 : vector<1x1x4xf32> to vector<4xf32>
    %312 = vector.shape_cast %311 : vector<4xf32> to vector<1x1x4xf32>
    %313 = vector.broadcast %312 : vector<1x1x4xf32> to vector<16x16x4xf32>
    %314 = arith.mulf %309, %313 : vector<16x16x4xf32>
    %315 = arith.addf %308, %314 : vector<16x16x4xf32>
    %c0_38 = arith.constant 0 : index
    %c6 = arith.constant 6 : index
    %c0_39 = arith.constant 0 : index
    %316 = vector.load %arg11[%c0_38, %c6, %c0_39] : memref<22x22x4xf32, #tpu.memory_space<vmem>>, vector<22x16x4xf32>
    %317 = vector.extract_strided_slice %316 {offsets = [0, 0, 0], sizes = [16, 16, 4], strides = [1, 1, 1]} : vector<22x16x4xf32> to vector<16x16x4xf32>
    %318 = vector.extract_strided_slice %11 {offsets = [0, 6, 0], sizes = [1, 1, 4], strides = [1, 1, 1]} : vector<7x7x4xf32> to vector<1x1x4xf32>
    %319 = vector.shape_cast %318 : vector<1x1x4xf32> to vector<4xf32>
    %320 = vector.shape_cast %319 : vector<4xf32> to vector<1x1x4xf32>
    %321 = vector.broadcast %320 : vector<1x1x4xf32> to vector<16x16x4xf32>
    %322 = arith.mulf %317, %321 : vector<16x16x4xf32>
    %323 = arith.addf %315, %322 : vector<16x16x4xf32>
    %324 = vector.extract_strided_slice %316 {offsets = [1, 0, 0], sizes = [16, 16, 4], strides = [1, 1, 1]} : vector<22x16x4xf32> to vector<16x16x4xf32>
    %325 = vector.extract_strided_slice %11 {offsets = [1, 6, 0], sizes = [1, 1, 4], strides = [1, 1, 1]} : vector<7x7x4xf32> to vector<1x1x4xf32>
    %326 = vector.shape_cast %325 : vector<1x1x4xf32> to vector<4xf32>
    %327 = vector.shape_cast %326 : vector<4xf32> to vector<1x1x4xf32>
    %328 = vector.broadcast %327 : vector<1x1x4xf32> to vector<16x16x4xf32>
    %329 = arith.mulf %324, %328 : vector<16x16x4xf32>
    %330 = arith.addf %323, %329 : vector<16x16x4xf32>
    %331 = vector.extract_strided_slice %316 {offsets = [2, 0, 0], sizes = [16, 16, 4], strides = [1, 1, 1]} : vector<22x16x4xf32> to vector<16x16x4xf32>
    %332 = vector.extract_strided_slice %11 {offsets = [2, 6, 0], sizes = [1, 1, 4], strides = [1, 1, 1]} : vector<7x7x4xf32> to vector<1x1x4xf32>
    %333 = vector.shape_cast %332 : vector<1x1x4xf32> to vector<4xf32>
    %334 = vector.shape_cast %333 : vector<4xf32> to vector<1x1x4xf32>
    %335 = vector.broadcast %334 : vector<1x1x4xf32> to vector<16x16x4xf32>
    %336 = arith.mulf %331, %335 : vector<16x16x4xf32>
    %337 = arith.addf %330, %336 : vector<16x16x4xf32>
    %338 = vector.extract_strided_slice %316 {offsets = [3, 0, 0], sizes = [16, 16, 4], strides = [1, 1, 1]} : vector<22x16x4xf32> to vector<16x16x4xf32>
    %339 = vector.extract_strided_slice %11 {offsets = [3, 6, 0], sizes = [1, 1, 4], strides = [1, 1, 1]} : vector<7x7x4xf32> to vector<1x1x4xf32>
    %340 = vector.shape_cast %339 : vector<1x1x4xf32> to vector<4xf32>
    %341 = vector.shape_cast %340 : vector<4xf32> to vector<1x1x4xf32>
    %342 = vector.broadcast %341 : vector<1x1x4xf32> to vector<16x16x4xf32>
    %343 = arith.mulf %338, %342 : vector<16x16x4xf32>
    %344 = arith.addf %337, %343 : vector<16x16x4xf32>
    %345 = vector.extract_strided_slice %316 {offsets = [4, 0, 0], sizes = [16, 16, 4], strides = [1, 1, 1]} : vector<22x16x4xf32> to vector<16x16x4xf32>
    %346 = vector.extract_strided_slice %11 {offsets = [4, 6, 0], sizes = [1, 1, 4], strides = [1, 1, 1]} : vector<7x7x4xf32> to vector<1x1x4xf32>
    %347 = vector.shape_cast %346 : vector<1x1x4xf32> to vector<4xf32>
    %348 = vector.shape_cast %347 : vector<4xf32> to vector<1x1x4xf32>
    %349 = vector.broadcast %348 : vector<1x1x4xf32> to vector<16x16x4xf32>
    %350 = arith.mulf %345, %349 : vector<16x16x4xf32>
    %351 = arith.addf %344, %350 : vector<16x16x4xf32>
    %352 = vector.extract_strided_slice %316 {offsets = [5, 0, 0], sizes = [16, 16, 4], strides = [1, 1, 1]} : vector<22x16x4xf32> to vector<16x16x4xf32>
    %353 = vector.extract_strided_slice %11 {offsets = [5, 6, 0], sizes = [1, 1, 4], strides = [1, 1, 1]} : vector<7x7x4xf32> to vector<1x1x4xf32>
    %354 = vector.shape_cast %353 : vector<1x1x4xf32> to vector<4xf32>
    %355 = vector.shape_cast %354 : vector<4xf32> to vector<1x1x4xf32>
    %356 = vector.broadcast %355 : vector<1x1x4xf32> to vector<16x16x4xf32>
    %357 = arith.mulf %352, %356 : vector<16x16x4xf32>
    %358 = arith.addf %351, %357 : vector<16x16x4xf32>
    %359 = vector.extract_strided_slice %316 {offsets = [6, 0, 0], sizes = [16, 16, 4], strides = [1, 1, 1]} : vector<22x16x4xf32> to vector<16x16x4xf32>
    %360 = vector.extract_strided_slice %11 {offsets = [6, 6, 0], sizes = [1, 1, 4], strides = [1, 1, 1]} : vector<7x7x4xf32> to vector<1x1x4xf32>
    %361 = vector.shape_cast %360 : vector<1x1x4xf32> to vector<4xf32>
    %362 = vector.shape_cast %361 : vector<4xf32> to vector<1x1x4xf32>
    %363 = vector.broadcast %362 : vector<1x1x4xf32> to vector<16x16x4xf32>
    %364 = arith.mulf %359, %363 : vector<16x16x4xf32>
    %365 = arith.addf %358, %364 : vector<16x16x4xf32>
    %366 = vector.shape_cast %365 : vector<16x16x4xf32> to vector<1x16x16x4xf32>
    %cst_40 = arith.constant dense<0.000000e+00> : vector<1xf32>
    %367 = vector.multi_reduction <add>, %366, %cst_40 [1, 2, 3] : vector<1x16x16x4xf32> to vector<1xf32>
    %368 = vector.shape_cast %367 : vector<1xf32> to vector<1x1x1x1xf32>
    %369 = vector.extract %368[0, 0, 0, 0] : f32 from vector<1x1x1x1xf32>
    %cst_41 = arith.constant 1.024000e+03 : f32
    %370 = arith.divf %369, %cst_41 : f32
    %371 = vector.broadcast %370 : f32 to vector<16x16x4xf32>
    %372 = arith.subf %365, %371 : vector<16x16x4xf32>
    %373 = arith.mulf %372, %372 : vector<16x16x4xf32>
    %374 = vector.shape_cast %373 : vector<16x16x4xf32> to vector<1x16x16x4xf32>
    %cst_42 = arith.constant dense<0.000000e+00> : vector<1xf32>
    %375 = vector.multi_reduction <add>, %374, %cst_42 [1, 2, 3] : vector<1x16x16x4xf32> to vector<1xf32>
    %376 = vector.shape_cast %375 : vector<1xf32> to vector<1x1x1x1xf32>
    %377 = vector.extract %376[0, 0, 0, 0] : f32 from vector<1x1x1x1xf32>
    %cst_43 = arith.constant 1.024000e+03 : f32
    %378 = arith.divf %377, %cst_43 : f32
    %cst_44 = arith.constant 9.99999997E-7 : f32
    %379 = arith.addf %378, %cst_44 : f32
    %380 = math.rsqrt %379 : f32
    %c0_45 = arith.constant 0 : index
    %c0_46 = arith.constant 0 : index
    %381 = vector.load %arg4[%c0_45, %c0_46] : memref<1x4xf32, #tpu.memory_space<vmem>>, vector<1x4xf32>
    %382 = vector.shape_cast %381 : vector<1x4xf32> to vector<4xf32>
    %383 = vector.broadcast %380 : f32 to vector<4xf32>
    %384 = arith.mulf %382, %383 : vector<4xf32>
    %c0_47 = arith.constant 0 : index
    %c0_48 = arith.constant 0 : index
    %385 = vector.load %arg5[%c0_47, %c0_48] : memref<1x4xf32, #tpu.memory_space<vmem>>, vector<1x4xf32>
    %386 = vector.shape_cast %385 : vector<1x4xf32> to vector<4xf32>
    %387 = vector.broadcast %370 : f32 to vector<4xf32>
    %388 = arith.mulf %387, %384 : vector<4xf32>
    %389 = arith.subf %386, %388 : vector<4xf32>
    %c0_49 = arith.constant 0 : index
    %c0_50 = arith.constant 0 : index
    %390 = vector.load %arg6[%c0_49, %c0_50] : memref<4x16xf32, #tpu.memory_space<vmem>>, vector<4x16xf32>
    %391 = vector.shape_cast %384 : vector<4xf32> to vector<4x1xf32>
    %392 = vector.broadcast %391 : vector<4x1xf32> to vector<4x16xf32>
    %393 = arith.mulf %390, %392 : vector<4x16xf32>
    %c0_51 = arith.constant 0 : index
    %c0_52 = arith.constant 0 : index
    %394 = vector.load %arg7[%c0_51, %c0_52] : memref<1x16xf32, #tpu.memory_space<vmem>>, vector<1x16xf32>
    %395 = vector.shape_cast %394 : vector<1x16xf32> to vector<16xf32>
    %396 = vector.shape_cast %389 : vector<4xf32> to vector<4x1xf32>
    %397 = vector.broadcast %396 : vector<4x1xf32> to vector<4x16xf32>
    %398 = arith.mulf %397, %390 : vector<4x16xf32>
    %cst_53 = arith.constant dense<0.000000e+00> : vector<16xf32>
    %399 = vector.multi_reduction <add>, %398, %cst_53 [0] : vector<4x16xf32> to vector<16xf32>
    %400 = arith.addf %395, %399 : vector<16xf32>
    %c0_54 = arith.constant 0 : index
    %c0_55 = arith.constant 0 : index
    %401 = vector.load %arg8[%c0_54, %c0_55] : memref<16x4xf32, #tpu.memory_space<vmem>>, vector<16x4xf32>
    %c0_56 = arith.constant 0 : index
    %c0_57 = arith.constant 0 : index
    %402 = vector.load %arg9[%c0_56, %c0_57] : memref<1x4xf32, #tpu.memory_space<vmem>>, vector<1x4xf32>
    %403 = vector.shape_cast %402 : vector<1x4xf32> to vector<4xf32>
    %404 = vector.shape_cast %365 : vector<16x16x4xf32> to vector<256x4xf32>
    %cst_58 = arith.constant dense<0.000000e+00> : vector<256x16xf32>
    %405 = tpu.matmul %404, %393, %cst_58 {dimension_numbers = #tpu.dot_dimension_numbers<[1], [0], [0], [1], [0, 0, 1, 1], [], []>} : vector<256x4xf32>, vector<4x16xf32>, vector<256x16xf32> -> vector<256x16xf32>
    %406 = vector.shape_cast %400 : vector<16xf32> to vector<1x16xf32>
    %407 = vector.broadcast %406 : vector<1x16xf32> to vector<256x16xf32>
    %408 = arith.addf %405, %407 : vector<256x16xf32>
    %cst_59 = arith.constant 5.000000e-01 : f32
    %409 = vector.broadcast %cst_59 : f32 to vector<256x16xf32>
    %410 = arith.mulf %409, %408 : vector<256x16xf32>
    %cst_60 = arith.constant 0.707106769 : f32
    %411 = vector.broadcast %cst_60 : f32 to vector<256x16xf32>
    %412 = arith.mulf %408, %411 : vector<256x16xf32>
    %413 = math.erf %412 : vector<256x16xf32>
    %cst_61 = arith.constant 1.000000e+00 : f32
    %414 = vector.broadcast %cst_61 : f32 to vector<256x16xf32>
    %415 = arith.addf %414, %413 : vector<256x16xf32>
    %416 = arith.mulf %410, %415 : vector<256x16xf32>
    %cst_62 = arith.constant dense<0.000000e+00> : vector<256x4xf32>
    %417 = tpu.matmul %416, %401, %cst_62 {dimension_numbers = #tpu.dot_dimension_numbers<[1], [0], [0], [1], [0, 0, 1, 1], [], []>} : vector<256x16xf32>, vector<16x4xf32>, vector<256x4xf32> -> vector<256x4xf32>
    %418 = vector.shape_cast %403 : vector<4xf32> to vector<1x4xf32>
    %419 = vector.broadcast %418 : vector<1x4xf32> to vector<256x4xf32>
    %420 = arith.addf %417, %419 : vector<256x4xf32>
    %421 = vector.shape_cast %420 : vector<256x4xf32> to vector<16x16x4xf32>
    %422 = arith.addf %1, %421 : vector<16x16x4xf32>
    %c0_63 = arith.constant 0 : index
    %c0_64 = arith.constant 0 : index
    %c0_65 = arith.constant 0 : index
    %c0_66 = arith.constant 0 : index
    %423 = vector.load %arg10[%c0_63, %c0_64, %c0_65, %c0_66] : memref<1x16x16x4xf32, #tpu.memory_space<vmem>>, vector<1x16x16x4xf32>
    %424 = vector.shape_cast %423 : vector<1x16x16x4xf32> to vector<16x16x4xf32>
    %425 = vector.shape_cast %422 : vector<16x16x4xf32> to vector<1x16x16x4xf32>
    tpu.vector_store %arg10[%c0_63, %c0_64, %c0_65, %c0_66], %425 {strides = array<i32>} : memref<1x16x16x4xf32, #tpu.memory_space<vmem>>, vector<1x16x16x4xf32>,
    return
  }
  func.func @transform_0(%arg0: i32) -> (i32, i32, i32, i32) {
    %c0_i32 = arith.constant 0 : i32
    %c0_i32_0 = arith.constant 0 : i32
    %c0_i32_1 = arith.constant 0 : i32
    %c0_i32_2 = arith.constant 0 : i32
    return %arg0, %c0_i32, %c0_i32_0, %c0_i32_1 : i32, i32, i32, i32
  }
  func.func @transform_1(%arg0: i32) -> (i32, i32, i32) {
    %c0_i32 = arith.constant 0 : i32
    %c0_i32_0 = arith.constant 0 : i32
    %c0_i32_1 = arith.constant 0 : i32
    %c0_i32_2 = arith.constant 0 : i32
    return %c0_i32, %c0_i32_0, %c0_i32_1 : i32, i32, i32
  }
  func.func @transform_2(%arg0: i32) -> (i32, i32) {
    %c0_i32 = arith.constant 0 : i32
    %c0_i32_0 = arith.constant 0 : i32
    %c0_i32_1 = arith.constant 0 : i32
    return %c0_i32, %c0_i32_0 : i32, i32
  }
  func.func @transform_3(%arg0: i32) -> (i32, i32) {
    %c0_i32 = arith.constant 0 : i32
    %c0_i32_0 = arith.constant 0 : i32
    %c0_i32_1 = arith.constant 0 : i32
    return %c0_i32, %c0_i32_0 : i32, i32
  }
  func.func @transform_4(%arg0: i32) -> (i32, i32) {
    %c0_i32 = arith.constant 0 : i32
    %c0_i32_0 = arith.constant 0 : i32
    %c0_i32_1 = arith.constant 0 : i32
    return %c0_i32, %c0_i32_0 : i32, i32
  }
  func.func @transform_5(%arg0: i32) -> (i32, i32) {
    %c0_i32 = arith.constant 0 : i32
    %c0_i32_0 = arith.constant 0 : i32
    %c0_i32_1 = arith.constant 0 : i32
    return %c0_i32, %c0_i32_0 : i32, i32
  }
  func.func @transform_6(%arg0: i32) -> (i32, i32) {
    %c0_i32 = arith.constant 0 : i32
    %c0_i32_0 = arith.constant 0 : i32
    %c0_i32_1 = arith.constant 0 : i32
    return %c0_i32, %c0_i32_0 : i32, i32
  }
  func.func @transform_7(%arg0: i32) -> (i32, i32) {
    %c0_i32 = arith.constant 0 : i32
    %c0_i32_0 = arith.constant 0 : i32
    %c0_i32_1 = arith.constant 0 : i32
    return %c0_i32, %c0_i32_0 : i32, i32
  }
  func.func @transform_8(%arg0: i32) -> (i32, i32) {
    %c0_i32 = arith.constant 0 : i32
    %c0_i32_0 = arith.constant 0 : i32
    %c0_i32_1 = arith.constant 0 : i32
    return %c0_i32, %c0_i32_0 : i32, i32
  }
  func.func @transform_9(%arg0: i32) -> (i32, i32, i32, i32) {
    %c0_i32 = arith.constant 0 : i32
    %c0_i32_0 = arith.constant 0 : i32
    %c0_i32_1 = arith.constant 0 : i32
    %c0_i32_2 = arith.constant 0 : i32
    return %arg0, %c0_i32, %c0_i32_0, %c0_i32_1 : i32, i32, i32, i32
  }
}

</mosaic_0001>

<llo_original>
// kernel: tpu_custom_call.1
$region0: #{tpu_custom_call.1}
  #allocation0 [shape = 'u32[]', space=smem, size = 0x4, offset = 0x4, fixed_abs, tag = 'smem constant byte address 0x4 - core index']
  #allocation1 [shape = 'u32[144,128]{1,0:T(1,128)}', space=vmem, size = 0x12000, scoped, tag = 'internal scratch']
  #allocation2 [shape = 'f32[22,22,4]{2,1,0:T(8,128)}', space=vmem, size = 0x42000, scoped, tag = 'scratch operand']
  %s0 = inlined_call_operand.vmem [shape: f32[2,16,16,4], index: 0, kind: input, shape index: {}]
  %s1 = inlined_call_operand.vmem [shape: f32[7,7,4], index: 1, kind: input, shape index: {}]
  %s2 = inlined_call_operand.vmem [shape: f32[1,4], index: 2, kind: input, shape index: {}]
  %s3 = inlined_call_operand.vmem [shape: f32[1,4], index: 3, kind: input, shape index: {}]
  %s4 = inlined_call_operand.vmem [shape: f32[1,4], index: 4, kind: input, shape index: {}]
  %s5 = inlined_call_operand.vmem [shape: f32[4,16], index: 5, kind: input, shape index: {}]
  %s6 = inlined_call_operand.vmem [shape: f32[1,16], index: 6, kind: input, shape index: {}]
  %s7 = inlined_call_operand.vmem [shape: f32[16,4], index: 7, kind: input, shape index: {}]
  %s8 = inlined_call_operand.vmem [shape: f32[1,4], index: 8, kind: input, shape index: {}]
  %s9 = inlined_call_operand.vmem [shape: f32[2,16,16,4], index: 9, kind: output, shape index: {}]
  %s10 = sld [smem:[#allocation0]]
  $region69: #{tpu_custom_call.1} parent=0
    _
  %s12 = ssub.s32 1, %s10
  %s13 = scalar_select 0, %s12, %s10
  loop: start=0, step=1, limit=4
  $region2: #{tpu_custom_call.1} parent=0 // loop_pre_header
    _
  $region3: #{tpu_custom_call.1} parent=0 // loop_header
    %s15 = sphi 0, %s19
    %p16 = scmp.ge.s32.totalorder %s15, 4
    %s25 = sphi 0, %s27
    %s28 = sphi 0, %s25
    %s29 = sphi 0, %s28
    %s45 = sphi 0, %s29
    %s49 = sphi 0, %s49
    %s51 = sphi 0, %s49
    %s52 = sphi 0, %s51
    %s66 = sphi 0, %s52
    %s70 = sphi 0, %s70
    %s72 = sphi 0, %s70
    %s73 = sphi 0, %s72
    %s87 = sphi 0, %s73
    %s91 = sphi 0, %s91
    %s93 = sphi 0, %s91
    %s94 = sphi 0, %s93
    %s108 = sphi 0, %s94
    %s112 = sphi 0, %s112
    %s114 = sphi 0, %s112
    %s115 = sphi 0, %s114
    %s129 = sphi 0, %s115
    %s133 = sphi 0, %s133
    %s135 = sphi 0, %s133
    %s136 = sphi 0, %s135
    %s150 = sphi 0, %s136
    %s154 = sphi 0, %s154
    %s156 = sphi 0, %s154
    %s157 = sphi 0, %s156
    %s171 = sphi 0, %s157
    %s175 = sphi 0, %s175
    %s177 = sphi 0, %s175
    %s178 = sphi 0, %s177
    %s192 = sphi 0, %s178
    %s196 = sphi 0, %s196
    %s198 = sphi 0, %s196
    %s199 = sphi 0, %s198
    %s213 = sphi 0, %s199
    %s219 = sphi 0, %s221
    %s222 = sphi 0, %s219
    %s223 = sphi 0, %s222
    %s239 = sphi 0, %s223
  $region4: #{tpu_custom_call.1} parent=0 // loop_header_branch
    %18 = sbr.rel (%p16) target = $region8
  $region5: #{tpu_custom_call.1} parent=0 // loop_body
    %s20 = ssub.s32 %s15, 1
    %s21 = ssub.s32 %s15, 2
    %s22 = sadd.s32 %s15, 1
    %s23 = ssub.s32 %s15, %s22
    %p24 = scmp.eq.s32.totalorder %s23, 0
    %s26 = sadd.s32 %s25, 1
    %s27 = scalar_select %p24, %s25, %s26
    %p30 = pneg %p24
    %p31 = scmp.eq.s32.totalorder %s15, 1
    %p32 = por %p30, %p31
    %p33 = scmp.ne.s32.totalorder %s25, %s28
    %p34 = scmp.eq.s32.totalorder %s15, 0
    %p35 = por %p33, %p34
    %p36 = scmp.ne.s32.totalorder %s25, %s28
    %p37 = scmp.eq.s32.totalorder %s20, 1
    %p38 = por %p36, %p37
    %p39 = scmp.ne.s32.totalorder %s28, %s29
    %p40 = scmp.eq.s32.totalorder %s20, 0
    %p41 = por %p39, %p40
    %p42 = scmp.ne.s32.totalorder %s28, %s29
    %p43 = scmp.eq.s32.totalorder %s21, 1
    %p44 = por %p42, %p43
    %p46 = scmp.ne.s32.totalorder %s29, %s45
    %p47 = scmp.eq.s32.totalorder %s21, 0
    %p48 = por %p46, %p47
    %s50 = sadd.s32 %s49, 1
    %p53 = scmp.eq.s32.totalorder %s15, 1
    %p54 = scmp.ne.s32.totalorder %s49, %s51
    %p55 = scmp.eq.s32.totalorder %s15, 0
    %p56 = por %p54, %p55
    %p57 = scmp.ne.s32.totalorder %s49, %s51
    %p58 = scmp.eq.s32.totalorder %s20, 1
    %p59 = por %p57, %p58
    %p60 = scmp.ne.s32.totalorder %s51, %s52
    %p61 = scmp.eq.s32.totalorder %s20, 0
    %p62 = por %p60, %p61
    %p63 = scmp.ne.s32.totalorder %s51, %s52
    %p64 = scmp.eq.s32.totalorder %s21, 1
    %p65 = por %p63, %p64
    %p67 = scmp.ne.s32.totalorder %s52, %s66
    %p68 = scmp.eq.s32.totalorder %s21, 0
    %p69 = por %p67, %p68
    %s71 = sadd.s32 %s70, 1
    %p74 = scmp.eq.s32.totalorder %s15, 1
    %p75 = scmp.ne.s32.totalorder %s70, %s72
    %p76 = scmp.eq.s32.totalorder %s15, 0
    %p77 = por %p75, %p76
    %p78 = scmp.ne.s32.totalorder %s70, %s72
    %p79 = scmp.eq.s32.totalorder %s20, 1
    %p80 = por %p78, %p79
    %p81 = scmp.ne.s32.totalorder %s72, %s73
    %p82 = scmp.eq.s32.totalorder %s20, 0
    %p83 = por %p81, %p82
    %p84 = scmp.ne.s32.totalorder %s72, %s73
    %p85 = scmp.eq.s32.totalorder %s21, 1
    %p86 = por %p84, %p85
    %p88 = scmp.ne.s32.totalorder %s73, %s87
    %p89 = scmp.eq.s32.totalorder %s21, 0
    %p90 = por %p88, %p89
    %s92 = sadd.s32 %s91, 1
    %p95 = scmp.eq.s32.totalorder %s15, 1
    %p96 = scmp.ne.s32.totalorder %s91, %s93
    %p97 = scmp.eq.s32.totalorder %s15, 0
    %p98 = por %p96, %p97
    %p99 = scmp.ne.s32.totalorder %s91, %s93
    %p100 = scmp.eq.s32.totalorder %s20, 1
    %p101 = por %p99, %p100
    %p102 = scmp.ne.s32.totalorder %s93, %s94
    %p103 = scmp.eq.s32.totalorder %s20, 0
    %p104 = por %p102, %p103
    %p105 = scmp.ne.s32.totalorder %s93, %s94
    %p106 = scmp.eq.s32.totalorder %s21, 1
    %p107 = por %p105, %p106
    %p109 = scmp.ne.s32.totalorder %s94, %s108
    %p110 = scmp.eq.s32.totalorder %s21, 0
    %p111 = por %p109, %p110
    %s113 = sadd.s32 %s112, 1
    %p116 = scmp.eq.s32.totalorder %s15, 1
    %p117 = scmp.ne.s32.totalorder %s112, %s114
    %p118 = scmp.eq.s32.totalorder %s15, 0
    %p119 = por %p117, %p118
    %p120 = scmp.ne.s32.totalorder %s112, %s114
    %p121 = scmp.eq.s32.totalorder %s20, 1
    %p122 = por %p120, %p121
    %p123 = scmp.ne.s32.totalorder %s114, %s115
    %p124 = scmp.eq.s32.totalorder %s20, 0
    %p125 = por %p123, %p124
    %p126 = scmp.ne.s32.totalorder %s114, %s115
    %p127 = scmp.eq.s32.totalorder %s21, 1
    %p128 = por %p126, %p127
    %p130 = scmp.ne.s32.totalorder %s115, %s129
    %p131 = scmp.eq.s32.totalorder %s21, 0
    %p132 = por %p130, %p131
    %s134 = sadd.s32 %s133, 1
    %p137 = scmp.eq.s32.totalorder %s15, 1
    %p138 = scmp.ne.s32.totalorder %s133, %s135
    %p139 = scmp.eq.s32.totalorder %s15, 0
    %p140 = por %p138, %p139
    %p141 = scmp.ne.s32.totalorder %s133, %s135
    %p142 = scmp.eq.s32.totalorder %s20, 1
    %p143 = por %p141, %p142
    %p144 = scmp.ne.s32.totalorder %s135, %s136
    %p145 = scmp.eq.s32.totalorder %s20, 0
    %p146 = por %p144, %p145
    %p147 = scmp.ne.s32.totalorder %s135, %s136
    %p148 = scmp.eq.s32.totalorder %s21, 1
    %p149 = por %p147, %p148
    %p151 = scmp.ne.s32.totalorder %s136, %s150
    %p152 = scmp.eq.s32.totalorder %s21, 0
    %p153 = por %p151, %p152
    %s155 = sadd.s32 %s154, 1
    %p158 = scmp.eq.s32.totalorder %s15, 1
    %p159 = scmp.ne.s32.totalorder %s154, %s156
    %p160 = scmp.eq.s32.totalorder %s15, 0
    %p161 = por %p159, %p160
    %p162 = scmp.ne.s32.totalorder %s154, %s156
    %p163 = scmp.eq.s32.totalorder %s20, 1
    %p164 = por %p162, %p163
    %p165 = scmp.ne.s32.totalorder %s156, %s157
    %p166 = scmp.eq.s32.totalorder %s20, 0
    %p167 = por %p165, %p166
    %p168 = scmp.ne.s32.totalorder %s156, %s157
    %p169 = scmp.eq.s32.totalorder %s21, 1
    %p170 = por %p168, %p169
    %p172 = scmp.ne.s32.totalorder %s157, %s171
    %p173 = scmp.eq.s32.totalorder %s21, 0
    %p174 = por %p172, %p173
    %s176 = sadd.s32 %s175, 1
    %p179 = scmp.eq.s32.totalorder %s15, 1
    %p180 = scmp.ne.s32.totalorder %s175, %s177
    %p181 = scmp.eq.s32.totalorder %s15, 0
    %p182 = por %p180, %p181
    %p183 = scmp.ne.s32.totalorder %s175, %s177
    %p184 = scmp.eq.s32.totalorder %s20, 1
    %p185 = por %p183, %p184
    %p186 = scmp.ne.s32.totalorder %s177, %s178
    %p187 = scmp.eq.s32.totalorder %s20, 0
    %p188 = por %p186, %p187
    %p189 = scmp.ne.s32.totalorder %s177, %s178
    %p190 = scmp.eq.s32.totalorder %s21, 1
    %p191 = por %p189, %p190
    %p193 = scmp.ne.s32.totalorder %s178, %s192
    %p194 = scmp.eq.s32.totalorder %s21, 0
    %p195 = por %p193, %p194
    %s197 = sadd.s32 %s196, 1
    %p200 = scmp.eq.s32.totalorder %s15, 1
    %p201 = scmp.ne.s32.totalorder %s196, %s198
    %p202 = scmp.eq.s32.totalorder %s15, 0
    %p203 = por %p201, %p202
    %p204 = scmp.ne.s32.totalorder %s196, %s198
    %p205 = scmp.eq.s32.totalorder %s20, 1
    %p206 = por %p204, %p205
    %p207 = scmp.ne.s32.totalorder %s198, %s199
    %p208 = scmp.eq.s32.totalorder %s20, 0
    %p209 = por %p207, %p208
    %p210 = scmp.ne.s32.totalorder %s198, %s199
    %p211 = scmp.eq.s32.totalorder %s21, 1
    %p212 = por %p210, %p211
    %p214 = scmp.ne.s32.totalorder %s199, %s213
    %p215 = scmp.eq.s32.totalorder %s21, 0
    %p216 = por %p214, %p215
    %s217 = ssub.s32 %s15, %s22
    %p218 = scmp.eq.s32.totalorder %s217, 0
    %s220 = sadd.s32 %s219, 1
    %s221 = scalar_select %p218, %s219, %s220
    %p224 = pneg %p218
    %p225 = scmp.eq.s32.totalorder %s15, 1
    %p226 = por %p224, %p225
    %p227 = scmp.ne.s32.totalorder %s219, %s222
    %p228 = scmp.eq.s32.totalorder %s15, 0
    %p229 = por %p227, %p228
    %p230 = scmp.ne.s32.totalorder %s219, %s222
    %p231 = scmp.eq.s32.totalorder %s20, 1
    %p232 = por %p230, %p231
    %p233 = scmp.ne.s32.totalorder %s222, %s223
    %p234 = scmp.eq.s32.totalorder %s20, 0
    %p235 = por %p233, %p234
    %p236 = scmp.ne.s32.totalorder %s222, %s223
    %p237 = scmp.eq.s32.totalorder %s21, 1
    %p238 = por %p236, %p237
    %p240 = scmp.ne.s32.totalorder %s223, %s239
    %p241 = scmp.eq.s32.totalorder %s21, 0
    %p242 = por %p240, %p241
    %p243 = scmp.le.s32.totalorder 1, %s15
    %p244 = scmp.lt.s32.totalorder %s15, 3
    %p245 = pnand %p243, %p244
    %p246 = pneg %p245
    // Predicated region
    $region9: #{tpu_custom_call.1} parent=5 // pred_check
      _
    $region10: #{tpu_custom_call.1} parent=5 // pred_check_branch
      %248 = sbr.rel (%p245) target = $region12
    $region11: #{tpu_custom_call.1} parent=5 // pred_region
      %s249 = ssub.s32 %s15, 1
      // Predicated region
      $region13: #{tpu_custom_call.1} parent=11 // pred_check
        %p250 = pneg %p62
      $region14: #{tpu_custom_call.1} parent=11 // pred_check_branch
        %252 = sbr.rel (%p250) target = $region16
      $region15: #{tpu_custom_call.1} parent=11 // pred_region
        _
      $region16: #{tpu_custom_call.1} parent=11 // pred_fallthru
        _
      // Predicated region
      $region17: #{tpu_custom_call.1} parent=11 // pred_check
        %p253 = pneg %p83
      $region18: #{tpu_custom_call.1} parent=11 // pred_check_branch
        %255 = sbr.rel (%p253) target = $region20
      $region19: #{tpu_custom_call.1} parent=11 // pred_region
        _
      $region20: #{tpu_custom_call.1} parent=11 // pred_fallthru
        _
      // Predicated region
      $region21: #{tpu_custom_call.1} parent=11 // pred_check
        %p256 = pneg %p104
      $region22: #{tpu_custom_call.1} parent=11 // pred_check_branch
        %258 = sbr.rel (%p256) target = $region24
      $region23: #{tpu_custom_call.1} parent=11 // pred_region
        _
      $region24: #{tpu_custom_call.1} parent=11 // pred_fallthru
        _
      // Predicated region
      $region25: #{tpu_custom_call.1} parent=11 // pred_check
        %p259 = pneg %p125
      $region26: #{tpu_custom_call.1} parent=11 // pred_check_branch
        %261 = sbr.rel (%p259) target = $region28
      $region27: #{tpu_custom_call.1} parent=11 // pred_region
        _
      $region28: #{tpu_custom_call.1} parent=11 // pred_fallthru
        _
      // Predicated region
      $region29: #{tpu_custom_call.1} parent=11 // pred_check
        %p262 = pneg %p146
      $region30: #{tpu_custom_call.1} parent=11 // pred_check_branch
        %264 = sbr.rel (%p262) target = $region32
      $region31: #{tpu_custom_call.1} parent=11 // pred_region
        _
      $region32: #{tpu_custom_call.1} parent=11 // pred_fallthru
        _
      // Predicated region
      $region33: #{tpu_custom_call.1} parent=11 // pred_check
        %p265 = pneg %p167
      $region34: #{tpu_custom_call.1} parent=11 // pred_check_branch
        %267 = sbr.rel (%p265) target = $region36
      $region35: #{tpu_custom_call.1} parent=11 // pred_region
        _
      $region36: #{tpu_custom_call.1} parent=11 // pred_fallthru
        _
      // Predicated region
      $region37: #{tpu_custom_call.1} parent=11 // pred_check
        %p268 = pneg %p188
      $region38: #{tpu_custom_call.1} parent=11 // pred_check_branch
        %270 = sbr.rel (%p268) target = $region40
      $region39: #{tpu_custom_call.1} parent=11 // pred_region
        _
      $region40: #{tpu_custom_call.1} parent=11 // pred_fallthru
        _
      // Predicated region
      $region41: #{tpu_custom_call.1} parent=11 // pred_check
        %p271 = pneg %p209
      $region42: #{tpu_custom_call.1} parent=11 // pred_check_branch
        %273 = sbr.rel (%p271) target = $region44
      $region43: #{tpu_custom_call.1} parent=11 // pred_region
        _
      $region44: #{tpu_custom_call.1} parent=11 // pred_fallthru
        _
    $region12: #{tpu_custom_call.1} parent=5 // pred_fallthru
      _
    %p274 = scmp.lt.s32.totalorder %s15, 2
    // Predicated region
    $region45: #{tpu_custom_call.1} parent=5 // pred_check
      %p275 = pneg %p274
    $region46: #{tpu_custom_call.1} parent=5 // pred_check_branch
      %277 = sbr.rel (%p275) target = $region48
    $region47: #{tpu_custom_call.1} parent=5 // pred_region
      // Predicated region
      $region49: #{tpu_custom_call.1} parent=47 // pred_check
        %p278 = pneg %p35
      $region50: #{tpu_custom_call.1} parent=47 // pred_check_branch
        %280 = sbr.rel (%p278) target = $region52
      $region51: #{tpu_custom_call.1} parent=47 // pred_region
        %p281 = scmp.lt.s32.totalorder %s15, 1
        %s282 = scalar_select %p281, %s15, 1
        %s283 = smul.addr %s282, 32
        %s284 = smul.addr %s283, 8
        %s285 = scalar_lea.vmem %s0, %s284
      $region52: #{tpu_custom_call.1} parent=47 // pred_fallthru
        _
    $region48: #{tpu_custom_call.1} parent=5 // pred_fallthru
      _
    %p286 = scmp.le.s32.totalorder 1, %s15
    %p287 = scmp.lt.s32.totalorder %s15, 3
    %p288 = pnand %p286, %p287
    %p289 = pneg %p288
    // Predicated region
    $region53: #{tpu_custom_call.1} parent=5 // pred_check
      _
    $region54: #{tpu_custom_call.1} parent=5 // pred_check_branch
      %291 = sbr.rel (%p288) target = $region56
    $region55: #{tpu_custom_call.1} parent=5 // pred_region
      %s292 = ssub.s32 %s15, 1
      %p293 = scmp.lt.s32.totalorder %s20, 1
      %s294 = scalar_select %p293, %s20, 1
      %s295 = smul.addr %s294, 32
      %s296 = smul.addr %s295, 8
      %s297 = scalar_lea.vmem %s0, %s296
      %p298 = pneg %p41
      %p299 = pneg %p38
      %p300 = pneg %p62
      %p301 = pneg %p59
      %p302 = pneg %p83
      %p303 = pneg %p80
      %p304 = pneg %p104
      %p305 = pneg %p101
      %p306 = pneg %p125
      %p307 = pneg %p122
      %p308 = pneg %p146
      %p309 = pneg %p143
      %p310 = pneg %p167
      %p311 = pneg %p164
      %p312 = pneg %p188
      %p313 = pneg %p185
      %p314 = pneg %p209
      %p315 = pneg %p206
      %p316 = pneg %p235
      %p317 = pneg %p232
      %p318 = scmp.lt.s32.totalorder %s20, 1
      %s319 = scalar_select %p318, %s20, 1
      %s320 = smul.addr %s319, 32
      %s321 = smul.addr %s320, 8
      %s322 = scalar_lea.vmem %s9, %s321
      %p323 = scmp.lt.s32.totalorder %s20, 1
      %s324 = scalar_select %p323, %s20, 1
      %s325 = smul.addr %s324, 32
      %s326 = smul.addr %s325, 8
      %s327 = scalar_lea.vmem %s0, %s326
      %p328 = scmp.lt.s32.totalorder %s20, 1
      %s329 = scalar_select %p328, %s20, 1
      %s330 = smul.addr %s329, 32
      %s331 = smul.addr %s330, 8
      %s332 = scalar_lea.vmem %s9, %s331
      %v333 = vld [vmem:[%s327] sm:$0xff]
      %v334 = vld [vmem:[%s327 + $0x8] sm:$0xff]
      %v335 = vld [vmem:[%s327 + $0x10] sm:$0xff]
      %v336 = vld [vmem:[%s327 + $0x18] sm:$0xff]
      %v337 = vld [vmem:[%s327 + $0x20] sm:$0xff]
      %v338 = vld [vmem:[%s327 + $0x28] sm:$0xff]
      %v339 = vld [vmem:[%s327 + $0x30] sm:$0xff]
      %v340 = vld [vmem:[%s327 + $0x38] sm:$0xff]
      %v341 = vld [vmem:[%s327 + $0x40] sm:$0xff]
      %v342 = vld [vmem:[%s327 + $0x48] sm:$0xff]
      %v343 = vld [vmem:[%s327 + $0x50] sm:$0xff]
      %v344 = vld [vmem:[%s327 + $0x58] sm:$0xff]
      %v345 = vld [vmem:[%s327 + $0x60] sm:$0xff]
      %v346 = vld [vmem:[%s327 + $0x68] sm:$0xff]
      %v347 = vld [vmem:[%s327 + $0x70] sm:$0xff]
      %v348 = vld [vmem:[%s327 + $0x78] sm:$0xff]
      %v349 = vld [vmem:[%s327 + $0x80] sm:$0xff]
      %v350 = vld [vmem:[%s327 + $0x88] sm:$0xff]
      %v351 = vld [vmem:[%s327 + $0x90] sm:$0xff]
      %v352 = vld [vmem:[%s327 + $0x98] sm:$0xff]
      %v353 = vld [vmem:[%s327 + $0xa0] sm:$0xff]
      %v354 = vld [vmem:[%s327 + $0xa8] sm:$0xff]
      %v355 = vld [vmem:[%s327 + $0xb0] sm:$0xff]
      %v356 = vld [vmem:[%s327 + $0xb8] sm:$0xff]
      %v357 = vld [vmem:[%s327 + $0xc0] sm:$0xff]
      %v358 = vld [vmem:[%s327 + $0xc8] sm:$0xff]
      %v359 = vld [vmem:[%s327 + $0xd0] sm:$0xff]
      %v360 = vld [vmem:[%s327 + $0xd8] sm:$0xff]
      %v361 = vld [vmem:[%s327 + $0xe0] sm:$0xff]
      %v362 = vld [vmem:[%s327 + $0xe8] sm:$0xff]
      %v363 = vld [vmem:[%s327 + $0xf0] sm:$0xff]
      %v364 = vld [vmem:[%s327 + $0xf8] sm:$0xff]
      %vm365 = vcmask 31744
      %366 = vst.msk [vmem:[#allocation2] sm:$0xff] %vm365, 0.0
      %367 = vst.msk [vmem:[#allocation2 + $0x8] sm:$0xff] %vm365, 0.0
      %vm368 = vcmask 29696
      %369 = vst.msk [vmem:[#allocation2 + $0x10] sm:$0x3f] %vm368, 0.0
      %370 = vst.msk [vmem:[#allocation2 + $0x18] sm:$0xff] %vm365, 0.0
      %371 = vst.msk [vmem:[#allocation2 + $0x20] sm:$0xff] %vm365, 0.0
      %372 = vst.msk [vmem:[#allocation2 + $0x28] sm:$0x3f] %vm368, 0.0
      %373 = vst.msk [vmem:[#allocation2 + $0x30] sm:$0xff] %vm365, 0.0
      %374 = vst.msk [vmem:[#allocation2 + $0x38] sm:$0xff] %vm365, 0.0
      %375 = vst.msk [vmem:[#allocation2 + $0x40] sm:$0x3f] %vm368, 0.0
      %s376 = scalar_lea.vmem [#allocation2], 456
      %377 = vst.msk [vmem:[%s376] sm:$0xff] %vm365, 0.0
      %378 = vst.msk [vmem:[%s376 + $0x8] sm:$0xff] %vm365, 0.0
      %379 = vst.msk [vmem:[%s376 + $0x10] sm:$0x3f] %vm368, 0.0
      %380 = vst.msk [vmem:[%s376 + $0x18] sm:$0xff] %vm365, 0.0
      %381 = vst.msk [vmem:[%s376 + $0x20] sm:$0xff] %vm365, 0.0
      %382 = vst.msk [vmem:[%s376 + $0x28] sm:$0x3f] %vm368, 0.0
      %383 = vst.msk [vmem:[%s376 + $0x30] sm:$0xff] %vm365, 0.0
      %384 = vst.msk [vmem:[%s376 + $0x38] sm:$0xff] %vm365, 0.0
      %385 = vst.msk [vmem:[%s376 + $0x40] sm:$0x3f] %vm368, 0.0
      %vm386 = vcmask 26624
      %387 = vst.msk [vmem:[#allocation2] sm:$0x7] %vm386, 0.0
      %388 = vst.msk [vmem:[#allocation2 + $0x18] sm:$0x7] %vm386, 0.0
      %389 = vst.msk [vmem:[#allocation2 + $0x30] sm:$0x7] %vm386, 0.0
      %390 = vst.msk [vmem:[#allocation2 + $0x48] sm:$0x7] %vm386, 0.0
      %391 = vst.msk [vmem:[#allocation2 + $0x60] sm:$0x7] %vm386, 0.0
      %392 = vst.msk [vmem:[#allocation2 + $0x78] sm:$0x7] %vm386, 0.0
      %393 = vst.msk [vmem:[#allocation2 + $0x90] sm:$0x7] %vm386, 0.0
      %394 = vst.msk [vmem:[#allocation2 + $0xa8] sm:$0x7] %vm386, 0.0
      %395 = vst.msk [vmem:[#allocation2 + $0xc0] sm:$0x7] %vm386, 0.0
      %396 = vst.msk [vmem:[#allocation2 + $0xd8] sm:$0x7] %vm386, 0.0
      %397 = vst.msk [vmem:[#allocation2 + $0xf0] sm:$0x7] %vm386, 0.0
      %398 = vst.msk [vmem:[#allocation2 + $0x108] sm:$0x7] %vm386, 0.0
      %399 = vst.msk [vmem:[#allocation2 + $0x120] sm:$0x7] %vm386, 0.0
      %400 = vst.msk [vmem:[#allocation2 + $0x138] sm:$0x7] %vm386, 0.0
      %401 = vst.msk [vmem:[#allocation2 + $0x150] sm:$0x7] %vm386, 0.0
      %402 = vst.msk [vmem:[#allocation2 + $0x168] sm:$0x7] %vm386, 0.0
      %403 = vst.msk [vmem:[#allocation2 + $0x180] sm:$0x7] %vm386, 0.0
      %404 = vst.msk [vmem:[#allocation2 + $0x198] sm:$0x7] %vm386, 0.0
      %405 = vst.msk [vmem:[#allocation2 + $0x1b0] sm:$0x7] %vm386, 0.0
      %406 = vst.msk [vmem:[#allocation2 + $0x1c8] sm:$0x7] %vm386, 0.0
      %407 = vst.msk [vmem:[#allocation2 + $0x1e0] sm:$0x7] %vm386, 0.0
      %408 = vst.msk [vmem:[#allocation2 + $0x1f8] sm:$0x7] %vm386, 0.0
      %409 = vst.msk [vmem:[#allocation2 + $0x13] sm:$0x7] %vm386, 0.0
      %410 = vst.msk [vmem:[#allocation2 + $0x2b] sm:$0x7] %vm386, 0.0
      %411 = vst.msk [vmem:[#allocation2 + $0x43] sm:$0x7] %vm386, 0.0
      %412 = vst.msk [vmem:[#allocation2 + $0x5b] sm:$0x7] %vm386, 0.0
      %413 = vst.msk [vmem:[#allocation2 + $0x73] sm:$0x7] %vm386, 0.0
      %414 = vst.msk [vmem:[#allocation2 + $0x8b] sm:$0x7] %vm386, 0.0
      %415 = vst.msk [vmem:[#allocation2 + $0xa3] sm:$0x7] %vm386, 0.0
      %416 = vst.msk [vmem:[#allocation2 + $0xbb] sm:$0x7] %vm386, 0.0
      %417 = vst.msk [vmem:[#allocation2 + $0xd3] sm:$0x7] %vm386, 0.0
      %418 = vst.msk [vmem:[#allocation2 + $0xeb] sm:$0x7] %vm386, 0.0
      %419 = vst.msk [vmem:[#allocation2 + $0x103] sm:$0x7] %vm386, 0.0
      %420 = vst.msk [vmem:[#allocation2 + $0x11b] sm:$0x7] %vm386, 0.0
      %421 = vst.msk [vmem:[#allocation2 + $0x133] sm:$0x7] %vm386, 0.0
      %422 = vst.msk [vmem:[#allocation2 + $0x14b] sm:$0x7] %vm386, 0.0
      %423 = vst.msk [vmem:[#allocation2 + $0x163] sm:$0x7] %vm386, 0.0
      %424 = vst.msk [vmem:[#allocation2 + $0x17b] sm:$0x7] %vm386, 0.0
      %425 = vst.msk [vmem:[#allocation2 + $0x193] sm:$0x7] %vm386, 0.0
      %426 = vst.msk [vmem:[#allocation2 + $0x1ab] sm:$0x7] %vm386, 0.0
      %427 = vst.msk [vmem:[#allocation2 + $0x1c3] sm:$0x7] %vm386, 0.0
      %428 = vst.msk [vmem:[#allocation2 + $0x1db] sm:$0x7] %vm386, 0.0
      %429 = vst.msk [vmem:[#allocation2 + $0x1f3] sm:$0x7] %vm386, 0.0
      %430 = vst.msk [vmem:[#allocation2 + $0x20b] sm:$0x7] %vm386, 0.0
      %s431 = scalar_lea.vmem [#allocation2], 72
      %432 = vst.msk [vmem:[%s431 + $0x3] sm:$0xff] %vm365, %v333
      %433 = vst.msk [vmem:[%s431 + $0xb] sm:$0xff] %vm365, %v334
      %434 = vst.msk [vmem:[%s431 + $0x1b] sm:$0xff] %vm365, %v335
      %435 = vst.msk [vmem:[%s431 + $0x23] sm:$0xff] %vm365, %v336
      %436 = vst.msk [vmem:[%s431 + $0x33] sm:$0xff] %vm365, %v337
      %437 = vst.msk [vmem:[%s431 + $0x3b] sm:$0xff] %vm365, %v338
      %438 = vst.msk [vmem:[%s431 + $0x4b] sm:$0xff] %vm365, %v339
      %439 = vst.msk [vmem:[%s431 + $0x53] sm:$0xff] %vm365, %v340
      %440 = vst.msk [vmem:[%s431 + $0x63] sm:$0xff] %vm365, %v341
      %441 = vst.msk [vmem:[%s431 + $0x6b] sm:$0xff] %vm365, %v342
      %442 = vst.msk [vmem:[%s431 + $0x7b] sm:$0xff] %vm365, %v343
      %443 = vst.msk [vmem:[%s431 + $0x83] sm:$0xff] %vm365, %v344
      %444 = vst.msk [vmem:[%s431 + $0x93] sm:$0xff] %vm365, %v345
      %445 = vst.msk [vmem:[%s431 + $0x9b] sm:$0xff] %vm365, %v346
      %446 = vst.msk [vmem:[%s431 + $0xab] sm:$0xff] %vm365, %v347
      %447 = vst.msk [vmem:[%s431 + $0xb3] sm:$0xff] %vm365, %v348
      %448 = vst.msk [vmem:[%s431 + $0xc3] sm:$0xff] %vm365, %v349
      %449 = vst.msk [vmem:[%s431 + $0xcb] sm:$0xff] %vm365, %v350
      %450 = vst.msk [vmem:[%s431 + $0xdb] sm:$0xff] %vm365, %v351
      %451 = vst.msk [vmem:[%s431 + $0xe3] sm:$0xff] %vm365, %v352
      %452 = vst.msk [vmem:[%s431 + $0xf3] sm:$0xff] %vm365, %v353
      %453 = vst.msk [vmem:[%s431 + $0xfb] sm:$0xff] %vm365, %v354
      %454 = vst.msk [vmem:[%s431 + $0x10b] sm:$0xff] %vm365, %v355
      %455 = vst.msk [vmem:[%s431 + $0x113] sm:$0xff] %vm365, %v356
      %456 = vst.msk [vmem:[%s431 + $0x123] sm:$0xff] %vm365, %v357
      %457 = vst.msk [vmem:[%s431 + $0x12b] sm:$0xff] %vm365, %v358
      %458 = vst.msk [vmem:[%s431 + $0x13b] sm:$0xff] %vm365, %v359
      %459 = vst.msk [vmem:[%s431 + $0x143] sm:$0xff] %vm365, %v360
      %460 = vst.msk [vmem:[%s431 + $0x153] sm:$0xff] %vm365, %v361
      %461 = vst.msk [vmem:[%s431 + $0x15b] sm:$0xff] %vm365, %v362
      %462 = vst.msk [vmem:[%s431 + $0x16b] sm:$0xff] %vm365, %v363
      %463 = vst.msk [vmem:[%s431 + $0x173] sm:$0xff] %vm365, %v364
      %v464 = vld [vmem:[%s1] sm:$0x7f]
      %v465 = vld [vmem:[%s1 + $0x8] sm:$0x7f]
      %v466 = vld [vmem:[%s1 + $0x10] sm:$0x7f]
      %v467 = vld [vmem:[%s1 + $0x18] sm:$0x7f]
      %v468 = vld [vmem:[%s1 + $0x20] sm:$0x7f]
      %v469 = vld [vmem:[%s1 + $0x28] sm:$0x7f]
      %v470 = vld [vmem:[%s1 + $0x30] sm:$0x7f]
      %v471 = vld [vmem:[%s2] sm:$0x1]
      %v473 = vlaneseq
      %v474 = vshrl.u32 %v473, 7
      %v475 = vsub.s32 0, %v474
      %v476 = vrot.slane %v471, %v475
      %v478 = vld [vmem:[#allocation2] sm:$0xff]
      %v479 = vld [vmem:[#allocation2 + $0x8] sm:$0xff]
      %v480 = vld [vmem:[#allocation2 + $0x18] sm:$0xff]
      %v481 = vld [vmem:[#allocation2 + $0x20] sm:$0xff]
      %v482 = vld [vmem:[#allocation2 + $0x30] sm:$0xff]
      %v483 = vld [vmem:[#allocation2 + $0x38] sm:$0xff]
      %v484 = vld [vmem:[#allocation2 + $0x48] sm:$0xff]
      %v485 = vld [vmem:[#allocation2 + $0x50] sm:$0xff]
      %v486 = vld [vmem:[#allocation2 + $0x60] sm:$0xff]
      %v487 = vld [vmem:[#allocation2 + $0x68] sm:$0xff]
      %v488 = vld [vmem:[#allocation2 + $0x78] sm:$0xff]
      %v489 = vld [vmem:[#allocation2 + $0x80] sm:$0xff]
      %v490 = vld [vmem:[#allocation2 + $0x90] sm:$0xff]
      %v491 = vld [vmem:[#allocation2 + $0x98] sm:$0xff]
      %v492 = vld [vmem:[#allocation2 + $0xa8] sm:$0xff]
      %v493 = vld [vmem:[#allocation2 + $0xb0] sm:$0xff]
      %v494 = vld [vmem:[#allocation2 + $0xc0] sm:$0xff]
      %v495 = vld [vmem:[#allocation2 + $0xc8] sm:$0xff]
      %v496 = vld [vmem:[#allocation2 + $0xd8] sm:$0xff]
      %v497 = vld [vmem:[#allocation2 + $0xe0] sm:$0xff]
      %v498 = vld [vmem:[#allocation2 + $0xf0] sm:$0xff]
      %v499 = vld [vmem:[#allocation2 + $0xf8] sm:$0xff]
      %v500 = vld [vmem:[#allocation2 + $0x108] sm:$0xff]
      %v501 = vld [vmem:[#allocation2 + $0x110] sm:$0xff]
      %v502 = vld [vmem:[#allocation2 + $0x120] sm:$0xff]
      %v503 = vld [vmem:[#allocation2 + $0x128] sm:$0xff]
      %v504 = vld [vmem:[#allocation2 + $0x138] sm:$0xff]
      %v505 = vld [vmem:[#allocation2 + $0x140] sm:$0xff]
      %v506 = vld [vmem:[#allocation2 + $0x150] sm:$0xff]
      %v507 = vld [vmem:[#allocation2 + $0x158] sm:$0xff]
      %v508 = vld [vmem:[#allocation2 + $0x168] sm:$0xff]
      %v509 = vld [vmem:[#allocation2 + $0x170] sm:$0xff]
      %v510 = vld [vmem:[#allocation2 + $0x180] sm:$0xff]
      %v511 = vld [vmem:[#allocation2 + $0x188] sm:$0xff]
      %v512 = vld [vmem:[#allocation2 + $0x198] sm:$0xff]
      %v513 = vld [vmem:[#allocation2 + $0x1a0] sm:$0xff]
      %v514 = vld [vmem:[#allocation2 + $0x1b0] sm:$0xff]
      %v515 = vld [vmem:[#allocation2 + $0x1b8] sm:$0xff]
      %v516 = vld [vmem:[#allocation2 + $0x1c8] sm:$0xff]
      %v517 = vld [vmem:[#allocation2 + $0x1d0] sm:$0xff]
      %v518 = vld [vmem:[#allocation2 + $0x1e0] sm:$0xff]
      %v519 = vld [vmem:[#allocation2 + $0x1e8] sm:$0xff]
      %v520 = vld [vmem:[#allocation2 + $0x1f8] sm:$0xff]
      %v521 = vld [vmem:[#allocation2 + $0x200] sm:$0xff]
      %v522 = vlaneseq
      %v523 = vshrl.u32 %v522, 7
      %v524 = vsub.s32 0, %v523
      %v525 = vrot.slane %v464, %v524
      %v526 = vmul.f32 %v478, %v525
      %v527 = vmul.f32 %v479, %v525
      %v528 = vmul.f32 %v480, %v525
      %v529 = vmul.f32 %v481, %v525
      %v530 = vmul.f32 %v482, %v525
      %v531 = vmul.f32 %v483, %v525
      %v532 = vmul.f32 %v484, %v525
      %v533 = vmul.f32 %v485, %v525
      %v534 = vmul.f32 %v486, %v525
      %v535 = vmul.f32 %v487, %v525
      %v536 = vmul.f32 %v488, %v525
      %v537 = vmul.f32 %v489, %v525
      %v538 = vmul.f32 %v490, %v525
      %v539 = vmul.f32 %v491, %v525
      %v540 = vmul.f32 %v492, %v525
      %v541 = vmul.f32 %v493, %v525
      %v542 = vmul.f32 %v494, %v525
      %v543 = vmul.f32 %v495, %v525
      %v544 = vmul.f32 %v496, %v525
      %v545 = vmul.f32 %v497, %v525
      %v546 = vmul.f32 %v498, %v525
      %v547 = vmul.f32 %v499, %v525
      %v548 = vmul.f32 %v500, %v525
      %v549 = vmul.f32 %v501, %v525
      %v550 = vmul.f32 %v502, %v525
      %v551 = vmul.f32 %v503, %v525
      %v552 = vmul.f32 %v504, %v525
      %v553 = vmul.f32 %v505, %v525
      %v554 = vmul.f32 %v506, %v525
      %v555 = vmul.f32 %v507, %v525
      %v556 = vmul.f32 %v508, %v525
      %v557 = vmul.f32 %v509, %v525
      %v558 = vadd.f32 %v476, %v526
      %v559 = vadd.f32 %v476, %v527
      %v560 = vadd.f32 %v476, %v528
      %v561 = vadd.f32 %v476, %v529
      %v562 = vadd.f32 %v476, %v530
      %v563 = vadd.f32 %v476, %v531
      %v564 = vadd.f32 %v476, %v532
      %v565 = vadd.f32 %v476, %v533
      %v566 = vadd.f32 %v476, %v534
      %v567 = vadd.f32 %v476, %v535
      %v568 = vadd.f32 %v476, %v536
      %v569 = vadd.f32 %v476, %v537
      %v570 = vadd.f32 %v476, %v538
      %v571 = vadd.f32 %v476, %v539
      %v572 = vadd.f32 %v476, %v540
      %v573 = vadd.f32 %v476, %v541
      %v574 = vadd.f32 %v476, %v542
      %v575 = vadd.f32 %v476, %v543
      %v576 = vadd.f32 %v476, %v544
      %v577 = vadd.f32 %v476, %v545
      %v578 = vadd.f32 %v476, %v546
      %v579 = vadd.f32 %v476, %v547
      %v580 = vadd.f32 %v476, %v548
      %v581 = vadd.f32 %v476, %v549
      %v582 = vadd.f32 %v476, %v550
      %v583 = vadd.f32 %v476, %v551
      %v584 = vadd.f32 %v476, %v552
      %v585 = vadd.f32 %v476, %v553
      %v586 = vadd.f32 %v476, %v554
      %v587 = vadd.f32 %v476, %v555
      %v588 = vadd.f32 %v476, %v556
      %v589 = vadd.f32 %v476, %v557
      %v590 = vlaneseq
      %v591 = vshrl.u32 %v590, 7
      %v592 = vsub.s32 0, %v591
      %v593 = vrot.slane %v465, %v592
      %v594 = vmul.f32 %v480, %v593
      %v595 = vmul.f32 %v481, %v593
      %v596 = vmul.f32 %v482, %v593
      %v597 = vmul.f32 %v483, %v593
      %v598 = vmul.f32 %v484, %v593
      %v599 = vmul.f32 %v485, %v593
      %v600 = vmul.f32 %v486, %v593
      %v601 = vmul.f32 %v487, %v593
      %v602 = vmul.f32 %v488, %v593
      %v603 = vmul.f32 %v489, %v593
      %v604 = vmul.f32 %v490, %v593
      %v605 = vmul.f32 %v491, %v593
      %v606 = vmul.f32 %v492, %v593
      %v607 = vmul.f32 %v493, %v593
      %v608 = vmul.f32 %v494, %v593
      %v609 = vmul.f32 %v495, %v593
      %v610 = vmul.f32 %v496, %v593
      %v611 = vmul.f32 %v497, %v593
      %v612 = vmul.f32 %v498, %v593
      %v613 = vmul.f32 %v499, %v593
      %v614 = vmul.f32 %v500, %v593
      %v615 = vmul.f32 %v501, %v593
      %v616 = vmul.f32 %v502, %v593
      %v617 = vmul.f32 %v503, %v593
      %v618 = vmul.f32 %v504, %v593
      %v619 = vmul.f32 %v505, %v593
      %v620 = vmul.f32 %v506, %v593
      %v621 = vmul.f32 %v507, %v593
      %v622 = vmul.f32 %v508, %v593
      %v623 = vmul.f32 %v509, %v593
      %v624 = vmul.f32 %v510, %v593
      %v625 = vmul.f32 %v511, %v593
      %v626 = vadd.f32 %v558, %v594
      %v627 = vadd.f32 %v559, %v595
      %v628 = vadd.f32 %v560, %v596
      %v629 = vadd.f32 %v561, %v597
      %v630 = vadd.f32 %v562, %v598
      %v631 = vadd.f32 %v563, %v599
      %v632 = vadd.f32 %v564, %v600
      %v633 = vadd.f32 %v565, %v601
      %v634 = vadd.f32 %v566, %v602
      %v635 = vadd.f32 %v567, %v603
      %v636 = vadd.f32 %v568, %v604
      %v637 = vadd.f32 %v569, %v605
      %v638 = vadd.f32 %v570, %v606
      %v639 = vadd.f32 %v571, %v607
      %v640 = vadd.f32 %v572, %v608
      %v641 = vadd.f32 %v573, %v609
      %v642 = vadd.f32 %v574, %v610
      %v643 = vadd.f32 %v575, %v611
      %v644 = vadd.f32 %v576, %v612
      %v645 = vadd.f32 %v577, %v613
      %v646 = vadd.f32 %v578, %v614
      %v647 = vadd.f32 %v579, %v615
      %v648 = vadd.f32 %v580, %v616
      %v649 = vadd.f32 %v581, %v617
      %v650 = vadd.f32 %v582, %v618
      %v651 = vadd.f32 %v583, %v619
      %v652 = vadd.f32 %v584, %v620
      %v653 = vadd.f32 %v585, %v621
      %v654 = vadd.f32 %v586, %v622
      %v655 = vadd.f32 %v587, %v623
      %v656 = vadd.f32 %v588, %v624
      %v657 = vadd.f32 %v589, %v625
      %v658 = vlaneseq
      %v659 = vshrl.u32 %v658, 7
      %v660 = vsub.s32 0, %v659
      %v661 = vrot.slane %v466, %v660
      %v662 = vmul.f32 %v482, %v661
      %v663 = vmul.f32 %v483, %v661
      %v664 = vmul.f32 %v484, %v661
      %v665 = vmul.f32 %v485, %v661
      %v666 = vmul.f32 %v486, %v661
      %v667 = vmul.f32 %v487, %v661
      %v668 = vmul.f32 %v488, %v661
      %v669 = vmul.f32 %v489, %v661
      %v670 = vmul.f32 %v490, %v661
      %v671 = vmul.f32 %v491, %v661
      %v672 = vmul.f32 %v492, %v661
      %v673 = vmul.f32 %v493, %v661
      %v674 = vmul.f32 %v494, %v661
      %v675 = vmul.f32 %v495, %v661
      %v676 = vmul.f32 %v496, %v661
      %v677 = vmul.f32 %v497, %v661
      %v678 = vmul.f32 %v498, %v661
      %v679 = vmul.f32 %v499, %v661
      %v680 = vmul.f32 %v500, %v661
      %v681 = vmul.f32 %v501, %v661
      %v682 = vmul.f32 %v502, %v661
      %v683 = vmul.f32 %v503, %v661
      %v684 = vmul.f32 %v504, %v661
      %v685 = vmul.f32 %v505, %v661
      %v686 = vmul.f32 %v506, %v661
      %v687 = vmul.f32 %v507, %v661
      %v688 = vmul.f32 %v508, %v661
      %v689 = vmul.f32 %v509, %v661
      %v690 = vmul.f32 %v510, %v661
      %v691 = vmul.f32 %v511, %v661
      %v692 = vmul.f32 %v512, %v661
      %v693 = vmul.f32 %v513, %v661
      %v694 = vadd.f32 %v626, %v662
      %v695 = vadd.f32 %v627, %v663
      %v696 = vadd.f32 %v628, %v664
      %v697 = vadd.f32 %v629, %v665
      %v698 = vadd.f32 %v630, %v666
      %v699 = vadd.f32 %v631, %v667
      %v700 = vadd.f32 %v632, %v668
      %v701 = vadd.f32 %v633, %v669
      %v702 = vadd.f32 %v634, %v670
      %v703 = vadd.f32 %v635, %v671
      %v704 = vadd.f32 %v636, %v672
      %v705 = vadd.f32 %v637, %v673
      %v706 = vadd.f32 %v638, %v674
      %v707 = vadd.f32 %v639, %v675
      %v708 = vadd.f32 %v640, %v676
      %v709 = vadd.f32 %v641, %v677
      %v710 = vadd.f32 %v642, %v678
      %v711 = vadd.f32 %v643, %v679
      %v712 = vadd.f32 %v644, %v680
      %v713 = vadd.f32 %v645, %v681
      %v714 = vadd.f32 %v646, %v682
      %v715 = vadd.f32 %v647, %v683
      %v716 = vadd.f32 %v648, %v684
      %v717 = vadd.f32 %v649, %v685
      %v718 = vadd.f32 %v650, %v686
      %v719 = vadd.f32 %v651, %v687
      %v720 = vadd.f32 %v652, %v688
      %v721 = vadd.f32 %v653, %v689
      %v722 = vadd.f32 %v654, %v690
      %v723 = vadd.f32 %v655, %v691
      %v724 = vadd.f32 %v656, %v692
      %v725 = vadd.f32 %v657, %v693
      %v726 = vlaneseq
      %v727 = vshrl.u32 %v726, 7
      %v728 = vsub.s32 0, %v727
      %v729 = vrot.slane %v467, %v728
      %v730 = vmul.f32 %v484, %v729
      %v731 = vmul.f32 %v485, %v729
      %v732 = vmul.f32 %v486, %v729
      %v733 = vmul.f32 %v487, %v729
      %v734 = vmul.f32 %v488, %v729
      %v735 = vmul.f32 %v489, %v729
      %v736 = vmul.f32 %v490, %v729
      %v737 = vmul.f32 %v491, %v729
      %v738 = vmul.f32 %v492, %v729
      %v739 = vmul.f32 %v493, %v729
      %v740 = vmul.f32 %v494, %v729
      %v741 = vmul.f32 %v495, %v729
      %v742 = vmul.f32 %v496, %v729
      %v743 = vmul.f32 %v497, %v729
      %v744 = vmul.f32 %v498, %v729
      %v745 = vmul.f32 %v499, %v729
      %v746 = vmul.f32 %v500, %v729
      %v747 = vmul.f32 %v501, %v729
      %v748 = vmul.f32 %v502, %v729
      %v749 = vmul.f32 %v503, %v729
      %v750 = vmul.f32 %v504, %v729
      %v751 = vmul.f32 %v505, %v729
      %v752 = vmul.f32 %v506, %v729
      %v753 = vmul.f32 %v507, %v729
      %v754 = vmul.f32 %v508, %v729
      %v755 = vmul.f32 %v509, %v729
      %v756 = vmul.f32 %v510, %v729
      %v757 = vmul.f32 %v511, %v729
      %v758 = vmul.f32 %v512, %v729
      %v759 = vmul.f32 %v513, %v729
      %v760 = vmul.f32 %v514, %v729
      %v761 = vmul.f32 %v515, %v729
      %v762 = vadd.f32 %v694, %v730
      %v763 = vadd.f32 %v695, %v731
      %v764 = vadd.f32 %v696, %v732
      %v765 = vadd.f32 %v697, %v733
      %v766 = vadd.f32 %v698, %v734
      %v767 = vadd.f32 %v699, %v735
      %v768 = vadd.f32 %v700, %v736
      %v769 = vadd.f32 %v701, %v737
      %v770 = vadd.f32 %v702, %v738
      %v771 = vadd.f32 %v703, %v739
      %v772 = vadd.f32 %v704, %v740
      %v773 = vadd.f32 %v705, %v741
      %v774 = vadd.f32 %v706, %v742
      %v775 = vadd.f32 %v707, %v743
      %v776 = vadd.f32 %v708, %v744
      %v777 = vadd.f32 %v709, %v745
      %v778 = vadd.f32 %v710, %v746
      %v779 = vadd.f32 %v711, %v747
      %v780 = vadd.f32 %v712, %v748
      %v781 = vadd.f32 %v713, %v749
      %v782 = vadd.f32 %v714, %v750
      %v783 = vadd.f32 %v715, %v751
      %v784 = vadd.f32 %v716, %v752
      %v785 = vadd.f32 %v717, %v753
      %v786 = vadd.f32 %v718, %v754
      %v787 = vadd.f32 %v719, %v755
      %v788 = vadd.f32 %v720, %v756
      %v789 = vadd.f32 %v721, %v757
      %v790 = vadd.f32 %v722, %v758
      %v791 = vadd.f32 %v723, %v759
      %v792 = vadd.f32 %v724, %v760
      %v793 = vadd.f32 %v725, %v761
      %v794 = vlaneseq
      %v795 = vshrl.u32 %v794, 7
      %v796 = vsub.s32 0, %v795
      %v797 = vrot.slane %v468, %v796
      %v798 = vmul.f32 %v486, %v797
      %v799 = vmul.f32 %v487, %v797
      %v800 = vmul.f32 %v488, %v797
      %v801 = vmul.f32 %v489, %v797
      %v802 = vmul.f32 %v490, %v797
      %v803 = vmul.f32 %v491, %v797
      %v804 = vmul.f32 %v492, %v797
      %v805 = vmul.f32 %v493, %v797
      %v806 = vmul.f32 %v494, %v797
      %v807 = vmul.f32 %v495, %v797
      %v808 = vmul.f32 %v496, %v797
      %v809 = vmul.f32 %v497, %v797
      %v810 = vmul.f32 %v498, %v797
      %v811 = vmul.f32 %v499, %v797
      %v812 = vmul.f32 %v500, %v797
      %v813 = vmul.f32 %v501, %v797
      %v814 = vmul.f32 %v502, %v797
      %v815 = vmul.f32 %v503, %v797
      %v816 = vmul.f32 %v504, %v797
      %v817 = vmul.f32 %v505, %v797
      %v818 = vmul.f32 %v506, %v797
      %v819 = vmul.f32 %v507, %v797
      %v820 = vmul.f32 %v508, %v797
      %v821 = vmul.f32 %v509, %v797
      %v822 = vmul.f32 %v510, %v797
      %v823 = vmul.f32 %v511, %v797
      %v824 = vmul.f32 %v512, %v797
      %v825 = vmul.f32 %v513, %v797
      %v826 = vmul.f32 %v514, %v797
      %v827 = vmul.f32 %v515, %v797
      %v828 = vmul.f32 %v516, %v797
      %v829 = vmul.f32 %v517, %v797
      %v830 = vadd.f32 %v762, %v798
      %v831 = vadd.f32 %v763, %v799
      %v832 = vadd.f32 %v764, %v800
      %v833 = vadd.f32 %v765, %v801
      %v834 = vadd.f32 %v766, %v802
      %v835 = vadd.f32 %v767, %v803
      %v836 = vadd.f32 %v768, %v804
      %v837 = vadd.f32 %v769, %v805
      %v838 = vadd.f32 %v770, %v806
      %v839 = vadd.f32 %v771, %v807
      %v840 = vadd.f32 %v772, %v808
      %v841 = vadd.f32 %v773, %v809
      %v842 = vadd.f32 %v774, %v810
      %v843 = vadd.f32 %v775, %v811
      %v844 = vadd.f32 %v776, %v812
      %v845 = vadd.f32 %v777, %v813
      %v846 = vadd.f32 %v778, %v814
      %v847 = vadd.f32 %v779, %v815
      %v848 = vadd.f32 %v780, %v816
      %v849 = vadd.f32 %v781, %v817
      %v850 = vadd.f32 %v782, %v818
      %v851 = vadd.f32 %v783, %v819
      %v852 = vadd.f32 %v784, %v820
      %v853 = vadd.f32 %v785, %v821
      %v854 = vadd.f32 %v786, %v822
      %v855 = vadd.f32 %v787, %v823
      %v856 = vadd.f32 %v788, %v824
      %v857 = vadd.f32 %v789, %v825
      %v858 = vadd.f32 %v790, %v826
      %v859 = vadd.f32 %v791, %v827
      %v860 = vadd.f32 %v792, %v828
      %v861 = vadd.f32 %v793, %v829
      %v862 = vlaneseq
      %v863 = vshrl.u32 %v862, 7
      %v864 = vsub.s32 0, %v863
      %v865 = vrot.slane %v469, %v864
      %v866 = vmul.f32 %v488, %v865
      %v867 = vmul.f32 %v489, %v865
      %v868 = vmul.f32 %v490, %v865
      %v869 = vmul.f32 %v491, %v865
      %v870 = vmul.f32 %v492, %v865
      %v871 = vmul.f32 %v493, %v865
      %v872 = vmul.f32 %v494, %v865
      %v873 = vmul.f32 %v495, %v865
      %v874 = vmul.f32 %v496, %v865
      %v875 = vmul.f32 %v497, %v865
      %v876 = vmul.f32 %v498, %v865
      %v877 = vmul.f32 %v499, %v865
      %v878 = vmul.f32 %v500, %v865
      %v879 = vmul.f32 %v501, %v865
      %v880 = vmul.f32 %v502, %v865
      %v881 = vmul.f32 %v503, %v865
      %v882 = vmul.f32 %v504, %v865
      %v883 = vmul.f32 %v505, %v865
      %v884 = vmul.f32 %v506, %v865
      %v885 = vmul.f32 %v507, %v865
      %v886 = vmul.f32 %v508, %v865
      %v887 = vmul.f32 %v509, %v865
      %v888 = vmul.f32 %v510, %v865
      %v889 = vmul.f32 %v511, %v865
      %v890 = vmul.f32 %v512, %v865
      %v891 = vmul.f32 %v513, %v865
      %v892 = vmul.f32 %v514, %v865
      %v893 = vmul.f32 %v515, %v865
      %v894 = vmul.f32 %v516, %v865
      %v895 = vmul.f32 %v517, %v865
      %v896 = vmul.f32 %v518, %v865
      %v897 = vmul.f32 %v519, %v865
      %v898 = vadd.f32 %v830, %v866
      %v899 = vadd.f32 %v831, %v867
      %v900 = vadd.f32 %v832, %v868
      %v901 = vadd.f32 %v833, %v869
      %v902 = vadd.f32 %v834, %v870
      %v903 = vadd.f32 %v835, %v871
      %v904 = vadd.f32 %v836, %v872
      %v905 = vadd.f32 %v837, %v873
      %v906 = vadd.f32 %v838, %v874
      %v907 = vadd.f32 %v839, %v875
      %v908 = vadd.f32 %v840, %v876
      %v909 = vadd.f32 %v841, %v877
      %v910 = vadd.f32 %v842, %v878
      %v911 = vadd.f32 %v843, %v879
      %v912 = vadd.f32 %v844, %v880
      %v913 = vadd.f32 %v845, %v881
      %v914 = vadd.f32 %v846, %v882
      %v915 = vadd.f32 %v847, %v883
      %v916 = vadd.f32 %v848, %v884
      %v917 = vadd.f32 %v849, %v885
      %v918 = vadd.f32 %v850, %v886
      %v919 = vadd.f32 %v851, %v887
      %v920 = vadd.f32 %v852, %v888
      %v921 = vadd.f32 %v853, %v889
      %v922 = vadd.f32 %v854, %v890
      %v923 = vadd.f32 %v855, %v891
      %v924 = vadd.f32 %v856, %v892
      %v925 = vadd.f32 %v857, %v893
      %v926 = vadd.f32 %v858, %v894
      %v927 = vadd.f32 %v859, %v895
      %v928 = vadd.f32 %v860, %v896
      %v929 = vadd.f32 %v861, %v897
      %v930 = vlaneseq
      %v931 = vshrl.u32 %v930, 7
      %v932 = vsub.s32 0, %v931
      %v933 = vrot.slane %v470, %v932
      %v934 = vmul.f32 %v490, %v933
      %v935 = vmul.f32 %v491, %v933
      %v936 = vmul.f32 %v492, %v933
      %v937 = vmul.f32 %v493, %v933
      %v938 = vmul.f32 %v494, %v933
      %v939 = vmul.f32 %v495, %v933
      %v940 = vmul.f32 %v496, %v933
      %v941 = vmul.f32 %v497, %v933
      %v942 = vmul.f32 %v498, %v933
      %v943 = vmul.f32 %v499, %v933
      %v944 = vmul.f32 %v500, %v933
      %v945 = vmul.f32 %v501, %v933
      %v946 = vmul.f32 %v502, %v933
      %v947 = vmul.f32 %v503, %v933
      %v948 = vmul.f32 %v504, %v933
      %v949 = vmul.f32 %v505, %v933
      %v950 = vmul.f32 %v506, %v933
      %v951 = vmul.f32 %v507, %v933
      %v952 = vmul.f32 %v508, %v933
      %v953 = vmul.f32 %v509, %v933
      %v954 = vmul.f32 %v510, %v933
      %v955 = vmul.f32 %v511, %v933
      %v956 = vmul.f32 %v512, %v933
      %v957 = vmul.f32 %v513, %v933
      %v958 = vmul.f32 %v514, %v933
      %v959 = vmul.f32 %v515, %v933
      %v960 = vmul.f32 %v516, %v933
      %v961 = vmul.f32 %v517, %v933
      %v962 = vmul.f32 %v518, %v933
      %v963 = vmul.f32 %v519, %v933
      %v964 = vmul.f32 %v520, %v933
      %v965 = vmul.f32 %v521, %v933
      %v966 = vadd.f32 %v898, %v934
      %v967 = vadd.f32 %v899, %v935
      %v968 = vadd.f32 %v900, %v936
      %v969 = vadd.f32 %v901, %v937
      %v970 = vadd.f32 %v902, %v938
      %v971 = vadd.f32 %v903, %v939
      %v972 = vadd.f32 %v904, %v940
      %v973 = vadd.f32 %v905, %v941
      %v974 = vadd.f32 %v906, %v942
      %v975 = vadd.f32 %v907, %v943
      %v976 = vadd.f32 %v908, %v944
      %v977 = vadd.f32 %v909, %v945
      %v978 = vadd.f32 %v910, %v946
      %v979 = vadd.f32 %v911, %v947
      %v980 = vadd.f32 %v912, %v948
      %v981 = vadd.f32 %v913, %v949
      %v982 = vadd.f32 %v914, %v950
      %v983 = vadd.f32 %v915, %v951
      %v984 = vadd.f32 %v916, %v952
      %v985 = vadd.f32 %v917, %v953
      %v986 = vadd.f32 %v918, %v954
      %v987 = vadd.f32 %v919, %v955
      %v988 = vadd.f32 %v920, %v956
      %v989 = vadd.f32 %v921, %v957
      %v990 = vadd.f32 %v922, %v958
      %v991 = vadd.f32 %v923, %v959
      %v992 = vadd.f32 %v924, %v960
      %v993 = vadd.f32 %v925, %v961
      %v994 = vadd.f32 %v926, %v962
      %v995 = vadd.f32 %v927, %v963
      %v996 = vadd.f32 %v928, %v964
      %v997 = vadd.f32 %v929, %v965
      %v998 = vld [vmem:[#allocation2 + $0x1] sm:$0xff]
      %v999 = vld [vmem:[#allocation2 + $0x9] sm:$0xff]
      %v1000 = vld [vmem:[#allocation2 + $0x19] sm:$0xff]
      %v1001 = vld [vmem:[#allocation2 + $0x21] sm:$0xff]
      %v1002 = vld [vmem:[#allocation2 + $0x31] sm:$0xff]
      %v1003 = vld [vmem:[#allocation2 + $0x39] sm:$0xff]
      %v1004 = vld [vmem:[#allocation2 + $0x49] sm:$0xff]
      %v1005 = vld [vmem:[#allocation2 + $0x51] sm:$0xff]
      %v1006 = vld [vmem:[#allocation2 + $0x61] sm:$0xff]
      %v1007 = vld [vmem:[#allocation2 + $0x69] sm:$0xff]
      %v1008 = vld [vmem:[#allocation2 + $0x79] sm:$0xff]
      %v1009 = vld [vmem:[#allocation2 + $0x81] sm:$0xff]
      %v1010 = vld [vmem:[#allocation2 + $0x91] sm:$0xff]
      %v1011 = vld [vmem:[#allocation2 + $0x99] sm:$0xff]
      %v1012 = vld [vmem:[#allocation2 + $0xa9] sm:$0xff]
      %v1013 = vld [vmem:[#allocation2 + $0xb1] sm:$0xff]
      %v1014 = vld [vmem:[#allocation2 + $0xc1] sm:$0xff]
      %v1015 = vld [vmem:[#allocation2 + $0xc9] sm:$0xff]
      %v1016 = vld [vmem:[#allocation2 + $0xd9] sm:$0xff]
      %v1017 = vld [vmem:[#allocation2 + $0xe1] sm:$0xff]
      %v1018 = vld [vmem:[#allocation2 + $0xf1] sm:$0xff]
      %v1019 = vld [vmem:[#allocation2 + $0xf9] sm:$0xff]
      %v1020 = vld [vmem:[#allocation2 + $0x109] sm:$0xff]
      %v1021 = vld [vmem:[#allocation2 + $0x111] sm:$0xff]
      %v1022 = vld [vmem:[#allocation2 + $0x121] sm:$0xff]
      %v1023 = vld [vmem:[#allocation2 + $0x129] sm:$0xff]
      %v1024 = vld [vmem:[#allocation2 + $0x139] sm:$0xff]
      %v1025 = vld [vmem:[#allocation2 + $0x141] sm:$0xff]
      %v1026 = vld [vmem:[#allocation2 + $0x151] sm:$0xff]
      %v1027 = vld [vmem:[#allocation2 + $0x159] sm:$0xff]
      %v1028 = vld [vmem:[#allocation2 + $0x169] sm:$0xff]
      %v1029 = vld [vmem:[#allocation2 + $0x171] sm:$0xff]
      %v1030 = vld [vmem:[#allocation2 + $0x181] sm:$0xff]
      %v1031 = vld [vmem:[#allocation2 + $0x189] sm:$0xff]
      %v1032 = vld [vmem:[#allocation2 + $0x199] sm:$0xff]
      %v1033 = vld [vmem:[#allocation2 + $0x1a1] sm:$0xff]
      %v1034 = vld [vmem:[#allocation2 + $0x1b1] sm:$0xff]
      %v1035 = vld [vmem:[#allocation2 + $0x1b9] sm:$0xff]
      %v1036 = vld [vmem:[#allocation2 + $0x1c9] sm:$0xff]
      %v1037 = vld [vmem:[#allocation2 + $0x1d1] sm:$0xff]
      %v1038 = vld [vmem:[#allocation2 + $0x1e1] sm:$0xff]
      %v1039 = vld [vmem:[#allocation2 + $0x1e9] sm:$0xff]
      %v1040 = vld [vmem:[#allocation2 + $0x1f9] sm:$0xff]
      %v1041 = vld [vmem:[#allocation2 + $0x201] sm:$0xff]
      %v1042 = vlaneseq
      %v1043 = vshrl.u32 %v1042, 7
      %v1044 = vsub.s32 1, %v1043
      %v1045 = vrot.slane %v464, %v1044
      %v1046 = vmul.f32 %v998, %v1045
      %v1047 = vmul.f32 %v999, %v1045
      %v1048 = vmul.f32 %v1000, %v1045
      %v1049 = vmul.f32 %v1001, %v1045
      %v1050 = vmul.f32 %v1002, %v1045
      %v1051 = vmul.f32 %v1003, %v1045
      %v1052 = vmul.f32 %v1004, %v1045
      %v1053 = vmul.f32 %v1005, %v1045
      %v1054 = vmul.f32 %v1006, %v1045
      %v1055 = vmul.f32 %v1007, %v1045
      %v1056 = vmul.f32 %v1008, %v1045
      %v1057 = vmul.f32 %v1009, %v1045
      %v1058 = vmul.f32 %v1010, %v1045
      %v1059 = vmul.f32 %v1011, %v1045
      %v1060 = vmul.f32 %v1012, %v1045
      %v1061 = vmul.f32 %v1013, %v1045
      %v1062 = vmul.f32 %v1014, %v1045
      %v1063 = vmul.f32 %v1015, %v1045
      %v1064 = vmul.f32 %v1016, %v1045
      %v1065 = vmul.f32 %v1017, %v1045
      %v1066 = vmul.f32 %v1018, %v1045
      %v1067 = vmul.f32 %v1019, %v1045
      %v1068 = vmul.f32 %v1020, %v1045
      %v1069 = vmul.f32 %v1021, %v1045
      %v1070 = vmul.f32 %v1022, %v1045
      %v1071 = vmul.f32 %v1023, %v1045
      %v1072 = vmul.f32 %v1024, %v1045
      %v1073 = vmul.f32 %v1025, %v1045
      %v1074 = vmul.f32 %v1026, %v1045
      %v1075 = vmul.f32 %v1027, %v1045
      %v1076 = vmul.f32 %v1028, %v1045
      %v1077 = vmul.f32 %v1029, %v1045
      %v1078 = vadd.f32 %v966, %v1046
      %v1079 = vadd.f32 %v967, %v1047
      %v1080 = vadd.f32 %v968, %v1048
      %v1081 = vadd.f32 %v969, %v1049
      %v1082 = vadd.f32 %v970, %v1050
      %v1083 = vadd.f32 %v971, %v1051
      %v1084 = vadd.f32 %v972, %v1052
      %v1085 = vadd.f32 %v973, %v1053
      %v1086 = vadd.f32 %v974, %v1054
      %v1087 = vadd.f32 %v975, %v1055
      %v1088 = vadd.f32 %v976, %v1056
      %v1089 = vadd.f32 %v977, %v1057
      %v1090 = vadd.f32 %v978, %v1058
      %v1091 = vadd.f32 %v979, %v1059
      %v1092 = vadd.f32 %v980, %v1060
      %v1093 = vadd.f32 %v981, %v1061
      %v1094 = vadd.f32 %v982, %v1062
      %v1095 = vadd.f32 %v983, %v1063
      %v1096 = vadd.f32 %v984, %v1064
      %v1097 = vadd.f32 %v985, %v1065
      %v1098 = vadd.f32 %v986, %v1066
      %v1099 = vadd.f32 %v987, %v1067
      %v1100 = vadd.f32 %v988, %v1068
      %v1101 = vadd.f32 %v989, %v1069
      %v1102 = vadd.f32 %v990, %v1070
      %v1103 = vadd.f32 %v991, %v1071
      %v1104 = vadd.f32 %v992, %v1072
      %v1105 = vadd.f32 %v993, %v1073
      %v1106 = vadd.f32 %v994, %v1074
      %v1107 = vadd.f32 %v995, %v1075
      %v1108 = vadd.f32 %v996, %v1076
      %v1109 = vadd.f32 %v997, %v1077
      %v1110 = vlaneseq
      %v1111 = vshrl.u32 %v1110, 7
      %v1112 = vsub.s32 1, %v1111
      %v1113 = vrot.slane %v465, %v1112
      %v1114 = vmul.f32 %v1000, %v1113
      %v1115 = vmul.f32 %v1001, %v1113
      %v1116 = vmul.f32 %v1002, %v1113
      %v1117 = vmul.f32 %v1003, %v1113
      %v1118 = vmul.f32 %v1004, %v1113
      %v1119 = vmul.f32 %v1005, %v1113
      %v1120 = vmul.f32 %v1006, %v1113
      %v1121 = vmul.f32 %v1007, %v1113
      %v1122 = vmul.f32 %v1008, %v1113
      %v1123 = vmul.f32 %v1009, %v1113
      %v1124 = vmul.f32 %v1010, %v1113
      %v1125 = vmul.f32 %v1011, %v1113
      %v1126 = vmul.f32 %v1012, %v1113
      %v1127 = vmul.f32 %v1013, %v1113
      %v1128 = vmul.f32 %v1014, %v1113
      %v1129 = vmul.f32 %v1015, %v1113
      %v1130 = vmul.f32 %v1016, %v1113
      %v1131 = vmul.f32 %v1017, %v1113
      %v1132 = vmul.f32 %v1018, %v1113
      %v1133 = vmul.f32 %v1019, %v1113
      %v1134 = vmul.f32 %v1020, %v1113
      %v1135 = vmul.f32 %v1021, %v1113
      %v1136 = vmul.f32 %v1022, %v1113
      %v1137 = vmul.f32 %v1023, %v1113
      %v1138 = vmul.f32 %v1024, %v1113
      %v1139 = vmul.f32 %v1025, %v1113
      %v1140 = vmul.f32 %v1026, %v1113
      %v1141 = vmul.f32 %v1027, %v1113
      %v1142 = vmul.f32 %v1028, %v1113
      %v1143 = vmul.f32 %v1029, %v1113
      %v1144 = vmul.f32 %v1030, %v1113
      %v1145 = vmul.f32 %v1031, %v1113
      %v1146 = vadd.f32 %v1078, %v1114
      %v1147 = vadd.f32 %v1079, %v1115
      %v1148 = vadd.f32 %v1080, %v1116
      %v1149 = vadd.f32 %v1081, %v1117
      %v1150 = vadd.f32 %v1082, %v1118
      %v1151 = vadd.f32 %v1083, %v1119
      %v1152 = vadd.f32 %v1084, %v1120
      %v1153 = vadd.f32 %v1085, %v1121
      %v1154 = vadd.f32 %v1086, %v1122
      %v1155 = vadd.f32 %v1087, %v1123
      %v1156 = vadd.f32 %v1088, %v1124
      %v1157 = vadd.f32 %v1089, %v1125
      %v1158 = vadd.f32 %v1090, %v1126
      %v1159 = vadd.f32 %v1091, %v1127
      %v1160 = vadd.f32 %v1092, %v1128
      %v1161 = vadd.f32 %v1093, %v1129
      %v1162 = vadd.f32 %v1094, %v1130
      %v1163 = vadd.f32 %v1095, %v1131
      %v1164 = vadd.f32 %v1096, %v1132
      %v1165 = vadd.f32 %v1097, %v1133
      %v1166 = vadd.f32 %v1098, %v1134
      %v1167 = vadd.f32 %v1099, %v1135
      %v1168 = vadd.f32 %v1100, %v1136
      %v1169 = vadd.f32 %v1101, %v1137
      %v1170 = vadd.f32 %v1102, %v1138
      %v1171 = vadd.f32 %v1103, %v1139
      %v1172 = vadd.f32 %v1104, %v1140
      %v1173 = vadd.f32 %v1105, %v1141
      %v1174 = vadd.f32 %v1106, %v1142
      %v1175 = vadd.f32 %v1107, %v1143
      %v1176 = vadd.f32 %v1108, %v1144
      %v1177 = vadd.f32 %v1109, %v1145
      %v1178 = vlaneseq
      %v1179 = vshrl.u32 %v1178, 7
      %v1180 = vsub.s32 1, %v1179
      %v1181 = vrot.slane %v466, %v1180
      %v1182 = vmul.f32 %v1002, %v1181
      %v1183 = vmul.f32 %v1003, %v1181
      %v1184 = vmul.f32 %v1004, %v1181
      %v1185 = vmul.f32 %v1005, %v1181
      %v1186 = vmul.f32 %v1006, %v1181
      %v1187 = vmul.f32 %v1007, %v1181
      %v1188 = vmul.f32 %v1008, %v1181
      %v1189 = vmul.f32 %v1009, %v1181
      %v1190 = vmul.f32 %v1010, %v1181
      %v1191 = vmul.f32 %v1011, %v1181
      %v1192 = vmul.f32 %v1012, %v1181
      %v1193 = vmul.f32 %v1013, %v1181
      %v1194 = vmul.f32 %v1014, %v1181
      %v1195 = vmul.f32 %v1015, %v1181
      %v1196 = vmul.f32 %v1016, %v1181
      %v1197 = vmul.f32 %v1017, %v1181
      %v1198 = vmul.f32 %v1018, %v1181
      %v1199 = vmul.f32 %v1019, %v1181
      %v1200 = vmul.f32 %v1020, %v1181
      %v1201 = vmul.f32 %v1021, %v1181
      %v1202 = vmul.f32 %v1022, %v1181
      %v1203 = vmul.f32 %v1023, %v1181
      %v1204 = vmul.f32 %v1024, %v1181
      %v1205 = vmul.f32 %v1025, %v1181
      %v1206 = vmul.f32 %v1026, %v1181
      %v1207 = vmul.f32 %v1027, %v1181
      %v1208 = vmul.f32 %v1028, %v1181
      %v1209 = vmul.f32 %v1029, %v1181
      %v1210 = vmul.f32 %v1030, %v1181
      %v1211 = vmul.f32 %v1031, %v1181
      %v1212 = vmul.f32 %v1032, %v1181
      %v1213 = vmul.f32 %v1033, %v1181
      %v1214 = vadd.f32 %v1146, %v1182
      %v1215 = vadd.f32 %v1147, %v1183
      %v1216 = vadd.f32 %v1148, %v1184
      %v1217 = vadd.f32 %v1149, %v1185
      %v1218 = vadd.f32 %v1150, %v1186
      %v1219 = vadd.f32 %v1151, %v1187
      %v1220 = vadd.f32 %v1152, %v1188
      %v1221 = vadd.f32 %v1153, %v1189
      %v1222 = vadd.f32 %v1154, %v1190
      %v1223 = vadd.f32 %v1155, %v1191
      %v1224 = vadd.f32 %v1156, %v1192
      %v1225 = vadd.f32 %v1157, %v1193
      %v1226 = vadd.f32 %v1158, %v1194
      %v1227 = vadd.f32 %v1159, %v1195
      %v1228 = vadd.f32 %v1160, %v1196
      %v1229 = vadd.f32 %v1161, %v1197
      %v1230 = vadd.f32 %v1162, %v1198
      %v1231 = vadd.f32 %v1163, %v1199
      %v1232 = vadd.f32 %v1164, %v1200
      %v1233 = vadd.f32 %v1165, %v1201
      %v1234 = vadd.f32 %v1166, %v1202
      %v1235 = vadd.f32 %v1167, %v1203
      %v1236 = vadd.f32 %v1168, %v1204
      %v1237 = vadd.f32 %v1169, %v1205
      %v1238 = vadd.f32 %v1170, %v1206
      %v1239 = vadd.f32 %v1171, %v1207
      %v1240 = vadd.f32 %v1172, %v1208
      %v1241 = vadd.f32 %v1173, %v1209
      %v1242 = vadd.f32 %v1174, %v1210
      %v1243 = vadd.f32 %v1175, %v1211
      %v1244 = vadd.f32 %v1176, %v1212
      %v1245 = vadd.f32 %v1177, %v1213
      %v1246 = vlaneseq
      %v1247 = vshrl.u32 %v1246, 7
      %v1248 = vsub.s32 1, %v1247
      %v1249 = vrot.slane %v467, %v1248
      %v1250 = vmul.f32 %v1004, %v1249
      %v1251 = vmul.f32 %v1005, %v1249
      %v1252 = vmul.f32 %v1006, %v1249
      %v1253 = vmul.f32 %v1007, %v1249
      %v1254 = vmul.f32 %v1008, %v1249
      %v1255 = vmul.f32 %v1009, %v1249
      %v1256 = vmul.f32 %v1010, %v1249
      %v1257 = vmul.f32 %v1011, %v1249
      %v1258 = vmul.f32 %v1012, %v1249
      %v1259 = vmul.f32 %v1013, %v1249
      %v1260 = vmul.f32 %v1014, %v1249
      %v1261 = vmul.f32 %v1015, %v1249
      %v1262 = vmul.f32 %v1016, %v1249
      %v1263 = vmul.f32 %v1017, %v1249
      %v1264 = vmul.f32 %v1018, %v1249
      %v1265 = vmul.f32 %v1019, %v1249
      %v1266 = vmul.f32 %v1020, %v1249
      %v1267 = vmul.f32 %v1021, %v1249
      %v1268 = vmul.f32 %v1022, %v1249
      %v1269 = vmul.f32 %v1023, %v1249
      %v1270 = vmul.f32 %v1024, %v1249
      %v1271 = vmul.f32 %v1025, %v1249
      %v1272 = vmul.f32 %v1026, %v1249
      %v1273 = vmul.f32 %v1027, %v1249
      %v1274 = vmul.f32 %v1028, %v1249
      %v1275 = vmul.f32 %v1029, %v1249
      %v1276 = vmul.f32 %v1030, %v1249
      %v1277 = vmul.f32 %v1031, %v1249
      %v1278 = vmul.f32 %v1032, %v1249
      %v1279 = vmul.f32 %v1033, %v1249
      %v1280 = vmul.f32 %v1034, %v1249
      %v1281 = vmul.f32 %v1035, %v1249
      %v1282 = vadd.f32 %v1214, %v1250
      %v1283 = vadd.f32 %v1215, %v1251
      %v1284 = vadd.f32 %v1216, %v1252
      %v1285 = vadd.f32 %v1217, %v1253
      %v1286 = vadd.f32 %v1218, %v1254
      %v1287 = vadd.f32 %v1219, %v1255
      %v1288 = vadd.f32 %v1220, %v1256
      %v1289 = vadd.f32 %v1221, %v1257
      %v1290 = vadd.f32 %v1222, %v1258
      %v1291 = vadd.f32 %v1223, %v1259
      %v1292 = vadd.f32 %v1224, %v1260
      %v1293 = vadd.f32 %v1225, %v1261
      %v1294 = vadd.f32 %v1226, %v1262
      %v1295 = vadd.f32 %v1227, %v1263
      %v1296 = vadd.f32 %v1228, %v1264
      %v1297 = vadd.f32 %v1229, %v1265
      %v1298 = vadd.f32 %v1230, %v1266
      %v1299 = vadd.f32 %v1231, %v1267
      %v1300 = vadd.f32 %v1232, %v1268
      %v1301 = vadd.f32 %v1233, %v1269
      %v1302 = vadd.f32 %v1234, %v1270
      %v1303 = vadd.f32 %v1235, %v1271
      %v1304 = vadd.f32 %v1236, %v1272
      %v1305 = vadd.f32 %v1237, %v1273
      %v1306 = vadd.f32 %v1238, %v1274
      %v1307 = vadd.f32 %v1239, %v1275
      %v1308 = vadd.f32 %v1240, %v1276
      %v1309 = vadd.f32 %v1241, %v1277
      %v1310 = vadd.f32 %v1242, %v1278
      %v1311 = vadd.f32 %v1243, %v1279
      %v1312 = vadd.f32 %v1244, %v1280
      %v1313 = vadd.f32 %v1245, %v1281
      %v1314 = vlaneseq
      %v1315 = vshrl.u32 %v1314, 7
      %v1316 = vsub.s32 1, %v1315
      %v1317 = vrot.slane %v468, %v1316
      %v1318 = vmul.f32 %v1006, %v1317
      %v1319 = vmul.f32 %v1007, %v1317
      %v1320 = vmul.f32 %v1008, %v1317
      %v1321 = vmul.f32 %v1009, %v1317
      %v1322 = vmul.f32 %v1010, %v1317
      %v1323 = vmul.f32 %v1011, %v1317
      %v1324 = vmul.f32 %v1012, %v1317
      %v1325 = vmul.f32 %v1013, %v1317
      %v1326 = vmul.f32 %v1014, %v1317
      %v1327 = vmul.f32 %v1015, %v1317
      %v1328 = vmul.f32 %v1016, %v1317
      %v1329 = vmul.f32 %v1017, %v1317
      %v1330 = vmul.f32 %v1018, %v1317
      %v1331 = vmul.f32 %v1019, %v1317
      %v1332 = vmul.f32 %v1020, %v1317
      %v1333 = vmul.f32 %v1021, %v1317
      %v1334 = vmul.f32 %v1022, %v1317
      %v1335 = vmul.f32 %v1023, %v1317
      %v1336 = vmul.f32 %v1024, %v1317
      %v1337 = vmul.f32 %v1025, %v1317
      %v1338 = vmul.f32 %v1026, %v1317
      %v1339 = vmul.f32 %v1027, %v1317
      %v1340 = vmul.f32 %v1028, %v1317
      %v1341 = vmul.f32 %v1029, %v1317
      %v1342 = vmul.f32 %v1030, %v1317
      %v1343 = vmul.f32 %v1031, %v1317
      %v1344 = vmul.f32 %v1032, %v1317
      %v1345 = vmul.f32 %v1033, %v1317
      %v1346 = vmul.f32 %v1034, %v1317
      %v1347 = vmul.f32 %v1035, %v1317
      %v1348 = vmul.f32 %v1036, %v1317
      %v1349 = vmul.f32 %v1037, %v1317
      %v1350 = vadd.f32 %v1282, %v1318
      %v1351 = vadd.f32 %v1283, %v1319
      %v1352 = vadd.f32 %v1284, %v1320
      %v1353 = vadd.f32 %v1285, %v1321
      %v1354 = vadd.f32 %v1286, %v1322
      %v1355 = vadd.f32 %v1287, %v1323
      %v1356 = vadd.f32 %v1288, %v1324
      %v1357 = vadd.f32 %v1289, %v1325
      %v1358 = vadd.f32 %v1290, %v1326
      %v1359 = vadd.f32 %v1291, %v1327
      %v1360 = vadd.f32 %v1292, %v1328
      %v1361 = vadd.f32 %v1293, %v1329
      %v1362 = vadd.f32 %v1294, %v1330
      %v1363 = vadd.f32 %v1295, %v1331
      %v1364 = vadd.f32 %v1296, %v1332
      %v1365 = vadd.f32 %v1297, %v1333
      %v1366 = vadd.f32 %v1298, %v1334
      %v1367 = vadd.f32 %v1299, %v1335
      %v1368 = vadd.f32 %v1300, %v1336
      %v1369 = vadd.f32 %v1301, %v1337
      %v1370 = vadd.f32 %v1302, %v1338
      %v1371 = vadd.f32 %v1303, %v1339
      %v1372 = vadd.f32 %v1304, %v1340
      %v1373 = vadd.f32 %v1305, %v1341
      %v1374 = vadd.f32 %v1306, %v1342
      %v1375 = vadd.f32 %v1307, %v1343
      %v1376 = vadd.f32 %v1308, %v1344
      %v1377 = vadd.f32 %v1309, %v1345
      %v1378 = vadd.f32 %v1310, %v1346
      %v1379 = vadd.f32 %v1311, %v1347
      %v1380 = vadd.f32 %v1312, %v1348
      %v1381 = vadd.f32 %v1313, %v1349
      %v1382 = vlaneseq
      %v1383 = vshrl.u32 %v1382, 7
      %v1384 = vsub.s32 1, %v1383
      %v1385 = vrot.slane %v469, %v1384
      %v1386 = vmul.f32 %v1008, %v1385
      %v1387 = vmul.f32 %v1009, %v1385
      %v1388 = vmul.f32 %v1010, %v1385
      %v1389 = vmul.f32 %v1011, %v1385
      %v1390 = vmul.f32 %v1012, %v1385
      %v1391 = vmul.f32 %v1013, %v1385
      %v1392 = vmul.f32 %v1014, %v1385
      %v1393 = vmul.f32 %v1015, %v1385
      %v1394 = vmul.f32 %v1016, %v1385
      %v1395 = vmul.f32 %v1017, %v1385
      %v1396 = vmul.f32 %v1018, %v1385
      %v1397 = vmul.f32 %v1019, %v1385
      %v1398 = vmul.f32 %v1020, %v1385
      %v1399 = vmul.f32 %v1021, %v1385
      %v1400 = vmul.f32 %v1022, %v1385
      %v1401 = vmul.f32 %v1023, %v1385
      %v1402 = vmul.f32 %v1024, %v1385
      %v1403 = vmul.f32 %v1025, %v1385
      %v1404 = vmul.f32 %v1026, %v1385
      %v1405 = vmul.f32 %v1027, %v1385
      %v1406 = vmul.f32 %v1028, %v1385
      %v1407 = vmul.f32 %v1029, %v1385
      %v1408 = vmul.f32 %v1030, %v1385
      %v1409 = vmul.f32 %v1031, %v1385
      %v1410 = vmul.f32 %v1032, %v1385
      %v1411 = vmul.f32 %v1033, %v1385
      %v1412 = vmul.f32 %v1034, %v1385
      %v1413 = vmul.f32 %v1035, %v1385
      %v1414 = vmul.f32 %v1036, %v1385
      %v1415 = vmul.f32 %v1037, %v1385
      %v1416 = vmul.f32 %v1038, %v1385
      %v1417 = vmul.f32 %v1039, %v1385
      %v1418 = vadd.f32 %v1350, %v1386
      %v1419 = vadd.f32 %v1351, %v1387
      %v1420 = vadd.f32 %v1352, %v1388
      %v1421 = vadd.f32 %v1353, %v1389
      %v1422 = vadd.f32 %v1354, %v1390
      %v1423 = vadd.f32 %v1355, %v1391
      %v1424 = vadd.f32 %v1356, %v1392
      %v1425 = vadd.f32 %v1357, %v1393
      %v1426 = vadd.f32 %v1358, %v1394
      %v1427 = vadd.f32 %v1359, %v1395
      %v1428 = vadd.f32 %v1360, %v1396
      %v1429 = vadd.f32 %v1361, %v1397
      %v1430 = vadd.f32 %v1362, %v1398
      %v1431 = vadd.f32 %v1363, %v1399
      %v1432 = vadd.f32 %v1364, %v1400
      %v1433 = vadd.f32 %v1365, %v1401
      %v1434 = vadd.f32 %v1366, %v1402
      %v1435 = vadd.f32 %v1367, %v1403
      %v1436 = vadd.f32 %v1368, %v1404
      %v1437 = vadd.f32 %v1369, %v1405
      %v1438 = vadd.f32 %v1370, %v1406
      %v1439 = vadd.f32 %v1371, %v1407
      %v1440 = vadd.f32 %v1372, %v1408
      %v1441 = vadd.f32 %v1373, %v1409
      %v1442 = vadd.f32 %v1374, %v1410
      %v1443 = vadd.f32 %v1375, %v1411
      %v1444 = vadd.f32 %v1376, %v1412
      %v1445 = vadd.f32 %v1377, %v1413
      %v1446 = vadd.f32 %v1378, %v1414
      %v1447 = vadd.f32 %v1379, %v1415
      %v1448 = vadd.f32 %v1380, %v1416
      %v1449 = vadd.f32 %v1381, %v1417
      %v1450 = vlaneseq
      %v1451 = vshrl.u32 %v1450, 7
      %v1452 = vsub.s32 1, %v1451
      %v1453 = vrot.slane %v470, %v1452
      %v1454 = vmul.f32 %v1010, %v1453
      %v1455 = vmul.f32 %v1011, %v1453
      %v1456 = vmul.f32 %v1012, %v1453
      %v1457 = vmul.f32 %v1013, %v1453
      %v1458 = vmul.f32 %v1014, %v1453
      %v1459 = vmul.f32 %v1015, %v1453
      %v1460 = vmul.f32 %v1016, %v1453
      %v1461 = vmul.f32 %v1017, %v1453
      %v1462 = vmul.f32 %v1018, %v1453
      %v1463 = vmul.f32 %v1019, %v1453
      %v1464 = vmul.f32 %v1020, %v1453
      %v1465 = vmul.f32 %v1021, %v1453
      %v1466 = vmul.f32 %v1022, %v1453
      %v1467 = vmul.f32 %v1023, %v1453
      %v1468 = vmul.f32 %v1024, %v1453
      %v1469 = vmul.f32 %v1025, %v1453
      %v1470 = vmul.f32 %v1026, %v1453
      %v1471 = vmul.f32 %v1027, %v1453
      %v1472 = vmul.f32 %v1028, %v1453
      %v1473 = vmul.f32 %v1029, %v1453
      %v1474 = vmul.f32 %v1030, %v1453
      %v1475 = vmul.f32 %v1031, %v1453
      %v1476 = vmul.f32 %v1032, %v1453
      %v1477 = vmul.f32 %v1033, %v1453
      %v1478 = vmul.f32 %v1034, %v1453
      %v1479 = vmul.f32 %v1035, %v1453
      %v1480 = vmul.f32 %v1036, %v1453
      %v1481 = vmul.f32 %v1037, %v1453
      %v1482 = vmul.f32 %v1038, %v1453
      %v1483 = vmul.f32 %v1039, %v1453
      %v1484 = vmul.f32 %v1040, %v1453
      %v1485 = vmul.f32 %v1041, %v1453
      %v1486 = vadd.f32 %v1418, %v1454
      %v1487 = vadd.f32 %v1419, %v1455
      %v1488 = vadd.f32 %v1420, %v1456
      %v1489 = vadd.f32 %v1421, %v1457
      %v1490 = vadd.f32 %v1422, %v1458
      %v1491 = vadd.f32 %v1423, %v1459
      %v1492 = vadd.f32 %v1424, %v1460
      %v1493 = vadd.f32 %v1425, %v1461
      %v1494 = vadd.f32 %v1426, %v1462
      %v1495 = vadd.f32 %v1427, %v1463
      %v1496 = vadd.f32 %v1428, %v1464
      %v1497 = vadd.f32 %v1429, %v1465
      %v1498 = vadd.f32 %v1430, %v1466
      %v1499 = vadd.f32 %v1431, %v1467
      %v1500 = vadd.f32 %v1432, %v1468
      %v1501 = vadd.f32 %v1433, %v1469
      %v1502 = vadd.f32 %v1434, %v1470
      %v1503 = vadd.f32 %v1435, %v1471
      %v1504 = vadd.f32 %v1436, %v1472
      %v1505 = vadd.f32 %v1437, %v1473
      %v1506 = vadd.f32 %v1438, %v1474
      %v1507 = vadd.f32 %v1439, %v1475
      %v1508 = vadd.f32 %v1440, %v1476
      %v1509 = vadd.f32 %v1441, %v1477
      %v1510 = vadd.f32 %v1442, %v1478
      %v1511 = vadd.f32 %v1443, %v1479
      %v1512 = vadd.f32 %v1444, %v1480
      %v1513 = vadd.f32 %v1445, %v1481
      %v1514 = vadd.f32 %v1446, %v1482
      %v1515 = vadd.f32 %v1447, %v1483
      %v1516 = vadd.f32 %v1448, %v1484
      %v1517 = vadd.f32 %v1449, %v1485
      %v1518 = vld [vmem:[#allocation2 + $0x2] sm:$0xff]
      %v1519 = vld [vmem:[#allocation2 + $0xa] sm:$0xff]
      %v1520 = vld [vmem:[#allocation2 + $0x1a] sm:$0xff]
      %v1521 = vld [vmem:[#allocation2 + $0x22] sm:$0xff]
      %v1522 = vld [vmem:[#allocation2 + $0x32] sm:$0xff]
      %v1523 = vld [vmem:[#allocation2 + $0x3a] sm:$0xff]
      %v1524 = vld [vmem:[#allocation2 + $0x4a] sm:$0xff]
      %v1525 = vld [vmem:[#allocation2 + $0x52] sm:$0xff]
      %v1526 = vld [vmem:[#allocation2 + $0x62] sm:$0xff]
      %v1527 = vld [vmem:[#allocation2 + $0x6a] sm:$0xff]
      %v1528 = vld [vmem:[#allocation2 + $0x7a] sm:$0xff]
      %v1529 = vld [vmem:[#allocation2 + $0x82] sm:$0xff]
      %v1530 = vld [vmem:[#allocation2 + $0x92] sm:$0xff]
      %v1531 = vld [vmem:[#allocation2 + $0x9a] sm:$0xff]
      %v1532 = vld [vmem:[#allocation2 + $0xaa] sm:$0xff]
      %v1533 = vld [vmem:[#allocation2 + $0xb2] sm:$0xff]
      %v1534 = vld [vmem:[#allocation2 + $0xc2] sm:$0xff]
      %v1535 = vld [vmem:[#allocation2 + $0xca] sm:$0xff]
      %v1536 = vld [vmem:[#allocation2 + $0xda] sm:$0xff]
      %v1537 = vld [vmem:[#allocation2 + $0xe2] sm:$0xff]
      %v1538 = vld [vmem:[#allocation2 + $0xf2] sm:$0xff]
      %v1539 = vld [vmem:[#allocation2 + $0xfa] sm:$0xff]
      %v1540 = vld [vmem:[#allocation2 + $0x10a] sm:$0xff]
      %v1541 = vld [vmem:[#allocation2 + $0x112] sm:$0xff]
      %v1542 = vld [vmem:[#allocation2 + $0x122] sm:$0xff]
      %v1543 = vld [vmem:[#allocation2 + $0x12a] sm:$0xff]
      %v1544 = vld [vmem:[#allocation2 + $0x13a] sm:$0xff]
      %v1545 = vld [vmem:[#allocation2 + $0x142] sm:$0xff]
      %v1546 = vld [vmem:[#allocation2 + $0x152] sm:$0xff]
      %v1547 = vld [vmem:[#allocation2 + $0x15a] sm:$0xff]
      %v1548 = vld [vmem:[#allocation2 + $0x16a] sm:$0xff]
      %v1549 = vld [vmem:[#allocation2 + $0x172] sm:$0xff]
      %v1550 = vld [vmem:[#allocation2 + $0x182] sm:$0xff]
      %v1551 = vld [vmem:[#allocation2 + $0x18a] sm:$0xff]
      %v1552 = vld [vmem:[#allocation2 + $0x19a] sm:$0xff]
      %v1553 = vld [vmem:[#allocation2 + $0x1a2] sm:$0xff]
      %v1554 = vld [vmem:[#allocation2 + $0x1b2] sm:$0xff]
      %v1555 = vld [vmem:[#allocation2 + $0x1ba] sm:$0xff]
      %v1556 = vld [vmem:[#allocation2 + $0x1ca] sm:$0xff]
      %v1557 = vld [vmem:[#allocation2 + $0x1d2] sm:$0xff]
      %v1558 = vld [vmem:[#allocation2 + $0x1e2] sm:$0xff]
      %v1559 = vld [vmem:[#allocation2 + $0x1ea] sm:$0xff]
      %v1560 = vld [vmem:[#allocation2 + $0x1fa] sm:$0xff]
      %v1561 = vld [vmem:[#allocation2 + $0x202] sm:$0xff]
      %v1562 = vlaneseq
      %v1563 = vshrl.u32 %v1562, 7
      %v1564 = vsub.s32 2, %v1563
      %v1565 = vrot.slane %v464, %v1564
      %v1566 = vmul.f32 %v1518, %v1565
      %v1567 = vmul.f32 %v1519, %v1565
      %v1568 = vmul.f32 %v1520, %v1565
      %v1569 = vmul.f32 %v1521, %v1565
      %v1570 = vmul.f32 %v1522, %v1565
      %v1571 = vmul.f32 %v1523, %v1565
      %v1572 = vmul.f32 %v1524, %v1565
      %v1573 = vmul.f32 %v1525, %v1565
      %v1574 = vmul.f32 %v1526, %v1565
      %v1575 = vmul.f32 %v1527, %v1565
      %v1576 = vmul.f32 %v1528, %v1565
      %v1577 = vmul.f32 %v1529, %v1565
      %v1578 = vmul.f32 %v1530, %v1565
      %v1579 = vmul.f32 %v1531, %v1565
      %v1580 = vmul.f32 %v1532, %v1565
      %v1581 = vmul.f32 %v1533, %v1565
      %v1582 = vmul.f32 %v1534, %v1565
      %v1583 = vmul.f32 %v1535, %v1565
      %v1584 = vmul.f32 %v1536, %v1565
      %v1585 = vmul.f32 %v1537, %v1565
      %v1586 = vmul.f32 %v1538, %v1565
      %v1587 = vmul.f32 %v1539, %v1565
      %v1588 = vmul.f32 %v1540, %v1565
      %v1589 = vmul.f32 %v1541, %v1565
      %v1590 = vmul.f32 %v1542, %v1565
      %v1591 = vmul.f32 %v1543, %v1565
      %v1592 = vmul.f32 %v1544, %v1565
      %v1593 = vmul.f32 %v1545, %v1565
      %v1594 = vmul.f32 %v1546, %v1565
      %v1595 = vmul.f32 %v1547, %v1565
      %v1596 = vmul.f32 %v1548, %v1565
      %v1597 = vmul.f32 %v1549, %v1565
      %v1598 = vadd.f32 %v1486, %v1566
      %v1599 = vadd.f32 %v1487, %v1567
      %v1600 = vadd.f32 %v1488, %v1568
      %v1601 = vadd.f32 %v1489, %v1569
      %v1602 = vadd.f32 %v1490, %v1570
      %v1603 = vadd.f32 %v1491, %v1571
      %v1604 = vadd.f32 %v1492, %v1572
      %v1605 = vadd.f32 %v1493, %v1573
      %v1606 = vadd.f32 %v1494, %v1574
      %v1607 = vadd.f32 %v1495, %v1575
      %v1608 = vadd.f32 %v1496, %v1576
      %v1609 = vadd.f32 %v1497, %v1577
      %v1610 = vadd.f32 %v1498, %v1578
      %v1611 = vadd.f32 %v1499, %v1579
      %v1612 = vadd.f32 %v1500, %v1580
      %v1613 = vadd.f32 %v1501, %v1581
      %v1614 = vadd.f32 %v1502, %v1582
      %v1615 = vadd.f32 %v1503, %v1583
      %v1616 = vadd.f32 %v1504, %v1584
      %v1617 = vadd.f32 %v1505, %v1585
      %v1618 = vadd.f32 %v1506, %v1586
      %v1619 = vadd.f32 %v1507, %v1587
      %v1620 = vadd.f32 %v1508, %v1588
      %v1621 = vadd.f32 %v1509, %v1589
      %v1622 = vadd.f32 %v1510, %v1590
      %v1623 = vadd.f32 %v1511, %v1591
      %v1624 = vadd.f32 %v1512, %v1592
      %v1625 = vadd.f32 %v1513, %v1593
      %v1626 = vadd.f32 %v1514, %v1594
      %v1627 = vadd.f32 %v1515, %v1595
      %v1628 = vadd.f32 %v1516, %v1596
      %v1629 = vadd.f32 %v1517, %v1597
      %v1630 = vlaneseq
      %v1631 = vshrl.u32 %v1630, 7
      %v1632 = vsub.s32 2, %v1631
      %v1633 = vrot.slane %v465, %v1632
      %v1634 = vmul.f32 %v1520, %v1633
      %v1635 = vmul.f32 %v1521, %v1633
      %v1636 = vmul.f32 %v1522, %v1633
      %v1637 = vmul.f32 %v1523, %v1633
      %v1638 = vmul.f32 %v1524, %v1633
      %v1639 = vmul.f32 %v1525, %v1633
      %v1640 = vmul.f32 %v1526, %v1633
      %v1641 = vmul.f32 %v1527, %v1633
      %v1642 = vmul.f32 %v1528, %v1633
      %v1643 = vmul.f32 %v1529, %v1633
      %v1644 = vmul.f32 %v1530, %v1633
      %v1645 = vmul.f32 %v1531, %v1633
      %v1646 = vmul.f32 %v1532, %v1633
      %v1647 = vmul.f32 %v1533, %v1633
      %v1648 = vmul.f32 %v1534, %v1633
      %v1649 = vmul.f32 %v1535, %v1633
      %v1650 = vmul.f32 %v1536, %v1633
      %v1651 = vmul.f32 %v1537, %v1633
      %v1652 = vmul.f32 %v1538, %v1633
      %v1653 = vmul.f32 %v1539, %v1633
      %v1654 = vmul.f32 %v1540, %v1633
      %v1655 = vmul.f32 %v1541, %v1633
      %v1656 = vmul.f32 %v1542, %v1633
      %v1657 = vmul.f32 %v1543, %v1633
      %v1658 = vmul.f32 %v1544, %v1633
      %v1659 = vmul.f32 %v1545, %v1633
      %v1660 = vmul.f32 %v1546, %v1633
      %v1661 = vmul.f32 %v1547, %v1633
      %v1662 = vmul.f32 %v1548, %v1633
      %v1663 = vmul.f32 %v1549, %v1633
      %v1664 = vmul.f32 %v1550, %v1633
      %v1665 = vmul.f32 %v1551, %v1633
      %v1666 = vadd.f32 %v1598, %v1634
      %v1667 = vadd.f32 %v1599, %v1635
      %v1668 = vadd.f32 %v1600, %v1636
      %v1669 = vadd.f32 %v1601, %v1637
      %v1670 = vadd.f32 %v1602, %v1638
      %v1671 = vadd.f32 %v1603, %v1639
      %v1672 = vadd.f32 %v1604, %v1640
      %v1673 = vadd.f32 %v1605, %v1641
      %v1674 = vadd.f32 %v1606, %v1642
      %v1675 = vadd.f32 %v1607, %v1643
      %v1676 = vadd.f32 %v1608, %v1644
      %v1677 = vadd.f32 %v1609, %v1645
      %v1678 = vadd.f32 %v1610, %v1646
      %v1679 = vadd.f32 %v1611, %v1647
      %v1680 = vadd.f32 %v1612, %v1648
      %v1681 = vadd.f32 %v1613, %v1649
      %v1682 = vadd.f32 %v1614, %v1650
      %v1683 = vadd.f32 %v1615, %v1651
      %v1684 = vadd.f32 %v1616, %v1652
      %v1685 = vadd.f32 %v1617, %v1653
      %v1686 = vadd.f32 %v1618, %v1654
      %v1687 = vadd.f32 %v1619, %v1655
      %v1688 = vadd.f32 %v1620, %v1656
      %v1689 = vadd.f32 %v1621, %v1657
      %v1690 = vadd.f32 %v1622, %v1658
      %v1691 = vadd.f32 %v1623, %v1659
      %v1692 = vadd.f32 %v1624, %v1660
      %v1693 = vadd.f32 %v1625, %v1661
      %v1694 = vadd.f32 %v1626, %v1662
      %v1695 = vadd.f32 %v1627, %v1663
      %v1696 = vadd.f32 %v1628, %v1664
      %v1697 = vadd.f32 %v1629, %v1665
      %v1698 = vlaneseq
      %v1699 = vshrl.u32 %v1698, 7
      %v1700 = vsub.s32 2, %v1699
      %v1701 = vrot.slane %v466, %v1700
      %v1702 = vmul.f32 %v1522, %v1701
      %v1703 = vmul.f32 %v1523, %v1701
      %v1704 = vmul.f32 %v1524, %v1701
      %v1705 = vmul.f32 %v1525, %v1701
      %v1706 = vmul.f32 %v1526, %v1701
      %v1707 = vmul.f32 %v1527, %v1701
      %v1708 = vmul.f32 %v1528, %v1701
      %v1709 = vmul.f32 %v1529, %v1701
      %v1710 = vmul.f32 %v1530, %v1701
      %v1711 = vmul.f32 %v1531, %v1701
      %v1712 = vmul.f32 %v1532, %v1701
      %v1713 = vmul.f32 %v1533, %v1701
      %v1714 = vmul.f32 %v1534, %v1701
      %v1715 = vmul.f32 %v1535, %v1701
      %v1716 = vmul.f32 %v1536, %v1701
      %v1717 = vmul.f32 %v1537, %v1701
      %v1718 = vmul.f32 %v1538, %v1701
      %v1719 = vmul.f32 %v1539, %v1701
      %v1720 = vmul.f32 %v1540, %v1701
      %v1721 = vmul.f32 %v1541, %v1701
      %v1722 = vmul.f32 %v1542, %v1701
      %v1723 = vmul.f32 %v1543, %v1701
      %v1724 = vmul.f32 %v1544, %v1701
      %v1725 = vmul.f32 %v1545, %v1701
      %v1726 = vmul.f32 %v1546, %v1701
      %v1727 = vmul.f32 %v1547, %v1701
      %v1728 = vmul.f32 %v1548, %v1701
      %v1729 = vmul.f32 %v1549, %v1701
      %v1730 = vmul.f32 %v1550, %v1701
      %v1731 = vmul.f32 %v1551, %v1701
      %v1732 = vmul.f32 %v1552, %v1701
      %v1733 = vmul.f32 %v1553, %v1701
      %v1734 = vadd.f32 %v1666, %v1702
      %v1735 = vadd.f32 %v1667, %v1703
      %v1736 = vadd.f32 %v1668, %v1704
      %v1737 = vadd.f32 %v1669, %v1705
      %v1738 = vadd.f32 %v1670, %v1706
      %v1739 = vadd.f32 %v1671, %v1707
      %v1740 = vadd.f32 %v1672, %v1708
      %v1741 = vadd.f32 %v1673, %v1709
      %v1742 = vadd.f32 %v1674, %v1710
      %v1743 = vadd.f32 %v1675, %v1711
      %v1744 = vadd.f32 %v1676, %v1712
      %v1745 = vadd.f32 %v1677, %v1713
      %v1746 = vadd.f32 %v1678, %v1714
      %v1747 = vadd.f32 %v1679, %v1715
      %v1748 = vadd.f32 %v1680, %v1716
      %v1749 = vadd.f32 %v1681, %v1717
      %v1750 = vadd.f32 %v1682, %v1718
      %v1751 = vadd.f32 %v1683, %v1719
      %v1752 = vadd.f32 %v1684, %v1720
      %v1753 = vadd.f32 %v1685, %v1721
      %v1754 = vadd.f32 %v1686, %v1722
      %v1755 = vadd.f32 %v1687, %v1723
      %v1756 = vadd.f32 %v1688, %v1724
      %v1757 = vadd.f32 %v1689, %v1725
      %v1758 = vadd.f32 %v1690, %v1726
      %v1759 = vadd.f32 %v1691, %v1727
      %v1760 = vadd.f32 %v1692, %v1728
      %v1761 = vadd.f32 %v1693, %v1729
      %v1762 = vadd.f32 %v1694, %v1730
      %v1763 = vadd.f32 %v1695, %v1731
      %v1764 = vadd.f32 %v1696, %v1732
      %v1765 = vadd.f32 %v1697, %v1733
      %v1766 = vlaneseq
      %v1767 = vshrl.u32 %v1766, 7
      %v1768 = vsub.s32 2, %v1767
      %v1769 = vrot.slane %v467, %v1768
      %v1770 = vmul.f32 %v1524, %v1769
      %v1771 = vmul.f32 %v1525, %v1769
      %v1772 = vmul.f32 %v1526, %v1769
      %v1773 = vmul.f32 %v1527, %v1769
      %v1774 = vmul.f32 %v1528, %v1769
      %v1775 = vmul.f32 %v1529, %v1769
      %v1776 = vmul.f32 %v1530, %v1769
      %v1777 = vmul.f32 %v1531, %v1769
      %v1778 = vmul.f32 %v1532, %v1769
      %v1779 = vmul.f32 %v1533, %v1769
      %v1780 = vmul.f32 %v1534, %v1769
      %v1781 = vmul.f32 %v1535, %v1769
      %v1782 = vmul.f32 %v1536, %v1769
      %v1783 = vmul.f32 %v1537, %v1769
      %v1784 = vmul.f32 %v1538, %v1769
      %v1785 = vmul.f32 %v1539, %v1769
      %v1786 = vmul.f32 %v1540, %v1769
      %v1787 = vmul.f32 %v1541, %v1769
      %v1788 = vmul.f32 %v1542, %v1769
      %v1789 = vmul.f32 %v1543, %v1769
      %v1790 = vmul.f32 %v1544, %v1769
      %v1791 = vmul.f32 %v1545, %v1769
      %v1792 = vmul.f32 %v1546, %v1769
      %v1793 = vmul.f32 %v1547, %v1769
      %v1794 = vmul.f32 %v1548, %v1769
      %v1795 = vmul.f32 %v1549, %v1769
      %v1796 = vmul.f32 %v1550, %v1769
      %v1797 = vmul.f32 %v1551, %v1769
      %v1798 = vmul.f32 %v1552, %v1769
      %v1799 = vmul.f32 %v1553, %v1769
      %v1800 = vmul.f32 %v1554, %v1769
      %v1801 = vmul.f32 %v1555, %v1769
      %v1802 = vadd.f32 %v1734, %v1770
      %v1803 = vadd.f32 %v1735, %v1771
      %v1804 = vadd.f32 %v1736, %v1772
      %v1805 = vadd.f32 %v1737, %v1773
      %v1806 = vadd.f32 %v1738, %v1774
      %v1807 = vadd.f32 %v1739, %v1775
      %v1808 = vadd.f32 %v1740, %v1776
      %v1809 = vadd.f32 %v1741, %v1777
      %v1810 = vadd.f32 %v1742, %v1778
      %v1811 = vadd.f32 %v1743, %v1779
      %v1812 = vadd.f32 %v1744, %v1780
      %v1813 = vadd.f32 %v1745, %v1781
      %v1814 = vadd.f32 %v1746, %v1782
      %v1815 = vadd.f32 %v1747, %v1783
      %v1816 = vadd.f32 %v1748, %v1784
      %v1817 = vadd.f32 %v1749, %v1785
      %v1818 = vadd.f32 %v1750, %v1786
      %v1819 = vadd.f32 %v1751, %v1787
      %v1820 = vadd.f32 %v1752, %v1788
      %v1821 = vadd.f32 %v1753, %v1789
      %v1822 = vadd.f32 %v1754, %v1790
      %v1823 = vadd.f32 %v1755, %v1791
      %v1824 = vadd.f32 %v1756, %v1792
      %v1825 = vadd.f32 %v1757, %v1793
      %v1826 = vadd.f32 %v1758, %v1794
      %v1827 = vadd.f32 %v1759, %v1795
      %v1828 = vadd.f32 %v1760, %v1796
      %v1829 = vadd.f32 %v1761, %v1797
      %v1830 = vadd.f32 %v1762, %v1798
      %v1831 = vadd.f32 %v1763, %v1799
      %v1832 = vadd.f32 %v1764, %v1800
      %v1833 = vadd.f32 %v1765, %v1801
      %v1834 = vlaneseq
      %v1835 = vshrl.u32 %v1834, 7
      %v1836 = vsub.s32 2, %v1835
      %v1837 = vrot.slane %v468, %v1836
      %v1838 = vmul.f32 %v1526, %v1837
      %v1839 = vmul.f32 %v1527, %v1837
      %v1840 = vmul.f32 %v1528, %v1837
      %v1841 = vmul.f32 %v1529, %v1837
      %v1842 = vmul.f32 %v1530, %v1837
      %v1843 = vmul.f32 %v1531, %v1837
      %v1844 = vmul.f32 %v1532, %v1837
      %v1845 = vmul.f32 %v1533, %v1837
      %v1846 = vmul.f32 %v1534, %v1837
      %v1847 = vmul.f32 %v1535, %v1837
      %v1848 = vmul.f32 %v1536, %v1837
      %v1849 = vmul.f32 %v1537, %v1837
      %v1850 = vmul.f32 %v1538, %v1837
      %v1851 = vmul.f32 %v1539, %v1837
      %v1852 = vmul.f32 %v1540, %v1837
      %v1853 = vmul.f32 %v1541, %v1837
      %v1854 = vmul.f32 %v1542, %v1837
      %v1855 = vmul.f32 %v1543, %v1837
      %v1856 = vmul.f32 %v1544, %v1837
      %v1857 = vmul.f32 %v1545, %v1837
      %v1858 = vmul.f32 %v1546, %v1837
      %v1859 = vmul.f32 %v1547, %v1837
      %v1860 = vmul.f32 %v1548, %v1837
      %v1861 = vmul.f32 %v1549, %v1837
      %v1862 = vmul.f32 %v1550, %v1837
      %v1863 = vmul.f32 %v1551, %v1837
      %v1864 = vmul.f32 %v1552, %v1837
      %v1865 = vmul.f32 %v1553, %v1837
      %v1866 = vmul.f32 %v1554, %v1837
      %v1867 = vmul.f32 %v1555, %v1837
      %v1868 = vmul.f32 %v1556, %v1837
      %v1869 = vmul.f32 %v1557, %v1837
      %v1870 = vadd.f32 %v1802, %v1838
      %v1871 = vadd.f32 %v1803, %v1839
      %v1872 = vadd.f32 %v1804, %v1840
      %v1873 = vadd.f32 %v1805, %v1841
      %v1874 = vadd.f32 %v1806, %v1842
      %v1875 = vadd.f32 %v1807, %v1843
      %v1876 = vadd.f32 %v1808, %v1844
      %v1877 = vadd.f32 %v1809, %v1845
      %v1878 = vadd.f32 %v1810, %v1846
      %v1879 = vadd.f32 %v1811, %v1847
      %v1880 = vadd.f32 %v1812, %v1848
      %v1881 = vadd.f32 %v1813, %v1849
      %v1882 = vadd.f32 %v1814, %v1850
      %v1883 = vadd.f32 %v1815, %v1851
      %v1884 = vadd.f32 %v1816, %v1852
      %v1885 = vadd.f32 %v1817, %v1853
      %v1886 = vadd.f32 %v1818, %v1854
      %v1887 = vadd.f32 %v1819, %v1855
      %v1888 = vadd.f32 %v1820, %v1856
      %v1889 = vadd.f32 %v1821, %v1857
      %v1890 = vadd.f32 %v1822, %v1858
      %v1891 = vadd.f32 %v1823, %v1859
      %v1892 = vadd.f32 %v1824, %v1860
      %v1893 = vadd.f32 %v1825, %v1861
      %v1894 = vadd.f32 %v1826, %v1862
      %v1895 = vadd.f32 %v1827, %v1863
      %v1896 = vadd.f32 %v1828, %v1864
      %v1897 = vadd.f32 %v1829, %v1865
      %v1898 = vadd.f32 %v1830, %v1866
      %v1899 = vadd.f32 %v1831, %v1867
      %v1900 = vadd.f32 %v1832, %v1868
      %v1901 = vadd.f32 %v1833, %v1869
      %v1902 = vlaneseq
      %v1903 = vshrl.u32 %v1902, 7
      %v1904 = vsub.s32 2, %v1903
      %v1905 = vrot.slane %v469, %v1904
      %v1906 = vmul.f32 %v1528, %v1905
      %v1907 = vmul.f32 %v1529, %v1905
      %v1908 = vmul.f32 %v1530, %v1905
      %v1909 = vmul.f32 %v1531, %v1905
      %v1910 = vmul.f32 %v1532, %v1905
      %v1911 = vmul.f32 %v1533, %v1905
      %v1912 = vmul.f32 %v1534, %v1905
      %v1913 = vmul.f32 %v1535, %v1905
      %v1914 = vmul.f32 %v1536, %v1905
      %v1915 = vmul.f32 %v1537, %v1905
      %v1916 = vmul.f32 %v1538, %v1905
      %v1917 = vmul.f32 %v1539, %v1905
      %v1918 = vmul.f32 %v1540, %v1905
      %v1919 = vmul.f32 %v1541, %v1905
      %v1920 = vmul.f32 %v1542, %v1905
      %v1921 = vmul.f32 %v1543, %v1905
      %v1922 = vmul.f32 %v1544, %v1905
      %v1923 = vmul.f32 %v1545, %v1905
      %v1924 = vmul.f32 %v1546, %v1905
      %v1925 = vmul.f32 %v1547, %v1905
      %v1926 = vmul.f32 %v1548, %v1905
      %v1927 = vmul.f32 %v1549, %v1905
      %v1928 = vmul.f32 %v1550, %v1905
      %v1929 = vmul.f32 %v1551, %v1905
      %v1930 = vmul.f32 %v1552, %v1905
      %v1931 = vmul.f32 %v1553, %v1905
      %v1932 = vmul.f32 %v1554, %v1905
      %v1933 = vmul.f32 %v1555, %v1905
      %v1934 = vmul.f32 %v1556, %v1905
      %v1935 = vmul.f32 %v1557, %v1905
      %v1936 = vmul.f32 %v1558, %v1905
      %v1937 = vmul.f32 %v1559, %v1905
      %v1938 = vadd.f32 %v1870, %v1906
      %v1939 = vadd.f32 %v1871, %v1907
      %v1940 = vadd.f32 %v1872, %v1908
      %v1941 = vadd.f32 %v1873, %v1909
      %v1942 = vadd.f32 %v1874, %v1910
      %v1943 = vadd.f32 %v1875, %v1911
      %v1944 = vadd.f32 %v1876, %v1912
      %v1945 = vadd.f32 %v1877, %v1913
      %v1946 = vadd.f32 %v1878, %v1914
      %v1947 = vadd.f32 %v1879, %v1915
      %v1948 = vadd.f32 %v1880, %v1916
      %v1949 = vadd.f32 %v1881, %v1917
      %v1950 = vadd.f32 %v1882, %v1918
      %v1951 = vadd.f32 %v1883, %v1919
      %v1952 = vadd.f32 %v1884, %v1920
      %v1953 = vadd.f32 %v1885, %v1921
      %v1954 = vadd.f32 %v1886, %v1922
      %v1955 = vadd.f32 %v1887, %v1923
      %v1956 = vadd.f32 %v1888, %v1924
      %v1957 = vadd.f32 %v1889, %v1925
      %v1958 = vadd.f32 %v1890, %v1926
      %v1959 = vadd.f32 %v1891, %v1927
      %v1960 = vadd.f32 %v1892, %v1928
      %v1961 = vadd.f32 %v1893, %v1929
      %v1962 = vadd.f32 %v1894, %v1930
      %v1963 = vadd.f32 %v1895, %v1931
      %v1964 = vadd.f32 %v1896, %v1932
      %v1965 = vadd.f32 %v1897, %v1933
      %v1966 = vadd.f32 %v1898, %v1934
      %v1967 = vadd.f32 %v1899, %v1935
      %v1968 = vadd.f32 %v1900, %v1936
      %v1969 = vadd.f32 %v1901, %v1937
      %v1970 = vlaneseq
      %v1971 = vshrl.u32 %v1970, 7
      %v1972 = vsub.s32 2, %v1971
      %v1973 = vrot.slane %v470, %v1972
      %v1974 = vmul.f32 %v1530, %v1973
      %v1975 = vmul.f32 %v1531, %v1973
      %v1976 = vmul.f32 %v1532, %v1973
      %v1977 = vmul.f32 %v1533, %v1973
      %v1978 = vmul.f32 %v1534, %v1973
      %v1979 = vmul.f32 %v1535, %v1973
      %v1980 = vmul.f32 %v1536, %v1973
      %v1981 = vmul.f32 %v1537, %v1973
      %v1982 = vmul.f32 %v1538, %v1973
      %v1983 = vmul.f32 %v1539, %v1973
      %v1984 = vmul.f32 %v1540, %v1973
      %v1985 = vmul.f32 %v1541, %v1973
      %v1986 = vmul.f32 %v1542, %v1973
      %v1987 = vmul.f32 %v1543, %v1973
      %v1988 = vmul.f32 %v1544, %v1973
      %v1989 = vmul.f32 %v1545, %v1973
      %v1990 = vmul.f32 %v1546, %v1973
      %v1991 = vmul.f32 %v1547, %v1973
      %v1992 = vmul.f32 %v1548, %v1973
      %v1993 = vmul.f32 %v1549, %v1973
      %v1994 = vmul.f32 %v1550, %v1973
      %v1995 = vmul.f32 %v1551, %v1973
      %v1996 = vmul.f32 %v1552, %v1973
      %v1997 = vmul.f32 %v1553, %v1973
      %v1998 = vmul.f32 %v1554, %v1973
      %v1999 = vmul.f32 %v1555, %v1973
      %v2000 = vmul.f32 %v1556, %v1973
      %v2001 = vmul.f32 %v1557, %v1973
      %v2002 = vmul.f32 %v1558, %v1973
      %v2003 = vmul.f32 %v1559, %v1973
      %v2004 = vmul.f32 %v1560, %v1973
      %v2005 = vmul.f32 %v1561, %v1973
      %v2006 = vadd.f32 %v1938, %v1974
      %v2007 = vadd.f32 %v1939, %v1975
      %v2008 = vadd.f32 %v1940, %v1976
      %v2009 = vadd.f32 %v1941, %v1977
      %v2010 = vadd.f32 %v1942, %v1978
      %v2011 = vadd.f32 %v1943, %v1979
      %v2012 = vadd.f32 %v1944, %v1980
      %v2013 = vadd.f32 %v1945, %v1981
      %v2014 = vadd.f32 %v1946, %v1982
      %v2015 = vadd.f32 %v1947, %v1983
      %v2016 = vadd.f32 %v1948, %v1984
      %v2017 = vadd.f32 %v1949, %v1985
      %v2018 = vadd.f32 %v1950, %v1986
      %v2019 = vadd.f32 %v1951, %v1987
      %v2020 = vadd.f32 %v1952, %v1988
      %v2021 = vadd.f32 %v1953, %v1989
      %v2022 = vadd.f32 %v1954, %v1990
      %v2023 = vadd.f32 %v1955, %v1991
      %v2024 = vadd.f32 %v1956, %v1992
      %v2025 = vadd.f32 %v1957, %v1993
      %v2026 = vadd.f32 %v1958, %v1994
      %v2027 = vadd.f32 %v1959, %v1995
      %v2028 = vadd.f32 %v1960, %v1996
      %v2029 = vadd.f32 %v1961, %v1997
      %v2030 = vadd.f32 %v1962, %v1998
      %v2031 = vadd.f32 %v1963, %v1999
      %v2032 = vadd.f32 %v1964, %v2000
      %v2033 = vadd.f32 %v1965, %v2001
      %v2034 = vadd.f32 %v1966, %v2002
      %v2035 = vadd.f32 %v1967, %v2003
      %v2036 = vadd.f32 %v1968, %v2004
      %v2037 = vadd.f32 %v1969, %v2005
      %v2038 = vld [vmem:[#allocation2 + $0x3] sm:$0xff]
      %v2039 = vld [vmem:[#allocation2 + $0xb] sm:$0xff]
      %v2040 = vld [vmem:[#allocation2 + $0x1b] sm:$0xff]
      %v2041 = vld [vmem:[#allocation2 + $0x23] sm:$0xff]
      %v2042 = vld [vmem:[#allocation2 + $0x33] sm:$0xff]
      %v2043 = vld [vmem:[#allocation2 + $0x3b] sm:$0xff]
      %v2044 = vld [vmem:[#allocation2 + $0x4b] sm:$0xff]
      %v2045 = vld [vmem:[#allocation2 + $0x53] sm:$0xff]
      %v2046 = vld [vmem:[#allocation2 + $0x63] sm:$0xff]
      %v2047 = vld [vmem:[#allocation2 + $0x6b] sm:$0xff]
      %v2048 = vld [vmem:[#allocation2 + $0x7b] sm:$0xff]
      %v2049 = vld [vmem:[#allocation2 + $0x83] sm:$0xff]
      %v2050 = vld [vmem:[#allocation2 + $0x93] sm:$0xff]
      %v2051 = vld [vmem:[#allocation2 + $0x9b] sm:$0xff]
      %v2052 = vld [vmem:[#allocation2 + $0xab] sm:$0xff]
      %v2053 = vld [vmem:[#allocation2 + $0xb3] sm:$0xff]
      %v2054 = vld [vmem:[#allocation2 + $0xc3] sm:$0xff]
      %v2055 = vld [vmem:[#allocation2 + $0xcb] sm:$0xff]
      %v2056 = vld [vmem:[#allocation2 + $0xdb] sm:$0xff]
      %v2057 = vld [vmem:[#allocation2 + $0xe3] sm:$0xff]
      %v2058 = vld [vmem:[#allocation2 + $0xf3] sm:$0xff]
      %v2059 = vld [vmem:[#allocation2 + $0xfb] sm:$0xff]
      %v2060 = vld [vmem:[#allocation2 + $0x10b] sm:$0xff]
      %v2061 = vld [vmem:[#allocation2 + $0x113] sm:$0xff]
      %v2062 = vld [vmem:[#allocation2 + $0x123] sm:$0xff]
      %v2063 = vld [vmem:[#allocation2 + $0x12b] sm:$0xff]
      %v2064 = vld [vmem:[#allocation2 + $0x13b] sm:$0xff]
      %v2065 = vld [vmem:[#allocation2 + $0x143] sm:$0xff]
      %v2066 = vld [vmem:[#allocation2 + $0x153] sm:$0xff]
      %v2067 = vld [vmem:[#allocation2 + $0x15b] sm:$0xff]
      %v2068 = vld [vmem:[#allocation2 + $0x16b] sm:$0xff]
      %v2069 = vld [vmem:[#allocation2 + $0x173] sm:$0xff]
      %v2070 = vld [vmem:[#allocation2 + $0x183] sm:$0xff]
      %v2071 = vld [vmem:[#allocation2 + $0x18b] sm:$0xff]
      %v2072 = vld [vmem:[#allocation2 + $0x19b] sm:$0xff]
      %v2073 = vld [vmem:[#allocation2 + $0x1a3] sm:$0xff]
      %v2074 = vld [vmem:[#allocation2 + $0x1b3] sm:$0xff]
      %v2075 = vld [vmem:[#allocation2 + $0x1bb] sm:$0xff]
      %v2076 = vld [vmem:[#allocation2 + $0x1cb] sm:$0xff]
      %v2077 = vld [vmem:[#allocation2 + $0x1d3] sm:$0xff]
      %v2078 = vld [vmem:[#allocation2 + $0x1e3] sm:$0xff]
      %v2079 = vld [vmem:[#allocation2 + $0x1eb] sm:$0xff]
      %v2080 = vld [vmem:[#allocation2 + $0x1fb] sm:$0xff]
      %v2081 = vld [vmem:[#allocation2 + $0x203] sm:$0xff]
      %v2082 = vlaneseq
      %v2083 = vshrl.u32 %v2082, 7
      %v2084 = vsub.s32 3, %v2083
      %v2085 = vrot.slane %v464, %v2084
      %v2086 = vmul.f32 %v2038, %v2085
      %v2087 = vmul.f32 %v2039, %v2085
      %v2088 = vmul.f32 %v2040, %v2085
      %v2089 = vmul.f32 %v2041, %v2085
      %v2090 = vmul.f32 %v2042, %v2085
      %v2091 = vmul.f32 %v2043, %v2085
      %v2092 = vmul.f32 %v2044, %v2085
      %v2093 = vmul.f32 %v2045, %v2085
      %v2094 = vmul.f32 %v2046, %v2085
      %v2095 = vmul.f32 %v2047, %v2085
      %v2096 = vmul.f32 %v2048, %v2085
      %v2097 = vmul.f32 %v2049, %v2085
      %v2098 = vmul.f32 %v2050, %v2085
      %v2099 = vmul.f32 %v2051, %v2085
      %v2100 = vmul.f32 %v2052, %v2085
      %v2101 = vmul.f32 %v2053, %v2085
      %v2102 = vmul.f32 %v2054, %v2085
      %v2103 = vmul.f32 %v2055, %v2085
      %v2104 = vmul.f32 %v2056, %v2085
      %v2105 = vmul.f32 %v2057, %v2085
      %v2106 = vmul.f32 %v2058, %v2085
      %v2107 = vmul.f32 %v2059, %v2085
      %v2108 = vmul.f32 %v2060, %v2085
      %v2109 = vmul.f32 %v2061, %v2085
      %v2110 = vmul.f32 %v2062, %v2085
      %v2111 = vmul.f32 %v2063, %v2085
      %v2112 = vmul.f32 %v2064, %v2085
      %v2113 = vmul.f32 %v2065, %v2085
      %v2114 = vmul.f32 %v2066, %v2085
      %v2115 = vmul.f32 %v2067, %v2085
      %v2116 = vmul.f32 %v2068, %v2085
      %v2117 = vmul.f32 %v2069, %v2085
      %v2118 = vadd.f32 %v2006, %v2086
      %v2119 = vadd.f32 %v2007, %v2087
      %v2120 = vadd.f32 %v2008, %v2088
      %v2121 = vadd.f32 %v2009, %v2089
      %v2122 = vadd.f32 %v2010, %v2090
      %v2123 = vadd.f32 %v2011, %v2091
      %v2124 = vadd.f32 %v2012, %v2092
      %v2125 = vadd.f32 %v2013, %v2093
      %v2126 = vadd.f32 %v2014, %v2094
      %v2127 = vadd.f32 %v2015, %v2095
      %v2128 = vadd.f32 %v2016, %v2096
      %v2129 = vadd.f32 %v2017, %v2097
      %v2130 = vadd.f32 %v2018, %v2098
      %v2131 = vadd.f32 %v2019, %v2099
      %v2132 = vadd.f32 %v2020, %v2100
      %v2133 = vadd.f32 %v2021, %v2101
      %v2134 = vadd.f32 %v2022, %v2102
      %v2135 = vadd.f32 %v2023, %v2103
      %v2136 = vadd.f32 %v2024, %v2104
      %v2137 = vadd.f32 %v2025, %v2105
      %v2138 = vadd.f32 %v2026, %v2106
      %v2139 = vadd.f32 %v2027, %v2107
      %v2140 = vadd.f32 %v2028, %v2108
      %v2141 = vadd.f32 %v2029, %v2109
      %v2142 = vadd.f32 %v2030, %v2110
      %v2143 = vadd.f32 %v2031, %v2111
      %v2144 = vadd.f32 %v2032, %v2112
      %v2145 = vadd.f32 %v2033, %v2113
      %v2146 = vadd.f32 %v2034, %v2114
      %v2147 = vadd.f32 %v2035, %v2115
      %v2148 = vadd.f32 %v2036, %v2116
      %v2149 = vadd.f32 %v2037, %v2117
      %v2150 = vlaneseq
      %v2151 = vshrl.u32 %v2150, 7
      %v2152 = vsub.s32 3, %v2151
      %v2153 = vrot.slane %v465, %v2152
      %v2154 = vmul.f32 %v2040, %v2153
      %v2155 = vmul.f32 %v2041, %v2153
      %v2156 = vmul.f32 %v2042, %v2153
      %v2157 = vmul.f32 %v2043, %v2153
      %v2158 = vmul.f32 %v2044, %v2153
      %v2159 = vmul.f32 %v2045, %v2153
      %v2160 = vmul.f32 %v2046, %v2153
      %v2161 = vmul.f32 %v2047, %v2153
      %v2162 = vmul.f32 %v2048, %v2153
      %v2163 = vmul.f32 %v2049, %v2153
      %v2164 = vmul.f32 %v2050, %v2153
      %v2165 = vmul.f32 %v2051, %v2153
      %v2166 = vmul.f32 %v2052, %v2153
      %v2167 = vmul.f32 %v2053, %v2153
      %v2168 = vmul.f32 %v2054, %v2153
      %v2169 = vmul.f32 %v2055, %v2153
      %v2170 = vmul.f32 %v2056, %v2153
      %v2171 = vmul.f32 %v2057, %v2153
      %v2172 = vmul.f32 %v2058, %v2153
      %v2173 = vmul.f32 %v2059, %v2153
      %v2174 = vmul.f32 %v2060, %v2153
      %v2175 = vmul.f32 %v2061, %v2153
      %v2176 = vmul.f32 %v2062, %v2153
      %v2177 = vmul.f32 %v2063, %v2153
      %v2178 = vmul.f32 %v2064, %v2153
      %v2179 = vmul.f32 %v2065, %v2153
      %v2180 = vmul.f32 %v2066, %v2153
      %v2181 = vmul.f32 %v2067, %v2153
      %v2182 = vmul.f32 %v2068, %v2153
      %v2183 = vmul.f32 %v2069, %v2153
      %v2184 = vmul.f32 %v2070, %v2153
      %v2185 = vmul.f32 %v2071, %v2153
      %v2186 = vadd.f32 %v2118, %v2154
      %v2187 = vadd.f32 %v2119, %v2155
      %v2188 = vadd.f32 %v2120, %v2156
      %v2189 = vadd.f32 %v2121, %v2157
      %v2190 = vadd.f32 %v2122, %v2158
      %v2191 = vadd.f32 %v2123, %v2159
      %v2192 = vadd.f32 %v2124, %v2160
      %v2193 = vadd.f32 %v2125, %v2161
      %v2194 = vadd.f32 %v2126, %v2162
      %v2195 = vadd.f32 %v2127, %v2163
      %v2196 = vadd.f32 %v2128, %v2164
      %v2197 = vadd.f32 %v2129, %v2165
      %v2198 = vadd.f32 %v2130, %v2166
      %v2199 = vadd.f32 %v2131, %v2167
      %v2200 = vadd.f32 %v2132, %v2168
      %v2201 = vadd.f32 %v2133, %v2169
      %v2202 = vadd.f32 %v2134, %v2170
      %v2203 = vadd.f32 %v2135, %v2171
      %v2204 = vadd.f32 %v2136, %v2172
      %v2205 = vadd.f32 %v2137, %v2173
      %v2206 = vadd.f32 %v2138, %v2174
      %v2207 = vadd.f32 %v2139, %v2175
      %v2208 = vadd.f32 %v2140, %v2176
      %v2209 = vadd.f32 %v2141, %v2177
      %v2210 = vadd.f32 %v2142, %v2178
      %v2211 = vadd.f32 %v2143, %v2179
      %v2212 = vadd.f32 %v2144, %v2180
      %v2213 = vadd.f32 %v2145, %v2181
      %v2214 = vadd.f32 %v2146, %v2182
      %v2215 = vadd.f32 %v2147, %v2183
      %v2216 = vadd.f32 %v2148, %v2184
      %v2217 = vadd.f32 %v2149, %v2185
      %v2218 = vlaneseq
      %v2219 = vshrl.u32 %v2218, 7
      %v2220 = vsub.s32 3, %v2219
      %v2221 = vrot.slane %v466, %v2220
      %v2222 = vmul.f32 %v2042, %v2221
      %v2223 = vmul.f32 %v2043, %v2221
      %v2224 = vmul.f32 %v2044, %v2221
      %v2225 = vmul.f32 %v2045, %v2221
      %v2226 = vmul.f32 %v2046, %v2221
      %v2227 = vmul.f32 %v2047, %v2221
      %v2228 = vmul.f32 %v2048, %v2221
      %v2229 = vmul.f32 %v2049, %v2221
      %v2230 = vmul.f32 %v2050, %v2221
      %v2231 = vmul.f32 %v2051, %v2221
      %v2232 = vmul.f32 %v2052, %v2221
      %v2233 = vmul.f32 %v2053, %v2221
      %v2234 = vmul.f32 %v2054, %v2221
      %v2235 = vmul.f32 %v2055, %v2221
      %v2236 = vmul.f32 %v2056, %v2221
      %v2237 = vmul.f32 %v2057, %v2221
      %v2238 = vmul.f32 %v2058, %v2221
      %v2239 = vmul.f32 %v2059, %v2221
      %v2240 = vmul.f32 %v2060, %v2221
      %v2241 = vmul.f32 %v2061, %v2221
      %v2242 = vmul.f32 %v2062, %v2221
      %v2243 = vmul.f32 %v2063, %v2221
      %v2244 = vmul.f32 %v2064, %v2221
      %v2245 = vmul.f32 %v2065, %v2221
      %v2246 = vmul.f32 %v2066, %v2221
      %v2247 = vmul.f32 %v2067, %v2221
      %v2248 = vmul.f32 %v2068, %v2221
      %v2249 = vmul.f32 %v2069, %v2221
      %v2250 = vmul.f32 %v2070, %v2221
      %v2251 = vmul.f32 %v2071, %v2221
      %v2252 = vmul.f32 %v2072, %v2221
      %v2253 = vmul.f32 %v2073, %v2221
      %v2254 = vadd.f32 %v2186, %v2222
      %v2255 = vadd.f32 %v2187, %v2223
      %v2256 = vadd.f32 %v2188, %v2224
      %v2257 = vadd.f32 %v2189, %v2225
      %v2258 = vadd.f32 %v2190, %v2226
      %v2259 = vadd.f32 %v2191, %v2227
      %v2260 = vadd.f32 %v2192, %v2228
      %v2261 = vadd.f32 %v2193, %v2229
      %v2262 = vadd.f32 %v2194, %v2230
      %v2263 = vadd.f32 %v2195, %v2231
      %v2264 = vadd.f32 %v2196, %v2232
      %v2265 = vadd.f32 %v2197, %v2233
      %v2266 = vadd.f32 %v2198, %v2234
      %v2267 = vadd.f32 %v2199, %v2235
      %v2268 = vadd.f32 %v2200, %v2236
      %v2269 = vadd.f32 %v2201, %v2237
      %v2270 = vadd.f32 %v2202, %v2238
      %v2271 = vadd.f32 %v2203, %v2239
      %v2272 = vadd.f32 %v2204, %v2240
      %v2273 = vadd.f32 %v2205, %v2241
      %v2274 = vadd.f32 %v2206, %v2242
      %v2275 = vadd.f32 %v2207, %v2243
      %v2276 = vadd.f32 %v2208, %v2244
      %v2277 = vadd.f32 %v2209, %v2245
      %v2278 = vadd.f32 %v2210, %v2246
      %v2279 = vadd.f32 %v2211, %v2247
      %v2280 = vadd.f32 %v2212, %v2248
      %v2281 = vadd.f32 %v2213, %v2249
      %v2282 = vadd.f32 %v2214, %v2250
      %v2283 = vadd.f32 %v2215, %v2251
      %v2284 = vadd.f32 %v2216, %v2252
      %v2285 = vadd.f32 %v2217, %v2253
      %v2286 = vlaneseq
      %v2287 = vshrl.u32 %v2286, 7
      %v2288 = vsub.s32 3, %v2287
      %v2289 = vrot.slane %v467, %v2288
      %v2290 = vmul.f32 %v2044, %v2289
      %v2291 = vmul.f32 %v2045, %v2289
      %v2292 = vmul.f32 %v2046, %v2289
      %v2293 = vmul.f32 %v2047, %v2289
      %v2294 = vmul.f32 %v2048, %v2289
      %v2295 = vmul.f32 %v2049, %v2289
      %v2296 = vmul.f32 %v2050, %v2289
      %v2297 = vmul.f32 %v2051, %v2289
      %v2298 = vmul.f32 %v2052, %v2289
      %v2299 = vmul.f32 %v2053, %v2289
      %v2300 = vmul.f32 %v2054, %v2289
      %v2301 = vmul.f32 %v2055, %v2289
      %v2302 = vmul.f32 %v2056, %v2289
      %v2303 = vmul.f32 %v2057, %v2289
      %v2304 = vmul.f32 %v2058, %v2289
      %v2305 = vmul.f32 %v2059, %v2289
      %v2306 = vmul.f32 %v2060, %v2289
      %v2307 = vmul.f32 %v2061, %v2289
      %v2308 = vmul.f32 %v2062, %v2289
      %v2309 = vmul.f32 %v2063, %v2289
      %v2310 = vmul.f32 %v2064, %v2289
      %v2311 = vmul.f32 %v2065, %v2289
      %v2312 = vmul.f32 %v2066, %v2289
      %v2313 = vmul.f32 %v2067, %v2289
      %v2314 = vmul.f32 %v2068, %v2289
      %v2315 = vmul.f32 %v2069, %v2289
      %v2316 = vmul.f32 %v2070, %v2289
      %v2317 = vmul.f32 %v2071, %v2289
      %v2318 = vmul.f32 %v2072, %v2289
      %v2319 = vmul.f32 %v2073, %v2289
      %v2320 = vmul.f32 %v2074, %v2289
      %v2321 = vmul.f32 %v2075, %v2289
      %v2322 = vadd.f32 %v2254, %v2290
      %v2323 = vadd.f32 %v2255, %v2291
      %v2324 = vadd.f32 %v2256, %v2292
      %v2325 = vadd.f32 %v2257, %v2293
      %v2326 = vadd.f32 %v2258, %v2294
      %v2327 = vadd.f32 %v2259, %v2295
      %v2328 = vadd.f32 %v2260, %v2296
      %v2329 = vadd.f32 %v2261, %v2297
      %v2330 = vadd.f32 %v2262, %v2298
      %v2331 = vadd.f32 %v2263, %v2299
      %v2332 = vadd.f32 %v2264, %v2300
      %v2333 = vadd.f32 %v2265, %v2301
      %v2334 = vadd.f32 %v2266, %v2302
      %v2335 = vadd.f32 %v2267, %v2303
      %v2336 = vadd.f32 %v2268, %v2304
      %v2337 = vadd.f32 %v2269, %v2305
      %v2338 = vadd.f32 %v2270, %v2306
      %v2339 = vadd.f32 %v2271, %v2307
      %v2340 = vadd.f32 %v2272, %v2308
      %v2341 = vadd.f32 %v2273, %v2309
      %v2342 = vadd.f32 %v2274, %v2310
      %v2343 = vadd.f32 %v2275, %v2311
      %v2344 = vadd.f32 %v2276, %v2312
      %v2345 = vadd.f32 %v2277, %v2313
      %v2346 = vadd.f32 %v2278, %v2314
      %v2347 = vadd.f32 %v2279, %v2315
      %v2348 = vadd.f32 %v2280, %v2316
      %v2349 = vadd.f32 %v2281, %v2317
      %v2350 = vadd.f32 %v2282, %v2318
      %v2351 = vadd.f32 %v2283, %v2319
      %v2352 = vadd.f32 %v2284, %v2320
      %v2353 = vadd.f32 %v2285, %v2321
      %v2354 = vlaneseq
      %v2355 = vshrl.u32 %v2354, 7
      %v2356 = vsub.s32 3, %v2355
      %v2357 = vrot.slane %v468, %v2356
      %v2358 = vmul.f32 %v2046, %v2357
      %v2359 = vmul.f32 %v2047, %v2357
      %v2360 = vmul.f32 %v2048, %v2357
      %v2361 = vmul.f32 %v2049, %v2357
      %v2362 = vmul.f32 %v2050, %v2357
      %v2363 = vmul.f32 %v2051, %v2357
      %v2364 = vmul.f32 %v2052, %v2357
      %v2365 = vmul.f32 %v2053, %v2357
      %v2366 = vmul.f32 %v2054, %v2357
      %v2367 = vmul.f32 %v2055, %v2357
      %v2368 = vmul.f32 %v2056, %v2357
      %v2369 = vmul.f32 %v2057, %v2357
      %v2370 = vmul.f32 %v2058, %v2357
      %v2371 = vmul.f32 %v2059, %v2357
      %v2372 = vmul.f32 %v2060, %v2357
      %v2373 = vmul.f32 %v2061, %v2357
      %v2374 = vmul.f32 %v2062, %v2357
      %v2375 = vmul.f32 %v2063, %v2357
      %v2376 = vmul.f32 %v2064, %v2357
      %v2377 = vmul.f32 %v2065, %v2357
      %v2378 = vmul.f32 %v2066, %v2357
      %v2379 = vmul.f32 %v2067, %v2357
      %v2380 = vmul.f32 %v2068, %v2357
      %v2381 = vmul.f32 %v2069, %v2357
      %v2382 = vmul.f32 %v2070, %v2357
      %v2383 = vmul.f32 %v2071, %v2357
      %v2384 = vmul.f32 %v2072, %v2357
      %v2385 = vmul.f32 %v2073, %v2357
      %v2386 = vmul.f32 %v2074, %v2357
      %v2387 = vmul.f32 %v2075, %v2357
      %v2388 = vmul.f32 %v2076, %v2357
      %v2389 = vmul.f32 %v2077, %v2357
      %v2390 = vadd.f32 %v2322, %v2358
      %v2391 = vadd.f32 %v2323, %v2359
      %v2392 = vadd.f32 %v2324, %v2360
      %v2393 = vadd.f32 %v2325, %v2361
      %v2394 = vadd.f32 %v2326, %v2362
      %v2395 = vadd.f32 %v2327, %v2363
      %v2396 = vadd.f32 %v2328, %v2364
      %v2397 = vadd.f32 %v2329, %v2365
      %v2398 = vadd.f32 %v2330, %v2366
      %v2399 = vadd.f32 %v2331, %v2367
      %v2400 = vadd.f32 %v2332, %v2368
      %v2401 = vadd.f32 %v2333, %v2369
      %v2402 = vadd.f32 %v2334, %v2370
      %v2403 = vadd.f32 %v2335, %v2371
      %v2404 = vadd.f32 %v2336, %v2372
      %v2405 = vadd.f32 %v2337, %v2373
      %v2406 = vadd.f32 %v2338, %v2374
      %v2407 = vadd.f32 %v2339, %v2375
      %v2408 = vadd.f32 %v2340, %v2376
      %v2409 = vadd.f32 %v2341, %v2377
      %v2410 = vadd.f32 %v2342, %v2378
      %v2411 = vadd.f32 %v2343, %v2379
      %v2412 = vadd.f32 %v2344, %v2380
      %v2413 = vadd.f32 %v2345, %v2381
      %v2414 = vadd.f32 %v2346, %v2382
      %v2415 = vadd.f32 %v2347, %v2383
      %v2416 = vadd.f32 %v2348, %v2384
      %v2417 = vadd.f32 %v2349, %v2385
      %v2418 = vadd.f32 %v2350, %v2386
      %v2419 = vadd.f32 %v2351, %v2387
      %v2420 = vadd.f32 %v2352, %v2388
      %v2421 = vadd.f32 %v2353, %v2389
      %v2422 = vlaneseq
      %v2423 = vshrl.u32 %v2422, 7
      %v2424 = vsub.s32 3, %v2423
      %v2425 = vrot.slane %v469, %v2424
      %v2426 = vmul.f32 %v2048, %v2425
      %v2427 = vmul.f32 %v2049, %v2425
      %v2428 = vmul.f32 %v2050, %v2425
      %v2429 = vmul.f32 %v2051, %v2425
      %v2430 = vmul.f32 %v2052, %v2425
      %v2431 = vmul.f32 %v2053, %v2425
      %v2432 = vmul.f32 %v2054, %v2425
      %v2433 = vmul.f32 %v2055, %v2425
      %v2434 = vmul.f32 %v2056, %v2425
      %v2435 = vmul.f32 %v2057, %v2425
      %v2436 = vmul.f32 %v2058, %v2425
      %v2437 = vmul.f32 %v2059, %v2425
      %v2438 = vmul.f32 %v2060, %v2425
      %v2439 = vmul.f32 %v2061, %v2425
      %v2440 = vmul.f32 %v2062, %v2425
      %v2441 = vmul.f32 %v2063, %v2425
      %v2442 = vmul.f32 %v2064, %v2425
      %v2443 = vmul.f32 %v2065, %v2425
      %v2444 = vmul.f32 %v2066, %v2425
      %v2445 = vmul.f32 %v2067, %v2425
      %v2446 = vmul.f32 %v2068, %v2425
      %v2447 = vmul.f32 %v2069, %v2425
      %v2448 = vmul.f32 %v2070, %v2425
      %v2449 = vmul.f32 %v2071, %v2425
      %v2450 = vmul.f32 %v2072, %v2425
      %v2451 = vmul.f32 %v2073, %v2425
      %v2452 = vmul.f32 %v2074, %v2425
      %v2453 = vmul.f32 %v2075, %v2425
      %v2454 = vmul.f32 %v2076, %v2425
      %v2455 = vmul.f32 %v2077, %v2425
      %v2456 = vmul.f32 %v2078, %v2425
      %v2457 = vmul.f32 %v2079, %v2425
      %v2458 = vadd.f32 %v2390, %v2426
      %v2459 = vadd.f32 %v2391, %v2427
      %v2460 = vadd.f32 %v2392, %v2428
      %v2461 = vadd.f32 %v2393, %v2429
      %v2462 = vadd.f32 %v2394, %v2430
      %v2463 = vadd.f32 %v2395, %v2431
      %v2464 = vadd.f32 %v2396, %v2432
      %v2465 = vadd.f32 %v2397, %v2433
      %v2466 = vadd.f32 %v2398, %v2434
      %v2467 = vadd.f32 %v2399, %v2435
      %v2468 = vadd.f32 %v2400, %v2436
      %v2469 = vadd.f32 %v2401, %v2437
      %v2470 = vadd.f32 %v2402, %v2438
      %v2471 = vadd.f32 %v2403, %v2439
      %v2472 = vadd.f32 %v2404, %v2440
      %v2473 = vadd.f32 %v2405, %v2441
      %v2474 = vadd.f32 %v2406, %v2442
      %v2475 = vadd.f32 %v2407, %v2443
      %v2476 = vadd.f32 %v2408, %v2444
      %v2477 = vadd.f32 %v2409, %v2445
      %v2478 = vadd.f32 %v2410, %v2446
      %v2479 = vadd.f32 %v2411, %v2447
      %v2480 = vadd.f32 %v2412, %v2448
      %v2481 = vadd.f32 %v2413, %v2449
      %v2482 = vadd.f32 %v2414, %v2450
      %v2483 = vadd.f32 %v2415, %v2451
      %v2484 = vadd.f32 %v2416, %v2452
      %v2485 = vadd.f32 %v2417, %v2453
      %v2486 = vadd.f32 %v2418, %v2454
      %v2487 = vadd.f32 %v2419, %v2455
      %v2488 = vadd.f32 %v2420, %v2456
      %v2489 = vadd.f32 %v2421, %v2457
      %v2490 = vlaneseq
      %v2491 = vshrl.u32 %v2490, 7
      %v2492 = vsub.s32 3, %v2491
      %v2493 = vrot.slane %v470, %v2492
      %v2494 = vmul.f32 %v2050, %v2493
      %v2495 = vmul.f32 %v2051, %v2493
      %v2496 = vmul.f32 %v2052, %v2493
      %v2497 = vmul.f32 %v2053, %v2493
      %v2498 = vmul.f32 %v2054, %v2493
      %v2499 = vmul.f32 %v2055, %v2493
      %v2500 = vmul.f32 %v2056, %v2493
      %v2501 = vmul.f32 %v2057, %v2493
      %v2502 = vmul.f32 %v2058, %v2493
      %v2503 = vmul.f32 %v2059, %v2493
      %v2504 = vmul.f32 %v2060, %v2493
      %v2505 = vmul.f32 %v2061, %v2493
      %v2506 = vmul.f32 %v2062, %v2493
      %v2507 = vmul.f32 %v2063, %v2493
      %v2508 = vmul.f32 %v2064, %v2493
      %v2509 = vmul.f32 %v2065, %v2493
      %v2510 = vmul.f32 %v2066, %v2493
      %v2511 = vmul.f32 %v2067, %v2493
      %v2512 = vmul.f32 %v2068, %v2493
      %v2513 = vmul.f32 %v2069, %v2493
      %v2514 = vmul.f32 %v2070, %v2493
      %v2515 = vmul.f32 %v2071, %v2493
      %v2516 = vmul.f32 %v2072, %v2493
      %v2517 = vmul.f32 %v2073, %v2493
      %v2518 = vmul.f32 %v2074, %v2493
      %v2519 = vmul.f32 %v2075, %v2493
      %v2520 = vmul.f32 %v2076, %v2493
      %v2521 = vmul.f32 %v2077, %v2493
      %v2522 = vmul.f32 %v2078, %v2493
      %v2523 = vmul.f32 %v2079, %v2493
      %v2524 = vmul.f32 %v2080, %v2493
      %v2525 = vmul.f32 %v2081, %v2493
      %v2526 = vadd.f32 %v2458, %v2494
      %v2527 = vadd.f32 %v2459, %v2495
      %v2528 = vadd.f32 %v2460, %v2496
      %v2529 = vadd.f32 %v2461, %v2497
      %v2530 = vadd.f32 %v2462, %v2498
      %v2531 = vadd.f32 %v2463, %v2499
      %v2532 = vadd.f32 %v2464, %v2500
      %v2533 = vadd.f32 %v2465, %v2501
      %v2534 = vadd.f32 %v2466, %v2502
      %v2535 = vadd.f32 %v2467, %v2503
      %v2536 = vadd.f32 %v2468, %v2504
      %v2537 = vadd.f32 %v2469, %v2505
      %v2538 = vadd.f32 %v2470, %v2506
      %v2539 = vadd.f32 %v2471, %v2507
      %v2540 = vadd.f32 %v2472, %v2508
      %v2541 = vadd.f32 %v2473, %v2509
      %v2542 = vadd.f32 %v2474, %v2510
      %v2543 = vadd.f32 %v2475, %v2511
      %v2544 = vadd.f32 %v2476, %v2512
      %v2545 = vadd.f32 %v2477, %v2513
      %v2546 = vadd.f32 %v2478, %v2514
      %v2547 = vadd.f32 %v2479, %v2515
      %v2548 = vadd.f32 %v2480, %v2516
      %v2549 = vadd.f32 %v2481, %v2517
      %v2550 = vadd.f32 %v2482, %v2518
      %v2551 = vadd.f32 %v2483, %v2519
      %v2552 = vadd.f32 %v2484, %v2520
      %v2553 = vadd.f32 %v2485, %v2521
      %v2554 = vadd.f32 %v2486, %v2522
      %v2555 = vadd.f32 %v2487, %v2523
      %v2556 = vadd.f32 %v2488, %v2524
      %v2557 = vadd.f32 %v2489, %v2525
      %v2558 = vld [vmem:[#allocation2 + $0x4] sm:$0xff]
      %v2559 = vld [vmem:[#allocation2 + $0xc] sm:$0xff]
      %v2560 = vld [vmem:[#allocation2 + $0x1c] sm:$0xff]
      %v2561 = vld [vmem:[#allocation2 + $0x24] sm:$0xff]
      %v2562 = vld [vmem:[#allocation2 + $0x34] sm:$0xff]
      %v2563 = vld [vmem:[#allocation2 + $0x3c] sm:$0xff]
      %v2564 = vld [vmem:[#allocation2 + $0x4c] sm:$0xff]
      %v2565 = vld [vmem:[#allocation2 + $0x54] sm:$0xff]
      %v2566 = vld [vmem:[#allocation2 + $0x64] sm:$0xff]
      %v2567 = vld [vmem:[#allocation2 + $0x6c] sm:$0xff]
      %v2568 = vld [vmem:[#allocation2 + $0x7c] sm:$0xff]
      %v2569 = vld [vmem:[#allocation2 + $0x84] sm:$0xff]
      %v2570 = vld [vmem:[#allocation2 + $0x94] sm:$0xff]
      %v2571 = vld [vmem:[#allocation2 + $0x9c] sm:$0xff]
      %v2572 = vld [vmem:[#allocation2 + $0xac] sm:$0xff]
      %v2573 = vld [vmem:[#allocation2 + $0xb4] sm:$0xff]
      %v2574 = vld [vmem:[#allocation2 + $0xc4] sm:$0xff]
      %v2575 = vld [vmem:[#allocation2 + $0xcc] sm:$0xff]
      %v2576 = vld [vmem:[#allocation2 + $0xdc] sm:$0xff]
      %v2577 = vld [vmem:[#allocation2 + $0xe4] sm:$0xff]
      %v2578 = vld [vmem:[#allocation2 + $0xf4] sm:$0xff]
      %v2579 = vld [vmem:[#allocation2 + $0xfc] sm:$0xff]
      %v2580 = vld [vmem:[#allocation2 + $0x10c] sm:$0xff]
      %v2581 = vld [vmem:[#allocation2 + $0x114] sm:$0xff]
      %v2582 = vld [vmem:[#allocation2 + $0x124] sm:$0xff]
      %v2583 = vld [vmem:[#allocation2 + $0x12c] sm:$0xff]
      %v2584 = vld [vmem:[#allocation2 + $0x13c] sm:$0xff]
      %v2585 = vld [vmem:[#allocation2 + $0x144] sm:$0xff]
      %v2586 = vld [vmem:[#allocation2 + $0x154] sm:$0xff]
      %v2587 = vld [vmem:[#allocation2 + $0x15c] sm:$0xff]
      %v2588 = vld [vmem:[#allocation2 + $0x16c] sm:$0xff]
      %v2589 = vld [vmem:[#allocation2 + $0x174] sm:$0xff]
      %v2590 = vld [vmem:[#allocation2 + $0x184] sm:$0xff]
      %v2591 = vld [vmem:[#allocation2 + $0x18c] sm:$0xff]
      %v2592 = vld [vmem:[#allocation2 + $0x19c] sm:$0xff]
      %v2593 = vld [vmem:[#allocation2 + $0x1a4] sm:$0xff]
      %v2594 = vld [vmem:[#allocation2 + $0x1b4] sm:$0xff]
      %v2595 = vld [vmem:[#allocation2 + $0x1bc] sm:$0xff]
      %v2596 = vld [vmem:[#allocation2 + $0x1cc] sm:$0xff]
      %v2597 = vld [vmem:[#allocation2 + $0x1d4] sm:$0xff]
      %v2598 = vld [vmem:[#allocation2 + $0x1e4] sm:$0xff]
      %v2599 = vld [vmem:[#allocation2 + $0x1ec] sm:$0xff]
      %v2600 = vld [vmem:[#allocation2 + $0x1fc] sm:$0xff]
      %v2601 = vld [vmem:[#allocation2 + $0x204] sm:$0xff]
      %v2602 = vlaneseq
      %v2603 = vshrl.u32 %v2602, 7
      %v2604 = vsub.s32 4, %v2603
      %v2605 = vrot.slane %v464, %v2604
      %v2606 = vmul.f32 %v2558, %v2605
      %v2607 = vmul.f32 %v2559, %v2605
      %v2608 = vmul.f32 %v2560, %v2605
      %v2609 = vmul.f32 %v2561, %v2605
      %v2610 = vmul.f32 %v2562, %v2605
      %v2611 = vmul.f32 %v2563, %v2605
      %v2612 = vmul.f32 %v2564, %v2605
      %v2613 = vmul.f32 %v2565, %v2605
      %v2614 = vmul.f32 %v2566, %v2605
      %v2615 = vmul.f32 %v2567, %v2605
      %v2616 = vmul.f32 %v2568, %v2605
      %v2617 = vmul.f32 %v2569, %v2605
      %v2618 = vmul.f32 %v2570, %v2605
      %v2619 = vmul.f32 %v2571, %v2605
      %v2620 = vmul.f32 %v2572, %v2605
      %v2621 = vmul.f32 %v2573, %v2605
      %v2622 = vmul.f32 %v2574, %v2605
      %v2623 = vmul.f32 %v2575, %v2605
      %v2624 = vmul.f32 %v2576, %v2605
      %v2625 = vmul.f32 %v2577, %v2605
      %v2626 = vmul.f32 %v2578, %v2605
      %v2627 = vmul.f32 %v2579, %v2605
      %v2628 = vmul.f32 %v2580, %v2605
      %v2629 = vmul.f32 %v2581, %v2605
      %v2630 = vmul.f32 %v2582, %v2605
      %v2631 = vmul.f32 %v2583, %v2605
      %v2632 = vmul.f32 %v2584, %v2605
      %v2633 = vmul.f32 %v2585, %v2605
      %v2634 = vmul.f32 %v2586, %v2605
      %v2635 = vmul.f32 %v2587, %v2605
      %v2636 = vmul.f32 %v2588, %v2605
      %v2637 = vmul.f32 %v2589, %v2605
      %v2638 = vadd.f32 %v2526, %v2606
      %v2639 = vadd.f32 %v2527, %v2607
      %v2640 = vadd.f32 %v2528, %v2608
      %v2641 = vadd.f32 %v2529, %v2609
      %v2642 = vadd.f32 %v2530, %v2610
      %v2643 = vadd.f32 %v2531, %v2611
      %v2644 = vadd.f32 %v2532, %v2612
      %v2645 = vadd.f32 %v2533, %v2613
      %v2646 = vadd.f32 %v2534, %v2614
      %v2647 = vadd.f32 %v2535, %v2615
      %v2648 = vadd.f32 %v2536, %v2616
      %v2649 = vadd.f32 %v2537, %v2617
      %v2650 = vadd.f32 %v2538, %v2618
      %v2651 = vadd.f32 %v2539, %v2619
      %v2652 = vadd.f32 %v2540, %v2620
      %v2653 = vadd.f32 %v2541, %v2621
      %v2654 = vadd.f32 %v2542, %v2622
      %v2655 = vadd.f32 %v2543, %v2623
      %v2656 = vadd.f32 %v2544, %v2624
      %v2657 = vadd.f32 %v2545, %v2625
      %v2658 = vadd.f32 %v2546, %v2626
      %v2659 = vadd.f32 %v2547, %v2627
      %v2660 = vadd.f32 %v2548, %v2628
      %v2661 = vadd.f32 %v2549, %v2629
      %v2662 = vadd.f32 %v2550, %v2630
      %v2663 = vadd.f32 %v2551, %v2631
      %v2664 = vadd.f32 %v2552, %v2632
      %v2665 = vadd.f32 %v2553, %v2633
      %v2666 = vadd.f32 %v2554, %v2634
      %v2667 = vadd.f32 %v2555, %v2635
      %v2668 = vadd.f32 %v2556, %v2636
      %v2669 = vadd.f32 %v2557, %v2637
      %v2670 = vlaneseq
      %v2671 = vshrl.u32 %v2670, 7
      %v2672 = vsub.s32 4, %v2671
      %v2673 = vrot.slane %v465, %v2672
      %v2674 = vmul.f32 %v2560, %v2673
      %v2675 = vmul.f32 %v2561, %v2673
      %v2676 = vmul.f32 %v2562, %v2673
      %v2677 = vmul.f32 %v2563, %v2673
      %v2678 = vmul.f32 %v2564, %v2673
      %v2679 = vmul.f32 %v2565, %v2673
      %v2680 = vmul.f32 %v2566, %v2673
      %v2681 = vmul.f32 %v2567, %v2673
      %v2682 = vmul.f32 %v2568, %v2673
      %v2683 = vmul.f32 %v2569, %v2673
      %v2684 = vmul.f32 %v2570, %v2673
      %v2685 = vmul.f32 %v2571, %v2673
      %v2686 = vmul.f32 %v2572, %v2673
      %v2687 = vmul.f32 %v2573, %v2673
      %v2688 = vmul.f32 %v2574, %v2673
      %v2689 = vmul.f32 %v2575, %v2673
      %v2690 = vmul.f32 %v2576, %v2673
      %v2691 = vmul.f32 %v2577, %v2673
      %v2692 = vmul.f32 %v2578, %v2673
      %v2693 = vmul.f32 %v2579, %v2673
      %v2694 = vmul.f32 %v2580, %v2673
      %v2695 = vmul.f32 %v2581, %v2673
      %v2696 = vmul.f32 %v2582, %v2673
      %v2697 = vmul.f32 %v2583, %v2673
      %v2698 = vmul.f32 %v2584, %v2673
      %v2699 = vmul.f32 %v2585, %v2673
      %v2700 = vmul.f32 %v2586, %v2673
      %v2701 = vmul.f32 %v2587, %v2673
      %v2702 = vmul.f32 %v2588, %v2673
      %v2703 = vmul.f32 %v2589, %v2673
      %v2704 = vmul.f32 %v2590, %v2673
      %v2705 = vmul.f32 %v2591, %v2673
      %v2706 = vadd.f32 %v2638, %v2674
      %v2707 = vadd.f32 %v2639, %v2675
      %v2708 = vadd.f32 %v2640, %v2676
      %v2709 = vadd.f32 %v2641, %v2677
      %v2710 = vadd.f32 %v2642, %v2678
      %v2711 = vadd.f32 %v2643, %v2679
      %v2712 = vadd.f32 %v2644, %v2680
      %v2713 = vadd.f32 %v2645, %v2681
      %v2714 = vadd.f32 %v2646, %v2682
      %v2715 = vadd.f32 %v2647, %v2683
      %v2716 = vadd.f32 %v2648, %v2684
      %v2717 = vadd.f32 %v2649, %v2685
      %v2718 = vadd.f32 %v2650, %v2686
      %v2719 = vadd.f32 %v2651, %v2687
      %v2720 = vadd.f32 %v2652, %v2688
      %v2721 = vadd.f32 %v2653, %v2689
      %v2722 = vadd.f32 %v2654, %v2690
      %v2723 = vadd.f32 %v2655, %v2691
      %v2724 = vadd.f32 %v2656, %v2692
      %v2725 = vadd.f32 %v2657, %v2693
      %v2726 = vadd.f32 %v2658, %v2694
      %v2727 = vadd.f32 %v2659, %v2695
      %v2728 = vadd.f32 %v2660, %v2696
      %v2729 = vadd.f32 %v2661, %v2697
      %v2730 = vadd.f32 %v2662, %v2698
      %v2731 = vadd.f32 %v2663, %v2699
      %v2732 = vadd.f32 %v2664, %v2700
      %v2733 = vadd.f32 %v2665, %v2701
      %v2734 = vadd.f32 %v2666, %v2702
      %v2735 = vadd.f32 %v2667, %v2703
      %v2736 = vadd.f32 %v2668, %v2704
      %v2737 = vadd.f32 %v2669, %v2705
      %v2738 = vlaneseq
      %v2739 = vshrl.u32 %v2738, 7
      %v2740 = vsub.s32 4, %v2739
      %v2741 = vrot.slane %v466, %v2740
      %v2742 = vmul.f32 %v2562, %v2741
      %v2743 = vmul.f32 %v2563, %v2741
      %v2744 = vmul.f32 %v2564, %v2741
      %v2745 = vmul.f32 %v2565, %v2741
      %v2746 = vmul.f32 %v2566, %v2741
      %v2747 = vmul.f32 %v2567, %v2741
      %v2748 = vmul.f32 %v2568, %v2741
      %v2749 = vmul.f32 %v2569, %v2741
      %v2750 = vmul.f32 %v2570, %v2741
      %v2751 = vmul.f32 %v2571, %v2741
      %v2752 = vmul.f32 %v2572, %v2741
      %v2753 = vmul.f32 %v2573, %v2741
      %v2754 = vmul.f32 %v2574, %v2741
      %v2755 = vmul.f32 %v2575, %v2741
      %v2756 = vmul.f32 %v2576, %v2741
      %v2757 = vmul.f32 %v2577, %v2741
      %v2758 = vmul.f32 %v2578, %v2741
      %v2759 = vmul.f32 %v2579, %v2741
      %v2760 = vmul.f32 %v2580, %v2741
      %v2761 = vmul.f32 %v2581, %v2741
      %v2762 = vmul.f32 %v2582, %v2741
      %v2763 = vmul.f32 %v2583, %v2741
      %v2764 = vmul.f32 %v2584, %v2741
      %v2765 = vmul.f32 %v2585, %v2741
      %v2766 = vmul.f32 %v2586, %v2741
      %v2767 = vmul.f32 %v2587, %v2741
      %v2768 = vmul.f32 %v2588, %v2741
      %v2769 = vmul.f32 %v2589, %v2741
      %v2770 = vmul.f32 %v2590, %v2741
      %v2771 = vmul.f32 %v2591, %v2741
      %v2772 = vmul.f32 %v2592, %v2741
      %v2773 = vmul.f32 %v2593, %v2741
      %v2774 = vadd.f32 %v2706, %v2742
      %v2775 = vadd.f32 %v2707, %v2743
      %v2776 = vadd.f32 %v2708, %v2744
      %v2777 = vadd.f32 %v2709, %v2745
      %v2778 = vadd.f32 %v2710, %v2746
      %v2779 = vadd.f32 %v2711, %v2747
      %v2780 = vadd.f32 %v2712, %v2748
      %v2781 = vadd.f32 %v2713, %v2749
      %v2782 = vadd.f32 %v2714, %v2750
      %v2783 = vadd.f32 %v2715, %v2751
      %v2784 = vadd.f32 %v2716, %v2752
      %v2785 = vadd.f32 %v2717, %v2753
      %v2786 = vadd.f32 %v2718, %v2754
      %v2787 = vadd.f32 %v2719, %v2755
      %v2788 = vadd.f32 %v2720, %v2756
      %v2789 = vadd.f32 %v2721, %v2757
      %v2790 = vadd.f32 %v2722, %v2758
      %v2791 = vadd.f32 %v2723, %v2759
      %v2792 = vadd.f32 %v2724, %v2760
      %v2793 = vadd.f32 %v2725, %v2761
      %v2794 = vadd.f32 %v2726, %v2762
      %v2795 = vadd.f32 %v2727, %v2763
      %v2796 = vadd.f32 %v2728, %v2764
      %v2797 = vadd.f32 %v2729, %v2765
      %v2798 = vadd.f32 %v2730, %v2766
      %v2799 = vadd.f32 %v2731, %v2767
      %v2800 = vadd.f32 %v2732, %v2768
      %v2801 = vadd.f32 %v2733, %v2769
      %v2802 = vadd.f32 %v2734, %v2770
      %v2803 = vadd.f32 %v2735, %v2771
      %v2804 = vadd.f32 %v2736, %v2772
      %v2805 = vadd.f32 %v2737, %v2773
      %v2806 = vlaneseq
      %v2807 = vshrl.u32 %v2806, 7
      %v2808 = vsub.s32 4, %v2807
      %v2809 = vrot.slane %v467, %v2808
      %v2810 = vmul.f32 %v2564, %v2809
      %v2811 = vmul.f32 %v2565, %v2809
      %v2812 = vmul.f32 %v2566, %v2809
      %v2813 = vmul.f32 %v2567, %v2809
      %v2814 = vmul.f32 %v2568, %v2809
      %v2815 = vmul.f32 %v2569, %v2809
      %v2816 = vmul.f32 %v2570, %v2809
      %v2817 = vmul.f32 %v2571, %v2809
      %v2818 = vmul.f32 %v2572, %v2809
      %v2819 = vmul.f32 %v2573, %v2809
      %v2820 = vmul.f32 %v2574, %v2809
      %v2821 = vmul.f32 %v2575, %v2809
      %v2822 = vmul.f32 %v2576, %v2809
      %v2823 = vmul.f32 %v2577, %v2809
      %v2824 = vmul.f32 %v2578, %v2809
      %v2825 = vmul.f32 %v2579, %v2809
      %v2826 = vmul.f32 %v2580, %v2809
      %v2827 = vmul.f32 %v2581, %v2809
      %v2828 = vmul.f32 %v2582, %v2809
      %v2829 = vmul.f32 %v2583, %v2809
      %v2830 = vmul.f32 %v2584, %v2809
      %v2831 = vmul.f32 %v2585, %v2809
      %v2832 = vmul.f32 %v2586, %v2809
      %v2833 = vmul.f32 %v2587, %v2809
      %v2834 = vmul.f32 %v2588, %v2809
      %v2835 = vmul.f32 %v2589, %v2809
      %v2836 = vmul.f32 %v2590, %v2809
      %v2837 = vmul.f32 %v2591, %v2809
      %v2838 = vmul.f32 %v2592, %v2809
      %v2839 = vmul.f32 %v2593, %v2809
      %v2840 = vmul.f32 %v2594, %v2809
      %v2841 = vmul.f32 %v2595, %v2809
      %v2842 = vadd.f32 %v2774, %v2810
      %v2843 = vadd.f32 %v2775, %v2811
      %v2844 = vadd.f32 %v2776, %v2812
      %v2845 = vadd.f32 %v2777, %v2813
      %v2846 = vadd.f32 %v2778, %v2814
      %v2847 = vadd.f32 %v2779, %v2815
      %v2848 = vadd.f32 %v2780, %v2816
      %v2849 = vadd.f32 %v2781, %v2817
      %v2850 = vadd.f32 %v2782, %v2818
      %v2851 = vadd.f32 %v2783, %v2819
      %v2852 = vadd.f32 %v2784, %v2820
      %v2853 = vadd.f32 %v2785, %v2821
      %v2854 = vadd.f32 %v2786, %v2822
      %v2855 = vadd.f32 %v2787, %v2823
      %v2856 = vadd.f32 %v2788, %v2824
      %v2857 = vadd.f32 %v2789, %v2825
      %v2858 = vadd.f32 %v2790, %v2826
      %v2859 = vadd.f32 %v2791, %v2827
      %v2860 = vadd.f32 %v2792, %v2828
      %v2861 = vadd.f32 %v2793, %v2829
      %v2862 = vadd.f32 %v2794, %v2830
      %v2863 = vadd.f32 %v2795, %v2831
      %v2864 = vadd.f32 %v2796, %v2832
      %v2865 = vadd.f32 %v2797, %v2833
      %v2866 = vadd.f32 %v2798, %v2834
      %v2867 = vadd.f32 %v2799, %v2835
      %v2868 = vadd.f32 %v2800, %v2836
      %v2869 = vadd.f32 %v2801, %v2837
      %v2870 = vadd.f32 %v2802, %v2838
      %v2871 = vadd.f32 %v2803, %v2839
      %v2872 = vadd.f32 %v2804, %v2840
      %v2873 = vadd.f32 %v2805, %v2841
      %v2874 = vlaneseq
      %v2875 = vshrl.u32 %v2874, 7
      %v2876 = vsub.s32 4, %v2875
      %v2877 = vrot.slane %v468, %v2876
      %v2878 = vmul.f32 %v2566, %v2877
      %v2879 = vmul.f32 %v2567, %v2877
      %v2880 = vmul.f32 %v2568, %v2877
      %v2881 = vmul.f32 %v2569, %v2877
      %v2882 = vmul.f32 %v2570, %v2877
      %v2883 = vmul.f32 %v2571, %v2877
      %v2884 = vmul.f32 %v2572, %v2877
      %v2885 = vmul.f32 %v2573, %v2877
      %v2886 = vmul.f32 %v2574, %v2877
      %v2887 = vmul.f32 %v2575, %v2877
      %v2888 = vmul.f32 %v2576, %v2877
      %v2889 = vmul.f32 %v2577, %v2877
      %v2890 = vmul.f32 %v2578, %v2877
      %v2891 = vmul.f32 %v2579, %v2877
      %v2892 = vmul.f32 %v2580, %v2877
      %v2893 = vmul.f32 %v2581, %v2877
      %v2894 = vmul.f32 %v2582, %v2877
      %v2895 = vmul.f32 %v2583, %v2877
      %v2896 = vmul.f32 %v2584, %v2877
      %v2897 = vmul.f32 %v2585, %v2877
      %v2898 = vmul.f32 %v2586, %v2877
      %v2899 = vmul.f32 %v2587, %v2877
      %v2900 = vmul.f32 %v2588, %v2877
      %v2901 = vmul.f32 %v2589, %v2877
      %v2902 = vmul.f32 %v2590, %v2877
      %v2903 = vmul.f32 %v2591, %v2877
      %v2904 = vmul.f32 %v2592, %v2877
      %v2905 = vmul.f32 %v2593, %v2877
      %v2906 = vmul.f32 %v2594, %v2877
      %v2907 = vmul.f32 %v2595, %v2877
      %v2908 = vmul.f32 %v2596, %v2877
      %v2909 = vmul.f32 %v2597, %v2877
      %v2910 = vadd.f32 %v2842, %v2878
      %v2911 = vadd.f32 %v2843, %v2879
      %v2912 = vadd.f32 %v2844, %v2880
      %v2913 = vadd.f32 %v2845, %v2881
      %v2914 = vadd.f32 %v2846, %v2882
      %v2915 = vadd.f32 %v2847, %v2883
      %v2916 = vadd.f32 %v2848, %v2884
      %v2917 = vadd.f32 %v2849, %v2885
      %v2918 = vadd.f32 %v2850, %v2886
      %v2919 = vadd.f32 %v2851, %v2887
      %v2920 = vadd.f32 %v2852, %v2888
      %v2921 = vadd.f32 %v2853, %v2889
      %v2922 = vadd.f32 %v2854, %v2890
      %v2923 = vadd.f32 %v2855, %v2891
      %v2924 = vadd.f32 %v2856, %v2892
      %v2925 = vadd.f32 %v2857, %v2893
      %v2926 = vadd.f32 %v2858, %v2894
      %v2927 = vadd.f32 %v2859, %v2895
      %v2928 = vadd.f32 %v2860, %v2896
      %v2929 = vadd.f32 %v2861, %v2897
      %v2930 = vadd.f32 %v2862, %v2898
      %v2931 = vadd.f32 %v2863, %v2899
      %v2932 = vadd.f32 %v2864, %v2900
      %v2933 = vadd.f32 %v2865, %v2901
      %v2934 = vadd.f32 %v2866, %v2902
      %v2935 = vadd.f32 %v2867, %v2903
      %v2936 = vadd.f32 %v2868, %v2904
      %v2937 = vadd.f32 %v2869, %v2905
      %v2938 = vadd.f32 %v2870, %v2906
      %v2939 = vadd.f32 %v2871, %v2907
      %v2940 = vadd.f32 %v2872, %v2908
      %v2941 = vadd.f32 %v2873, %v2909
      %v2942 = vlaneseq
      %v2943 = vshrl.u32 %v2942, 7
      %v2944 = vsub.s32 4, %v2943
      %v2945 = vrot.slane %v469, %v2944
      %v2946 = vmul.f32 %v2568, %v2945
      %v2947 = vmul.f32 %v2569, %v2945
      %v2948 = vmul.f32 %v2570, %v2945
      %v2949 = vmul.f32 %v2571, %v2945
      %v2950 = vmul.f32 %v2572, %v2945
      %v2951 = vmul.f32 %v2573, %v2945
      %v2952 = vmul.f32 %v2574, %v2945
      %v2953 = vmul.f32 %v2575, %v2945
      %v2954 = vmul.f32 %v2576, %v2945
      %v2955 = vmul.f32 %v2577, %v2945
      %v2956 = vmul.f32 %v2578, %v2945
      %v2957 = vmul.f32 %v2579, %v2945
      %v2958 = vmul.f32 %v2580, %v2945
      %v2959 = vmul.f32 %v2581, %v2945
      %v2960 = vmul.f32 %v2582, %v2945
      %v2961 = vmul.f32 %v2583, %v2945
      %v2962 = vmul.f32 %v2584, %v2945
      %v2963 = vmul.f32 %v2585, %v2945
      %v2964 = vmul.f32 %v2586, %v2945
      %v2965 = vmul.f32 %v2587, %v2945
      %v2966 = vmul.f32 %v2588, %v2945
      %v2967 = vmul.f32 %v2589, %v2945
      %v2968 = vmul.f32 %v2590, %v2945
      %v2969 = vmul.f32 %v2591, %v2945
      %v2970 = vmul.f32 %v2592, %v2945
      %v2971 = vmul.f32 %v2593, %v2945
      %v2972 = vmul.f32 %v2594, %v2945
      %v2973 = vmul.f32 %v2595, %v2945
      %v2974 = vmul.f32 %v2596, %v2945
      %v2975 = vmul.f32 %v2597, %v2945
      %v2976 = vmul.f32 %v2598, %v2945
      %v2977 = vmul.f32 %v2599, %v2945
      %v2978 = vadd.f32 %v2910, %v2946
      %v2979 = vadd.f32 %v2911, %v2947
      %v2980 = vadd.f32 %v2912, %v2948
      %v2981 = vadd.f32 %v2913, %v2949
      %v2982 = vadd.f32 %v2914, %v2950
      %v2983 = vadd.f32 %v2915, %v2951
      %v2984 = vadd.f32 %v2916, %v2952
      %v2985 = vadd.f32 %v2917, %v2953
      %v2986 = vadd.f32 %v2918, %v2954
      %v2987 = vadd.f32 %v2919, %v2955
      %v2988 = vadd.f32 %v2920, %v2956
      %v2989 = vadd.f32 %v2921, %v2957
      %v2990 = vadd.f32 %v2922, %v2958
      %v2991 = vadd.f32 %v2923, %v2959
      %v2992 = vadd.f32 %v2924, %v2960
      %v2993 = vadd.f32 %v2925, %v2961
      %v2994 = vadd.f32 %v2926, %v2962
      %v2995 = vadd.f32 %v2927, %v2963
      %v2996 = vadd.f32 %v2928, %v2964
      %v2997 = vadd.f32 %v2929, %v2965
      %v2998 = vadd.f32 %v2930, %v2966
      %v2999 = vadd.f32 %v2931, %v2967
      %v3000 = vadd.f32 %v2932, %v2968
      %v3001 = vadd.f32 %v2933, %v2969
      %v3002 = vadd.f32 %v2934, %v2970
      %v3003 = vadd.f32 %v2935, %v2971
      %v3004 = vadd.f32 %v2936, %v2972
      %v3005 = vadd.f32 %v2937, %v2973
      %v3006 = vadd.f32 %v2938, %v2974
      %v3007 = vadd.f32 %v2939, %v2975
      %v3008 = vadd.f32 %v2940, %v2976
      %v3009 = vadd.f32 %v2941, %v2977
      %v3010 = vlaneseq
      %v3011 = vshrl.u32 %v3010, 7
      %v3012 = vsub.s32 4, %v3011
      %v3013 = vrot.slane %v470, %v3012
      %v3014 = vmul.f32 %v2570, %v3013
      %v3015 = vmul.f32 %v2571, %v3013
      %v3016 = vmul.f32 %v2572, %v3013
      %v3017 = vmul.f32 %v2573, %v3013
      %v3018 = vmul.f32 %v2574, %v3013
      %v3019 = vmul.f32 %v2575, %v3013
      %v3020 = vmul.f32 %v2576, %v3013
      %v3021 = vmul.f32 %v2577, %v3013
      %v3022 = vmul.f32 %v2578, %v3013
      %v3023 = vmul.f32 %v2579, %v3013
      %v3024 = vmul.f32 %v2580, %v3013
      %v3025 = vmul.f32 %v2581, %v3013
      %v3026 = vmul.f32 %v2582, %v3013
      %v3027 = vmul.f32 %v2583, %v3013
      %v3028 = vmul.f32 %v2584, %v3013
      %v3029 = vmul.f32 %v2585, %v3013
      %v3030 = vmul.f32 %v2586, %v3013
      %v3031 = vmul.f32 %v2587, %v3013
      %v3032 = vmul.f32 %v2588, %v3013
      %v3033 = vmul.f32 %v2589, %v3013
      %v3034 = vmul.f32 %v2590, %v3013
      %v3035 = vmul.f32 %v2591, %v3013
      %v3036 = vmul.f32 %v2592, %v3013
      %v3037 = vmul.f32 %v2593, %v3013
      %v3038 = vmul.f32 %v2594, %v3013
      %v3039 = vmul.f32 %v2595, %v3013
      %v3040 = vmul.f32 %v2596, %v3013
      %v3041 = vmul.f32 %v2597, %v3013
      %v3042 = vmul.f32 %v2598, %v3013
      %v3043 = vmul.f32 %v2599, %v3013
      %v3044 = vmul.f32 %v2600, %v3013
      %v3045 = vmul.f32 %v2601, %v3013
      %v3046 = vadd.f32 %v2978, %v3014
      %v3047 = vadd.f32 %v2979, %v3015
      %v3048 = vadd.f32 %v2980, %v3016
      %v3049 = vadd.f32 %v2981, %v3017
      %v3050 = vadd.f32 %v2982, %v3018
      %v3051 = vadd.f32 %v2983, %v3019
      %v3052 = vadd.f32 %v2984, %v3020
      %v3053 = vadd.f32 %v2985, %v3021
      %v3054 = vadd.f32 %v2986, %v3022
      %v3055 = vadd.f32 %v2987, %v3023
      %v3056 = vadd.f32 %v2988, %v3024
      %v3057 = vadd.f32 %v2989, %v3025
      %v3058 = vadd.f32 %v2990, %v3026
      %v3059 = vadd.f32 %v2991, %v3027
      %v3060 = vadd.f32 %v2992, %v3028
      %v3061 = vadd.f32 %v2993, %v3029
      %v3062 = vadd.f32 %v2994, %v3030
      %v3063 = vadd.f32 %v2995, %v3031
      %v3064 = vadd.f32 %v2996, %v3032
      %v3065 = vadd.f32 %v2997, %v3033
      %v3066 = vadd.f32 %v2998, %v3034
      %v3067 = vadd.f32 %v2999, %v3035
      %v3068 = vadd.f32 %v3000, %v3036
      %v3069 = vadd.f32 %v3001, %v3037
      %v3070 = vadd.f32 %v3002, %v3038
      %v3071 = vadd.f32 %v3003, %v3039
      %v3072 = vadd.f32 %v3004, %v3040
      %v3073 = vadd.f32 %v3005, %v3041
      %v3074 = vadd.f32 %v3006, %v3042
      %v3075 = vadd.f32 %v3007, %v3043
      %v3076 = vadd.f32 %v3008, %v3044
      %v3077 = vadd.f32 %v3009, %v3045
      %v3078 = vld [vmem:[#allocation2 + $0x5] sm:$0xff]
      %v3079 = vld [vmem:[#allocation2 + $0xd] sm:$0xff]
      %v3080 = vld [vmem:[#allocation2 + $0x1d] sm:$0xff]
      %v3081 = vld [vmem:[#allocation2 + $0x25] sm:$0xff]
      %v3082 = vld [vmem:[#allocation2 + $0x35] sm:$0xff]
      %v3083 = vld [vmem:[#allocation2 + $0x3d] sm:$0xff]
      %v3084 = vld [vmem:[#allocation2 + $0x4d] sm:$0xff]
      %v3085 = vld [vmem:[#allocation2 + $0x55] sm:$0xff]
      %v3086 = vld [vmem:[#allocation2 + $0x65] sm:$0xff]
      %v3087 = vld [vmem:[#allocation2 + $0x6d] sm:$0xff]
      %v3088 = vld [vmem:[#allocation2 + $0x7d] sm:$0xff]
      %v3089 = vld [vmem:[#allocation2 + $0x85] sm:$0xff]
      %v3090 = vld [vmem:[#allocation2 + $0x95] sm:$0xff]
      %v3091 = vld [vmem:[#allocation2 + $0x9d] sm:$0xff]
      %v3092 = vld [vmem:[#allocation2 + $0xad] sm:$0xff]
      %v3093 = vld [vmem:[#allocation2 + $0xb5] sm:$0xff]
      %v3094 = vld [vmem:[#allocation2 + $0xc5] sm:$0xff]
      %v3095 = vld [vmem:[#allocation2 + $0xcd] sm:$0xff]
      %v3096 = vld [vmem:[#allocation2 + $0xdd] sm:$0xff]
      %v3097 = vld [vmem:[#allocation2 + $0xe5] sm:$0xff]
      %v3098 = vld [vmem:[#allocation2 + $0xf5] sm:$0xff]
      %v3099 = vld [vmem:[#allocation2 + $0xfd] sm:$0xff]
      %v3100 = vld [vmem:[#allocation2 + $0x10d] sm:$0xff]
      %v3101 = vld [vmem:[#allocation2 + $0x115] sm:$0xff]
      %v3102 = vld [vmem:[#allocation2 + $0x125] sm:$0xff]
      %v3103 = vld [vmem:[#allocation2 + $0x12d] sm:$0xff]
      %v3104 = vld [vmem:[#allocation2 + $0x13d] sm:$0xff]
      %v3105 = vld [vmem:[#allocation2 + $0x145] sm:$0xff]
      %v3106 = vld [vmem:[#allocation2 + $0x155] sm:$0xff]
      %v3107 = vld [vmem:[#allocation2 + $0x15d] sm:$0xff]
      %v3108 = vld [vmem:[#allocation2 + $0x16d] sm:$0xff]
      %v3109 = vld [vmem:[#allocation2 + $0x175] sm:$0xff]
      %v3110 = vld [vmem:[#allocation2 + $0x185] sm:$0xff]
      %v3111 = vld [vmem:[#allocation2 + $0x18d] sm:$0xff]
      %v3112 = vld [vmem:[#allocation2 + $0x19d] sm:$0xff]
      %v3113 = vld [vmem:[#allocation2 + $0x1a5] sm:$0xff]
      %v3114 = vld [vmem:[#allocation2 + $0x1b5] sm:$0xff]
      %v3115 = vld [vmem:[#allocation2 + $0x1bd] sm:$0xff]
      %v3116 = vld [vmem:[#allocation2 + $0x1cd] sm:$0xff]
      %v3117 = vld [vmem:[#allocation2 + $0x1d5] sm:$0xff]
      %v3118 = vld [vmem:[#allocation2 + $0x1e5] sm:$0xff]
      %v3119 = vld [vmem:[#allocation2 + $0x1ed] sm:$0xff]
      %v3120 = vld [vmem:[#allocation2 + $0x1fd] sm:$0xff]
      %v3121 = vld [vmem:[#allocation2 + $0x205] sm:$0xff]
      %v3122 = vlaneseq
      %v3123 = vshrl.u32 %v3122, 7
      %v3124 = vsub.s32 5, %v3123
      %v3125 = vrot.slane %v464, %v3124
      %v3126 = vmul.f32 %v3078, %v3125
      %v3127 = vmul.f32 %v3079, %v3125
      %v3128 = vmul.f32 %v3080, %v3125
      %v3129 = vmul.f32 %v3081, %v3125
      %v3130 = vmul.f32 %v3082, %v3125
      %v3131 = vmul.f32 %v3083, %v3125
      %v3132 = vmul.f32 %v3084, %v3125
      %v3133 = vmul.f32 %v3085, %v3125
      %v3134 = vmul.f32 %v3086, %v3125
      %v3135 = vmul.f32 %v3087, %v3125
      %v3136 = vmul.f32 %v3088, %v3125
      %v3137 = vmul.f32 %v3089, %v3125
      %v3138 = vmul.f32 %v3090, %v3125
      %v3139 = vmul.f32 %v3091, %v3125
      %v3140 = vmul.f32 %v3092, %v3125
      %v3141 = vmul.f32 %v3093, %v3125
      %v3142 = vmul.f32 %v3094, %v3125
      %v3143 = vmul.f32 %v3095, %v3125
      %v3144 = vmul.f32 %v3096, %v3125
      %v3145 = vmul.f32 %v3097, %v3125
      %v3146 = vmul.f32 %v3098, %v3125
      %v3147 = vmul.f32 %v3099, %v3125
      %v3148 = vmul.f32 %v3100, %v3125
      %v3149 = vmul.f32 %v3101, %v3125
      %v3150 = vmul.f32 %v3102, %v3125
      %v3151 = vmul.f32 %v3103, %v3125
      %v3152 = vmul.f32 %v3104, %v3125
      %v3153 = vmul.f32 %v3105, %v3125
      %v3154 = vmul.f32 %v3106, %v3125
      %v3155 = vmul.f32 %v3107, %v3125
      %v3156 = vmul.f32 %v3108, %v3125
      %v3157 = vmul.f32 %v3109, %v3125
      %v3158 = vadd.f32 %v3046, %v3126
      %v3159 = vadd.f32 %v3047, %v3127
      %v3160 = vadd.f32 %v3048, %v3128
      %v3161 = vadd.f32 %v3049, %v3129
      %v3162 = vadd.f32 %v3050, %v3130
      %v3163 = vadd.f32 %v3051, %v3131
      %v3164 = vadd.f32 %v3052, %v3132
      %v3165 = vadd.f32 %v3053, %v3133
      %v3166 = vadd.f32 %v3054, %v3134
      %v3167 = vadd.f32 %v3055, %v3135
      %v3168 = vadd.f32 %v3056, %v3136
      %v3169 = vadd.f32 %v3057, %v3137
      %v3170 = vadd.f32 %v3058, %v3138
      %v3171 = vadd.f32 %v3059, %v3139
      %v3172 = vadd.f32 %v3060, %v3140
      %v3173 = vadd.f32 %v3061, %v3141
      %v3174 = vadd.f32 %v3062, %v3142
      %v3175 = vadd.f32 %v3063, %v3143
      %v3176 = vadd.f32 %v3064, %v3144
      %v3177 = vadd.f32 %v3065, %v3145
      %v3178 = vadd.f32 %v3066, %v3146
      %v3179 = vadd.f32 %v3067, %v3147
      %v3180 = vadd.f32 %v3068, %v3148
      %v3181 = vadd.f32 %v3069, %v3149
      %v3182 = vadd.f32 %v3070, %v3150
      %v3183 = vadd.f32 %v3071, %v3151
      %v3184 = vadd.f32 %v3072, %v3152
      %v3185 = vadd.f32 %v3073, %v3153
      %v3186 = vadd.f32 %v3074, %v3154
      %v3187 = vadd.f32 %v3075, %v3155
      %v3188 = vadd.f32 %v3076, %v3156
      %v3189 = vadd.f32 %v3077, %v3157
      %v3190 = vlaneseq
      %v3191 = vshrl.u32 %v3190, 7
      %v3192 = vsub.s32 5, %v3191
      %v3193 = vrot.slane %v465, %v3192
      %v3194 = vmul.f32 %v3080, %v3193
      %v3195 = vmul.f32 %v3081, %v3193
      %v3196 = vmul.f32 %v3082, %v3193
      %v3197 = vmul.f32 %v3083, %v3193
      %v3198 = vmul.f32 %v3084, %v3193
      %v3199 = vmul.f32 %v3085, %v3193
      %v3200 = vmul.f32 %v3086, %v3193
      %v3201 = vmul.f32 %v3087, %v3193
      %v3202 = vmul.f32 %v3088, %v3193
      %v3203 = vmul.f32 %v3089, %v3193
      %v3204 = vmul.f32 %v3090, %v3193
      %v3205 = vmul.f32 %v3091, %v3193
      %v3206 = vmul.f32 %v3092, %v3193
      %v3207 = vmul.f32 %v3093, %v3193
      %v3208 = vmul.f32 %v3094, %v3193
      %v3209 = vmul.f32 %v3095, %v3193
      %v3210 = vmul.f32 %v3096, %v3193
      %v3211 = vmul.f32 %v3097, %v3193
      %v3212 = vmul.f32 %v3098, %v3193
      %v3213 = vmul.f32 %v3099, %v3193
      %v3214 = vmul.f32 %v3100, %v3193
      %v3215 = vmul.f32 %v3101, %v3193
      %v3216 = vmul.f32 %v3102, %v3193
      %v3217 = vmul.f32 %v3103, %v3193
      %v3218 = vmul.f32 %v3104, %v3193
      %v3219 = vmul.f32 %v3105, %v3193
      %v3220 = vmul.f32 %v3106, %v3193
      %v3221 = vmul.f32 %v3107, %v3193
      %v3222 = vmul.f32 %v3108, %v3193
      %v3223 = vmul.f32 %v3109, %v3193
      %v3224 = vmul.f32 %v3110, %v3193
      %v3225 = vmul.f32 %v3111, %v3193
      %v3226 = vadd.f32 %v3158, %v3194
      %v3227 = vadd.f32 %v3159, %v3195
      %v3228 = vadd.f32 %v3160, %v3196
      %v3229 = vadd.f32 %v3161, %v3197
      %v3230 = vadd.f32 %v3162, %v3198
      %v3231 = vadd.f32 %v3163, %v3199
      %v3232 = vadd.f32 %v3164, %v3200
      %v3233 = vadd.f32 %v3165, %v3201
      %v3234 = vadd.f32 %v3166, %v3202
      %v3235 = vadd.f32 %v3167, %v3203
      %v3236 = vadd.f32 %v3168, %v3204
      %v3237 = vadd.f32 %v3169, %v3205
      %v3238 = vadd.f32 %v3170, %v3206
      %v3239 = vadd.f32 %v3171, %v3207
      %v3240 = vadd.f32 %v3172, %v3208
      %v3241 = vadd.f32 %v3173, %v3209
      %v3242 = vadd.f32 %v3174, %v3210
      %v3243 = vadd.f32 %v3175, %v3211
      %v3244 = vadd.f32 %v3176, %v3212
      %v3245 = vadd.f32 %v3177, %v3213
      %v3246 = vadd.f32 %v3178, %v3214
      %v3247 = vadd.f32 %v3179, %v3215
      %v3248 = vadd.f32 %v3180, %v3216
      %v3249 = vadd.f32 %v3181, %v3217
      %v3250 = vadd.f32 %v3182, %v3218
      %v3251 = vadd.f32 %v3183, %v3219
      %v3252 = vadd.f32 %v3184, %v3220
      %v3253 = vadd.f32 %v3185, %v3221
      %v3254 = vadd.f32 %v3186, %v3222
      %v3255 = vadd.f32 %v3187, %v3223
      %v3256 = vadd.f32 %v3188, %v3224
      %v3257 = vadd.f32 %v3189, %v3225
      %v3258 = vlaneseq
      %v3259 = vshrl.u32 %v3258, 7
      %v3260 = vsub.s32 5, %v3259
      %v3261 = vrot.slane %v466, %v3260
      %v3262 = vmul.f32 %v3082, %v3261
      %v3263 = vmul.f32 %v3083, %v3261
      %v3264 = vmul.f32 %v3084, %v3261
      %v3265 = vmul.f32 %v3085, %v3261
      %v3266 = vmul.f32 %v3086, %v3261
      %v3267 = vmul.f32 %v3087, %v3261
      %v3268 = vmul.f32 %v3088, %v3261
      %v3269 = vmul.f32 %v3089, %v3261
      %v3270 = vmul.f32 %v3090, %v3261
      %v3271 = vmul.f32 %v3091, %v3261
      %v3272 = vmul.f32 %v3092, %v3261
      %v3273 = vmul.f32 %v3093, %v3261
      %v3274 = vmul.f32 %v3094, %v3261
      %v3275 = vmul.f32 %v3095, %v3261
      %v3276 = vmul.f32 %v3096, %v3261
      %v3277 = vmul.f32 %v3097, %v3261
      %v3278 = vmul.f32 %v3098, %v3261
      %v3279 = vmul.f32 %v3099, %v3261
      %v3280 = vmul.f32 %v3100, %v3261
      %v3281 = vmul.f32 %v3101, %v3261
      %v3282 = vmul.f32 %v3102, %v3261
      %v3283 = vmul.f32 %v3103, %v3261
      %v3284 = vmul.f32 %v3104, %v3261
      %v3285 = vmul.f32 %v3105, %v3261
      %v3286 = vmul.f32 %v3106, %v3261
      %v3287 = vmul.f32 %v3107, %v3261
      %v3288 = vmul.f32 %v3108, %v3261
      %v3289 = vmul.f32 %v3109, %v3261
      %v3290 = vmul.f32 %v3110, %v3261
      %v3291 = vmul.f32 %v3111, %v3261
      %v3292 = vmul.f32 %v3112, %v3261
      %v3293 = vmul.f32 %v3113, %v3261
      %v3294 = vadd.f32 %v3226, %v3262
      %v3295 = vadd.f32 %v3227, %v3263
      %v3296 = vadd.f32 %v3228, %v3264
      %v3297 = vadd.f32 %v3229, %v3265
      %v3298 = vadd.f32 %v3230, %v3266
      %v3299 = vadd.f32 %v3231, %v3267
      %v3300 = vadd.f32 %v3232, %v3268
      %v3301 = vadd.f32 %v3233, %v3269
      %v3302 = vadd.f32 %v3234, %v3270
      %v3303 = vadd.f32 %v3235, %v3271
      %v3304 = vadd.f32 %v3236, %v3272
      %v3305 = vadd.f32 %v3237, %v3273
      %v3306 = vadd.f32 %v3238, %v3274
      %v3307 = vadd.f32 %v3239, %v3275
      %v3308 = vadd.f32 %v3240, %v3276
      %v3309 = vadd.f32 %v3241, %v3277
      %v3310 = vadd.f32 %v3242, %v3278
      %v3311 = vadd.f32 %v3243, %v3279
      %v3312 = vadd.f32 %v3244, %v3280
      %v3313 = vadd.f32 %v3245, %v3281
      %v3314 = vadd.f32 %v3246, %v3282
      %v3315 = vadd.f32 %v3247, %v3283
      %v3316 = vadd.f32 %v3248, %v3284
      %v3317 = vadd.f32 %v3249, %v3285
      %v3318 = vadd.f32 %v3250, %v3286
      %v3319 = vadd.f32 %v3251, %v3287
      %v3320 = vadd.f32 %v3252, %v3288
      %v3321 = vadd.f32 %v3253, %v3289
      %v3322 = vadd.f32 %v3254, %v3290
      %v3323 = vadd.f32 %v3255, %v3291
      %v3324 = vadd.f32 %v3256, %v3292
      %v3325 = vadd.f32 %v3257, %v3293
      %v3326 = vlaneseq
      %v3327 = vshrl.u32 %v3326, 7
      %v3328 = vsub.s32 5, %v3327
      %v3329 = vrot.slane %v467, %v3328
      %v3330 = vmul.f32 %v3084, %v3329
      %v3331 = vmul.f32 %v3085, %v3329
      %v3332 = vmul.f32 %v3086, %v3329
      %v3333 = vmul.f32 %v3087, %v3329
      %v3334 = vmul.f32 %v3088, %v3329
      %v3335 = vmul.f32 %v3089, %v3329
      %v3336 = vmul.f32 %v3090, %v3329
      %v3337 = vmul.f32 %v3091, %v3329
      %v3338 = vmul.f32 %v3092, %v3329
      %v3339 = vmul.f32 %v3093, %v3329
      %v3340 = vmul.f32 %v3094, %v3329
      %v3341 = vmul.f32 %v3095, %v3329
      %v3342 = vmul.f32 %v3096, %v3329
      %v3343 = vmul.f32 %v3097, %v3329
      %v3344 = vmul.f32 %v3098, %v3329
      %v3345 = vmul.f32 %v3099, %v3329
      %v3346 = vmul.f32 %v3100, %v3329
      %v3347 = vmul.f32 %v3101, %v3329
      %v3348 = vmul.f32 %v3102, %v3329
      %v3349 = vmul.f32 %v3103, %v3329
      %v3350 = vmul.f32 %v3104, %v3329
      %v3351 = vmul.f32 %v3105, %v3329
      %v3352 = vmul.f32 %v3106, %v3329
      %v3353 = vmul.f32 %v3107, %v3329
      %v3354 = vmul.f32 %v3108, %v3329
      %v3355 = vmul.f32 %v3109, %v3329
      %v3356 = vmul.f32 %v3110, %v3329
      %v3357 = vmul.f32 %v3111, %v3329
      %v3358 = vmul.f32 %v3112, %v3329
      %v3359 = vmul.f32 %v3113, %v3329
      %v3360 = vmul.f32 %v3114, %v3329
      %v3361 = vmul.f32 %v3115, %v3329
      %v3362 = vadd.f32 %v3294, %v3330
      %v3363 = vadd.f32 %v3295, %v3331
      %v3364 = vadd.f32 %v3296, %v3332
      %v3365 = vadd.f32 %v3297, %v3333
      %v3366 = vadd.f32 %v3298, %v3334
      %v3367 = vadd.f32 %v3299, %v3335
      %v3368 = vadd.f32 %v3300, %v3336
      %v3369 = vadd.f32 %v3301, %v3337
      %v3370 = vadd.f32 %v3302, %v3338
      %v3371 = vadd.f32 %v3303, %v3339
      %v3372 = vadd.f32 %v3304, %v3340
      %v3373 = vadd.f32 %v3305, %v3341
      %v3374 = vadd.f32 %v3306, %v3342
      %v3375 = vadd.f32 %v3307, %v3343
      %v3376 = vadd.f32 %v3308, %v3344
      %v3377 = vadd.f32 %v3309, %v3345
      %v3378 = vadd.f32 %v3310, %v3346
      %v3379 = vadd.f32 %v3311, %v3347
      %v3380 = vadd.f32 %v3312, %v3348
      %v3381 = vadd.f32 %v3313, %v3349
      %v3382 = vadd.f32 %v3314, %v3350
      %v3383 = vadd.f32 %v3315, %v3351
      %v3384 = vadd.f32 %v3316, %v3352
      %v3385 = vadd.f32 %v3317, %v3353
      %v3386 = vadd.f32 %v3318, %v3354
      %v3387 = vadd.f32 %v3319, %v3355
      %v3388 = vadd.f32 %v3320, %v3356
      %v3389 = vadd.f32 %v3321, %v3357
      %v3390 = vadd.f32 %v3322, %v3358
      %v3391 = vadd.f32 %v3323, %v3359
      %v3392 = vadd.f32 %v3324, %v3360
      %v3393 = vadd.f32 %v3325, %v3361
      %v3394 = vlaneseq
      %v3395 = vshrl.u32 %v3394, 7
      %v3396 = vsub.s32 5, %v3395
      %v3397 = vrot.slane %v468, %v3396
      %v3398 = vmul.f32 %v3086, %v3397
      %v3399 = vmul.f32 %v3087, %v3397
      %v3400 = vmul.f32 %v3088, %v3397
      %v3401 = vmul.f32 %v3089, %v3397
      %v3402 = vmul.f32 %v3090, %v3397
      %v3403 = vmul.f32 %v3091, %v3397
      %v3404 = vmul.f32 %v3092, %v3397
      %v3405 = vmul.f32 %v3093, %v3397
      %v3406 = vmul.f32 %v3094, %v3397
      %v3407 = vmul.f32 %v3095, %v3397
      %v3408 = vmul.f32 %v3096, %v3397
      %v3409 = vmul.f32 %v3097, %v3397
      %v3410 = vmul.f32 %v3098, %v3397
      %v3411 = vmul.f32 %v3099, %v3397
      %v3412 = vmul.f32 %v3100, %v3397
      %v3413 = vmul.f32 %v3101, %v3397
      %v3414 = vmul.f32 %v3102, %v3397
      %v3415 = vmul.f32 %v3103, %v3397
      %v3416 = vmul.f32 %v3104, %v3397
      %v3417 = vmul.f32 %v3105, %v3397
      %v3418 = vmul.f32 %v3106, %v3397
      %v3419 = vmul.f32 %v3107, %v3397
      %v3420 = vmul.f32 %v3108, %v3397
      %v3421 = vmul.f32 %v3109, %v3397
      %v3422 = vmul.f32 %v3110, %v3397
      %v3423 = vmul.f32 %v3111, %v3397
      %v3424 = vmul.f32 %v3112, %v3397
      %v3425 = vmul.f32 %v3113, %v3397
      %v3426 = vmul.f32 %v3114, %v3397
      %v3427 = vmul.f32 %v3115, %v3397
      %v3428 = vmul.f32 %v3116, %v3397
      %v3429 = vmul.f32 %v3117, %v3397
      %v3430 = vadd.f32 %v3362, %v3398
      %v3431 = vadd.f32 %v3363, %v3399
      %v3432 = vadd.f32 %v3364, %v3400
      %v3433 = vadd.f32 %v3365, %v3401
      %v3434 = vadd.f32 %v3366, %v3402
      %v3435 = vadd.f32 %v3367, %v3403
      %v3436 = vadd.f32 %v3368, %v3404
      %v3437 = vadd.f32 %v3369, %v3405
      %v3438 = vadd.f32 %v3370, %v3406
      %v3439 = vadd.f32 %v3371, %v3407
      %v3440 = vadd.f32 %v3372, %v3408
      %v3441 = vadd.f32 %v3373, %v3409
      %v3442 = vadd.f32 %v3374, %v3410
      %v3443 = vadd.f32 %v3375, %v3411
      %v3444 = vadd.f32 %v3376, %v3412
      %v3445 = vadd.f32 %v3377, %v3413
      %v3446 = vadd.f32 %v3378, %v3414
      %v3447 = vadd.f32 %v3379, %v3415
      %v3448 = vadd.f32 %v3380, %v3416
      %v3449 = vadd.f32 %v3381, %v3417
      %v3450 = vadd.f32 %v3382, %v3418
      %v3451 = vadd.f32 %v3383, %v3419
      %v3452 = vadd.f32 %v3384, %v3420
      %v3453 = vadd.f32 %v3385, %v3421
      %v3454 = vadd.f32 %v3386, %v3422
      %v3455 = vadd.f32 %v3387, %v3423
      %v3456 = vadd.f32 %v3388, %v3424
      %v3457 = vadd.f32 %v3389, %v3425
      %v3458 = vadd.f32 %v3390, %v3426
      %v3459 = vadd.f32 %v3391, %v3427
      %v3460 = vadd.f32 %v3392, %v3428
      %v3461 = vadd.f32 %v3393, %v3429
      %v3462 = vlaneseq
      %v3463 = vshrl.u32 %v3462, 7
      %v3464 = vsub.s32 5, %v3463
      %v3465 = vrot.slane %v469, %v3464
      %v3466 = vmul.f32 %v3088, %v3465
      %v3467 = vmul.f32 %v3089, %v3465
      %v3468 = vmul.f32 %v3090, %v3465
      %v3469 = vmul.f32 %v3091, %v3465
      %v3470 = vmul.f32 %v3092, %v3465
      %v3471 = vmul.f32 %v3093, %v3465
      %v3472 = vmul.f32 %v3094, %v3465
      %v3473 = vmul.f32 %v3095, %v3465
      %v3474 = vmul.f32 %v3096, %v3465
      %v3475 = vmul.f32 %v3097, %v3465
      %v3476 = vmul.f32 %v3098, %v3465
      %v3477 = vmul.f32 %v3099, %v3465
      %v3478 = vmul.f32 %v3100, %v3465
      %v3479 = vmul.f32 %v3101, %v3465
      %v3480 = vmul.f32 %v3102, %v3465
      %v3481 = vmul.f32 %v3103, %v3465
      %v3482 = vmul.f32 %v3104, %v3465
      %v3483 = vmul.f32 %v3105, %v3465
      %v3484 = vmul.f32 %v3106, %v3465
      %v3485 = vmul.f32 %v3107, %v3465
      %v3486 = vmul.f32 %v3108, %v3465
      %v3487 = vmul.f32 %v3109, %v3465
      %v3488 = vmul.f32 %v3110, %v3465
      %v3489 = vmul.f32 %v3111, %v3465
      %v3490 = vmul.f32 %v3112, %v3465
      %v3491 = vmul.f32 %v3113, %v3465
      %v3492 = vmul.f32 %v3114, %v3465
      %v3493 = vmul.f32 %v3115, %v3465
      %v3494 = vmul.f32 %v3116, %v3465
      %v3495 = vmul.f32 %v3117, %v3465
      %v3496 = vmul.f32 %v3118, %v3465
      %v3497 = vmul.f32 %v3119, %v3465
      %v3498 = vadd.f32 %v3430, %v3466
      %v3499 = vadd.f32 %v3431, %v3467
      %v3500 = vadd.f32 %v3432, %v3468
      %v3501 = vadd.f32 %v3433, %v3469
      %v3502 = vadd.f32 %v3434, %v3470
      %v3503 = vadd.f32 %v3435, %v3471
      %v3504 = vadd.f32 %v3436, %v3472
      %v3505 = vadd.f32 %v3437, %v3473
      %v3506 = vadd.f32 %v3438, %v3474
      %v3507 = vadd.f32 %v3439, %v3475
      %v3508 = vadd.f32 %v3440, %v3476
      %v3509 = vadd.f32 %v3441, %v3477
      %v3510 = vadd.f32 %v3442, %v3478
      %v3511 = vadd.f32 %v3443, %v3479
      %v3512 = vadd.f32 %v3444, %v3480
      %v3513 = vadd.f32 %v3445, %v3481
      %v3514 = vadd.f32 %v3446, %v3482
      %v3515 = vadd.f32 %v3447, %v3483
      %v3516 = vadd.f32 %v3448, %v3484
      %v3517 = vadd.f32 %v3449, %v3485
      %v3518 = vadd.f32 %v3450, %v3486
      %v3519 = vadd.f32 %v3451, %v3487
      %v3520 = vadd.f32 %v3452, %v3488
      %v3521 = vadd.f32 %v3453, %v3489
      %v3522 = vadd.f32 %v3454, %v3490
      %v3523 = vadd.f32 %v3455, %v3491
      %v3524 = vadd.f32 %v3456, %v3492
      %v3525 = vadd.f32 %v3457, %v3493
      %v3526 = vadd.f32 %v3458, %v3494
      %v3527 = vadd.f32 %v3459, %v3495
      %v3528 = vadd.f32 %v3460, %v3496
      %v3529 = vadd.f32 %v3461, %v3497
      %v3530 = vlaneseq
      %v3531 = vshrl.u32 %v3530, 7
      %v3532 = vsub.s32 5, %v3531
      %v3533 = vrot.slane %v470, %v3532
      %v3534 = vmul.f32 %v3090, %v3533
      %v3535 = vmul.f32 %v3091, %v3533
      %v3536 = vmul.f32 %v3092, %v3533
      %v3537 = vmul.f32 %v3093, %v3533
      %v3538 = vmul.f32 %v3094, %v3533
      %v3539 = vmul.f32 %v3095, %v3533
      %v3540 = vmul.f32 %v3096, %v3533
      %v3541 = vmul.f32 %v3097, %v3533
      %v3542 = vmul.f32 %v3098, %v3533
      %v3543 = vmul.f32 %v3099, %v3533
      %v3544 = vmul.f32 %v3100, %v3533
      %v3545 = vmul.f32 %v3101, %v3533
      %v3546 = vmul.f32 %v3102, %v3533
      %v3547 = vmul.f32 %v3103, %v3533
      %v3548 = vmul.f32 %v3104, %v3533
      %v3549 = vmul.f32 %v3105, %v3533
      %v3550 = vmul.f32 %v3106, %v3533
      %v3551 = vmul.f32 %v3107, %v3533
      %v3552 = vmul.f32 %v3108, %v3533
      %v3553 = vmul.f32 %v3109, %v3533
      %v3554 = vmul.f32 %v3110, %v3533
      %v3555 = vmul.f32 %v3111, %v3533
      %v3556 = vmul.f32 %v3112, %v3533
      %v3557 = vmul.f32 %v3113, %v3533
      %v3558 = vmul.f32 %v3114, %v3533
      %v3559 = vmul.f32 %v3115, %v3533
      %v3560 = vmul.f32 %v3116, %v3533
      %v3561 = vmul.f32 %v3117, %v3533
      %v3562 = vmul.f32 %v3118, %v3533
      %v3563 = vmul.f32 %v3119, %v3533
      %v3564 = vmul.f32 %v3120, %v3533
      %v3565 = vmul.f32 %v3121, %v3533
      %v3566 = vadd.f32 %v3498, %v3534
      %v3567 = vadd.f32 %v3499, %v3535
      %v3568 = vadd.f32 %v3500, %v3536
      %v3569 = vadd.f32 %v3501, %v3537
      %v3570 = vadd.f32 %v3502, %v3538
      %v3571 = vadd.f32 %v3503, %v3539
      %v3572 = vadd.f32 %v3504, %v3540
      %v3573 = vadd.f32 %v3505, %v3541
      %v3574 = vadd.f32 %v3506, %v3542
      %v3575 = vadd.f32 %v3507, %v3543
      %v3576 = vadd.f32 %v3508, %v3544
      %v3577 = vadd.f32 %v3509, %v3545
      %v3578 = vadd.f32 %v3510, %v3546
      %v3579 = vadd.f32 %v3511, %v3547
      %v3580 = vadd.f32 %v3512, %v3548
      %v3581 = vadd.f32 %v3513, %v3549
      %v3582 = vadd.f32 %v3514, %v3550
      %v3583 = vadd.f32 %v3515, %v3551
      %v3584 = vadd.f32 %v3516, %v3552
      %v3585 = vadd.f32 %v3517, %v3553
      %v3586 = vadd.f32 %v3518, %v3554
      %v3587 = vadd.f32 %v3519, %v3555
      %v3588 = vadd.f32 %v3520, %v3556
      %v3589 = vadd.f32 %v3521, %v3557
      %v3590 = vadd.f32 %v3522, %v3558
      %v3591 = vadd.f32 %v3523, %v3559
      %v3592 = vadd.f32 %v3524, %v3560
      %v3593 = vadd.f32 %v3525, %v3561
      %v3594 = vadd.f32 %v3526, %v3562
      %v3595 = vadd.f32 %v3527, %v3563
      %v3596 = vadd.f32 %v3528, %v3564
      %v3597 = vadd.f32 %v3529, %v3565
      %v3598 = vld [vmem:[#allocation2 + $0x6] sm:$0xff]
      %v3599 = vld [vmem:[#allocation2 + $0xe] sm:$0xff]
      %v3600 = vld [vmem:[#allocation2 + $0x1e] sm:$0xff]
      %v3601 = vld [vmem:[#allocation2 + $0x26] sm:$0xff]
      %v3602 = vld [vmem:[#allocation2 + $0x36] sm:$0xff]
      %v3603 = vld [vmem:[#allocation2 + $0x3e] sm:$0xff]
      %v3604 = vld [vmem:[#allocation2 + $0x4e] sm:$0xff]
      %v3605 = vld [vmem:[#allocation2 + $0x56] sm:$0xff]
      %v3606 = vld [vmem:[#allocation2 + $0x66] sm:$0xff]
      %v3607 = vld [vmem:[#allocation2 + $0x6e] sm:$0xff]
      %v3608 = vld [vmem:[#allocation2 + $0x7e] sm:$0xff]
      %v3609 = vld [vmem:[#allocation2 + $0x86] sm:$0xff]
      %v3610 = vld [vmem:[#allocation2 + $0x96] sm:$0xff]
      %v3611 = vld [vmem:[#allocation2 + $0x9e] sm:$0xff]
      %v3612 = vld [vmem:[#allocation2 + $0xae] sm:$0xff]
      %v3613 = vld [vmem:[#allocation2 + $0xb6] sm:$0xff]
      %v3614 = vld [vmem:[#allocation2 + $0xc6] sm:$0xff]
      %v3615 = vld [vmem:[#allocation2 + $0xce] sm:$0xff]
      %v3616 = vld [vmem:[#allocation2 + $0xde] sm:$0xff]
      %v3617 = vld [vmem:[#allocation2 + $0xe6] sm:$0xff]
      %v3618 = vld [vmem:[#allocation2 + $0xf6] sm:$0xff]
      %v3619 = vld [vmem:[#allocation2 + $0xfe] sm:$0xff]
      %v3620 = vld [vmem:[#allocation2 + $0x10e] sm:$0xff]
      %v3621 = vld [vmem:[#allocation2 + $0x116] sm:$0xff]
      %v3622 = vld [vmem:[#allocation2 + $0x126] sm:$0xff]
      %v3623 = vld [vmem:[#allocation2 + $0x12e] sm:$0xff]
      %v3624 = vld [vmem:[#allocation2 + $0x13e] sm:$0xff]
      %v3625 = vld [vmem:[#allocation2 + $0x146] sm:$0xff]
      %v3626 = vld [vmem:[#allocation2 + $0x156] sm:$0xff]
      %v3627 = vld [vmem:[#allocation2 + $0x15e] sm:$0xff]
      %v3628 = vld [vmem:[#allocation2 + $0x16e] sm:$0xff]
      %v3629 = vld [vmem:[#allocation2 + $0x176] sm:$0xff]
      %v3630 = vld [vmem:[#allocation2 + $0x186] sm:$0xff]
      %v3631 = vld [vmem:[#allocation2 + $0x18e] sm:$0xff]
      %v3632 = vld [vmem:[#allocation2 + $0x19e] sm:$0xff]
      %v3633 = vld [vmem:[#allocation2 + $0x1a6] sm:$0xff]
      %v3634 = vld [vmem:[#allocation2 + $0x1b6] sm:$0xff]
      %v3635 = vld [vmem:[#allocation2 + $0x1be] sm:$0xff]
      %v3636 = vld [vmem:[#allocation2 + $0x1ce] sm:$0xff]
      %v3637 = vld [vmem:[#allocation2 + $0x1d6] sm:$0xff]
      %v3638 = vld [vmem:[#allocation2 + $0x1e6] sm:$0xff]
      %v3639 = vld [vmem:[#allocation2 + $0x1ee] sm:$0xff]
      %v3640 = vld [vmem:[#allocation2 + $0x1fe] sm:$0xff]
      %v3641 = vld [vmem:[#allocation2 + $0x206] sm:$0xff]
      %v3642 = vlaneseq
      %v3643 = vshrl.u32 %v3642, 7
      %v3644 = vsub.s32 6, %v3643
      %v3645 = vrot.slane %v464, %v3644
      %v3646 = vmul.f32 %v3598, %v3645
      %v3647 = vmul.f32 %v3599, %v3645
      %v3648 = vmul.f32 %v3600, %v3645
      %v3649 = vmul.f32 %v3601, %v3645
      %v3650 = vmul.f32 %v3602, %v3645
      %v3651 = vmul.f32 %v3603, %v3645
      %v3652 = vmul.f32 %v3604, %v3645
      %v3653 = vmul.f32 %v3605, %v3645
      %v3654 = vmul.f32 %v3606, %v3645
      %v3655 = vmul.f32 %v3607, %v3645
      %v3656 = vmul.f32 %v3608, %v3645
      %v3657 = vmul.f32 %v3609, %v3645
      %v3658 = vmul.f32 %v3610, %v3645
      %v3659 = vmul.f32 %v3611, %v3645
      %v3660 = vmul.f32 %v3612, %v3645
      %v3661 = vmul.f32 %v3613, %v3645
      %v3662 = vmul.f32 %v3614, %v3645
      %v3663 = vmul.f32 %v3615, %v3645
      %v3664 = vmul.f32 %v3616, %v3645
      %v3665 = vmul.f32 %v3617, %v3645
      %v3666 = vmul.f32 %v3618, %v3645
      %v3667 = vmul.f32 %v3619, %v3645
      %v3668 = vmul.f32 %v3620, %v3645
      %v3669 = vmul.f32 %v3621, %v3645
      %v3670 = vmul.f32 %v3622, %v3645
      %v3671 = vmul.f32 %v3623, %v3645
      %v3672 = vmul.f32 %v3624, %v3645
      %v3673 = vmul.f32 %v3625, %v3645
      %v3674 = vmul.f32 %v3626, %v3645
      %v3675 = vmul.f32 %v3627, %v3645
      %v3676 = vmul.f32 %v3628, %v3645
      %v3677 = vmul.f32 %v3629, %v3645
      %v3678 = vadd.f32 %v3566, %v3646
      %v3679 = vadd.f32 %v3567, %v3647
      %v3680 = vadd.f32 %v3568, %v3648
      %v3681 = vadd.f32 %v3569, %v3649
      %v3682 = vadd.f32 %v3570, %v3650
      %v3683 = vadd.f32 %v3571, %v3651
      %v3684 = vadd.f32 %v3572, %v3652
      %v3685 = vadd.f32 %v3573, %v3653
      %v3686 = vadd.f32 %v3574, %v3654
      %v3687 = vadd.f32 %v3575, %v3655
      %v3688 = vadd.f32 %v3576, %v3656
      %v3689 = vadd.f32 %v3577, %v3657
      %v3690 = vadd.f32 %v3578, %v3658
      %v3691 = vadd.f32 %v3579, %v3659
      %v3692 = vadd.f32 %v3580, %v3660
      %v3693 = vadd.f32 %v3581, %v3661
      %v3694 = vadd.f32 %v3582, %v3662
      %v3695 = vadd.f32 %v3583, %v3663
      %v3696 = vadd.f32 %v3584, %v3664
      %v3697 = vadd.f32 %v3585, %v3665
      %v3698 = vadd.f32 %v3586, %v3666
      %v3699 = vadd.f32 %v3587, %v3667
      %v3700 = vadd.f32 %v3588, %v3668
      %v3701 = vadd.f32 %v3589, %v3669
      %v3702 = vadd.f32 %v3590, %v3670
      %v3703 = vadd.f32 %v3591, %v3671
      %v3704 = vadd.f32 %v3592, %v3672
      %v3705 = vadd.f32 %v3593, %v3673
      %v3706 = vadd.f32 %v3594, %v3674
      %v3707 = vadd.f32 %v3595, %v3675
      %v3708 = vadd.f32 %v3596, %v3676
      %v3709 = vadd.f32 %v3597, %v3677
      %v3710 = vlaneseq
      %v3711 = vshrl.u32 %v3710, 7
      %v3712 = vsub.s32 6, %v3711
      %v3713 = vrot.slane %v465, %v3712
      %v3714 = vmul.f32 %v3600, %v3713
      %v3715 = vmul.f32 %v3601, %v3713
      %v3716 = vmul.f32 %v3602, %v3713
      %v3717 = vmul.f32 %v3603, %v3713
      %v3718 = vmul.f32 %v3604, %v3713
      %v3719 = vmul.f32 %v3605, %v3713
      %v3720 = vmul.f32 %v3606, %v3713
      %v3721 = vmul.f32 %v3607, %v3713
      %v3722 = vmul.f32 %v3608, %v3713
      %v3723 = vmul.f32 %v3609, %v3713
      %v3724 = vmul.f32 %v3610, %v3713
      %v3725 = vmul.f32 %v3611, %v3713
      %v3726 = vmul.f32 %v3612, %v3713
      %v3727 = vmul.f32 %v3613, %v3713
      %v3728 = vmul.f32 %v3614, %v3713
      %v3729 = vmul.f32 %v3615, %v3713
      %v3730 = vmul.f32 %v3616, %v3713
      %v3731 = vmul.f32 %v3617, %v3713
      %v3732 = vmul.f32 %v3618, %v3713
      %v3733 = vmul.f32 %v3619, %v3713
      %v3734 = vmul.f32 %v3620, %v3713
      %v3735 = vmul.f32 %v3621, %v3713
      %v3736 = vmul.f32 %v3622, %v3713
      %v3737 = vmul.f32 %v3623, %v3713
      %v3738 = vmul.f32 %v3624, %v3713
      %v3739 = vmul.f32 %v3625, %v3713
      %v3740 = vmul.f32 %v3626, %v3713
      %v3741 = vmul.f32 %v3627, %v3713
      %v3742 = vmul.f32 %v3628, %v3713
      %v3743 = vmul.f32 %v3629, %v3713
      %v3744 = vmul.f32 %v3630, %v3713
      %v3745 = vmul.f32 %v3631, %v3713
      %v3746 = vadd.f32 %v3678, %v3714
      %v3747 = vadd.f32 %v3679, %v3715
      %v3748 = vadd.f32 %v3680, %v3716
      %v3749 = vadd.f32 %v3681, %v3717
      %v3750 = vadd.f32 %v3682, %v3718
      %v3751 = vadd.f32 %v3683, %v3719
      %v3752 = vadd.f32 %v3684, %v3720
      %v3753 = vadd.f32 %v3685, %v3721
      %v3754 = vadd.f32 %v3686, %v3722
      %v3755 = vadd.f32 %v3687, %v3723
      %v3756 = vadd.f32 %v3688, %v3724
      %v3757 = vadd.f32 %v3689, %v3725
      %v3758 = vadd.f32 %v3690, %v3726
      %v3759 = vadd.f32 %v3691, %v3727
      %v3760 = vadd.f32 %v3692, %v3728
      %v3761 = vadd.f32 %v3693, %v3729
      %v3762 = vadd.f32 %v3694, %v3730
      %v3763 = vadd.f32 %v3695, %v3731
      %v3764 = vadd.f32 %v3696, %v3732
      %v3765 = vadd.f32 %v3697, %v3733
      %v3766 = vadd.f32 %v3698, %v3734
      %v3767 = vadd.f32 %v3699, %v3735
      %v3768 = vadd.f32 %v3700, %v3736
      %v3769 = vadd.f32 %v3701, %v3737
      %v3770 = vadd.f32 %v3702, %v3738
      %v3771 = vadd.f32 %v3703, %v3739
      %v3772 = vadd.f32 %v3704, %v3740
      %v3773 = vadd.f32 %v3705, %v3741
      %v3774 = vadd.f32 %v3706, %v3742
      %v3775 = vadd.f32 %v3707, %v3743
      %v3776 = vadd.f32 %v3708, %v3744
      %v3777 = vadd.f32 %v3709, %v3745
      %v3778 = vlaneseq
      %v3779 = vshrl.u32 %v3778, 7
      %v3780 = vsub.s32 6, %v3779
      %v3781 = vrot.slane %v466, %v3780
      %v3782 = vmul.f32 %v3602, %v3781
      %v3783 = vmul.f32 %v3603, %v3781
      %v3784 = vmul.f32 %v3604, %v3781
      %v3785 = vmul.f32 %v3605, %v3781
      %v3786 = vmul.f32 %v3606, %v3781
      %v3787 = vmul.f32 %v3607, %v3781
      %v3788 = vmul.f32 %v3608, %v3781
      %v3789 = vmul.f32 %v3609, %v3781
      %v3790 = vmul.f32 %v3610, %v3781
      %v3791 = vmul.f32 %v3611, %v3781
      %v3792 = vmul.f32 %v3612, %v3781
      %v3793 = vmul.f32 %v3613, %v3781
      %v3794 = vmul.f32 %v3614, %v3781
      %v3795 = vmul.f32 %v3615, %v3781
      %v3796 = vmul.f32 %v3616, %v3781
      %v3797 = vmul.f32 %v3617, %v3781
      %v3798 = vmul.f32 %v3618, %v3781
      %v3799 = vmul.f32 %v3619, %v3781
      %v3800 = vmul.f32 %v3620, %v3781
      %v3801 = vmul.f32 %v3621, %v3781
      %v3802 = vmul.f32 %v3622, %v3781
      %v3803 = vmul.f32 %v3623, %v3781
      %v3804 = vmul.f32 %v3624, %v3781
      %v3805 = vmul.f32 %v3625, %v3781
      %v3806 = vmul.f32 %v3626, %v3781
      %v3807 = vmul.f32 %v3627, %v3781
      %v3808 = vmul.f32 %v3628, %v3781
      %v3809 = vmul.f32 %v3629, %v3781
      %v3810 = vmul.f32 %v3630, %v3781
      %v3811 = vmul.f32 %v3631, %v3781
      %v3812 = vmul.f32 %v3632, %v3781
      %v3813 = vmul.f32 %v3633, %v3781
      %v3814 = vadd.f32 %v3746, %v3782
      %v3815 = vadd.f32 %v3747, %v3783
      %v3816 = vadd.f32 %v3748, %v3784
      %v3817 = vadd.f32 %v3749, %v3785
      %v3818 = vadd.f32 %v3750, %v3786
      %v3819 = vadd.f32 %v3751, %v3787
      %v3820 = vadd.f32 %v3752, %v3788
      %v3821 = vadd.f32 %v3753, %v3789
      %v3822 = vadd.f32 %v3754, %v3790
      %v3823 = vadd.f32 %v3755, %v3791
      %v3824 = vadd.f32 %v3756, %v3792
      %v3825 = vadd.f32 %v3757, %v3793
      %v3826 = vadd.f32 %v3758, %v3794
      %v3827 = vadd.f32 %v3759, %v3795
      %v3828 = vadd.f32 %v3760, %v3796
      %v3829 = vadd.f32 %v3761, %v3797
      %v3830 = vadd.f32 %v3762, %v3798
      %v3831 = vadd.f32 %v3763, %v3799
      %v3832 = vadd.f32 %v3764, %v3800
      %v3833 = vadd.f32 %v3765, %v3801
      %v3834 = vadd.f32 %v3766, %v3802
      %v3835 = vadd.f32 %v3767, %v3803
      %v3836 = vadd.f32 %v3768, %v3804
      %v3837 = vadd.f32 %v3769, %v3805
      %v3838 = vadd.f32 %v3770, %v3806
      %v3839 = vadd.f32 %v3771, %v3807
      %v3840 = vadd.f32 %v3772, %v3808
      %v3841 = vadd.f32 %v3773, %v3809
      %v3842 = vadd.f32 %v3774, %v3810
      %v3843 = vadd.f32 %v3775, %v3811
      %v3844 = vadd.f32 %v3776, %v3812
      %v3845 = vadd.f32 %v3777, %v3813
      %v3846 = vlaneseq
      %v3847 = vshrl.u32 %v3846, 7
      %v3848 = vsub.s32 6, %v3847
      %v3849 = vrot.slane %v467, %v3848
      %v3850 = vmul.f32 %v3604, %v3849
      %v3851 = vmul.f32 %v3605, %v3849
      %v3852 = vmul.f32 %v3606, %v3849
      %v3853 = vmul.f32 %v3607, %v3849
      %v3854 = vmul.f32 %v3608, %v3849
      %v3855 = vmul.f32 %v3609, %v3849
      %v3856 = vmul.f32 %v3610, %v3849
      %v3857 = vmul.f32 %v3611, %v3849
      %v3858 = vmul.f32 %v3612, %v3849
      %v3859 = vmul.f32 %v3613, %v3849
      %v3860 = vmul.f32 %v3614, %v3849
      %v3861 = vmul.f32 %v3615, %v3849
      %v3862 = vmul.f32 %v3616, %v3849
      %v3863 = vmul.f32 %v3617, %v3849
      %v3864 = vmul.f32 %v3618, %v3849
      %v3865 = vmul.f32 %v3619, %v3849
      %v3866 = vmul.f32 %v3620, %v3849
      %v3867 = vmul.f32 %v3621, %v3849
      %v3868 = vmul.f32 %v3622, %v3849
      %v3869 = vmul.f32 %v3623, %v3849
      %v3870 = vmul.f32 %v3624, %v3849
      %v3871 = vmul.f32 %v3625, %v3849
      %v3872 = vmul.f32 %v3626, %v3849
      %v3873 = vmul.f32 %v3627, %v3849
      %v3874 = vmul.f32 %v3628, %v3849
      %v3875 = vmul.f32 %v3629, %v3849
      %v3876 = vmul.f32 %v3630, %v3849
      %v3877 = vmul.f32 %v3631, %v3849
      %v3878 = vmul.f32 %v3632, %v3849
      %v3879 = vmul.f32 %v3633, %v3849
      %v3880 = vmul.f32 %v3634, %v3849
      %v3881 = vmul.f32 %v3635, %v3849
      %v3882 = vadd.f32 %v3814, %v3850
      %v3883 = vadd.f32 %v3815, %v3851
      %v3884 = vadd.f32 %v3816, %v3852
      %v3885 = vadd.f32 %v3817, %v3853
      %v3886 = vadd.f32 %v3818, %v3854
      %v3887 = vadd.f32 %v3819, %v3855
      %v3888 = vadd.f32 %v3820, %v3856
      %v3889 = vadd.f32 %v3821, %v3857
      %v3890 = vadd.f32 %v3822, %v3858
      %v3891 = vadd.f32 %v3823, %v3859
      %v3892 = vadd.f32 %v3824, %v3860
      %v3893 = vadd.f32 %v3825, %v3861
      %v3894 = vadd.f32 %v3826, %v3862
      %v3895 = vadd.f32 %v3827, %v3863
      %v3896 = vadd.f32 %v3828, %v3864
      %v3897 = vadd.f32 %v3829, %v3865
      %v3898 = vadd.f32 %v3830, %v3866
      %v3899 = vadd.f32 %v3831, %v3867
      %v3900 = vadd.f32 %v3832, %v3868
      %v3901 = vadd.f32 %v3833, %v3869
      %v3902 = vadd.f32 %v3834, %v3870
      %v3903 = vadd.f32 %v3835, %v3871
      %v3904 = vadd.f32 %v3836, %v3872
      %v3905 = vadd.f32 %v3837, %v3873
      %v3906 = vadd.f32 %v3838, %v3874
      %v3907 = vadd.f32 %v3839, %v3875
      %v3908 = vadd.f32 %v3840, %v3876
      %v3909 = vadd.f32 %v3841, %v3877
      %v3910 = vadd.f32 %v3842, %v3878
      %v3911 = vadd.f32 %v3843, %v3879
      %v3912 = vadd.f32 %v3844, %v3880
      %v3913 = vadd.f32 %v3845, %v3881
      %v3914 = vlaneseq
      %v3915 = vshrl.u32 %v3914, 7
      %v3916 = vsub.s32 6, %v3915
      %v3917 = vrot.slane %v468, %v3916
      %v3918 = vmul.f32 %v3606, %v3917
      %v3919 = vmul.f32 %v3607, %v3917
      %v3920 = vmul.f32 %v3608, %v3917
      %v3921 = vmul.f32 %v3609, %v3917
      %v3922 = vmul.f32 %v3610, %v3917
      %v3923 = vmul.f32 %v3611, %v3917
      %v3924 = vmul.f32 %v3612, %v3917
      %v3925 = vmul.f32 %v3613, %v3917
      %v3926 = vmul.f32 %v3614, %v3917
      %v3927 = vmul.f32 %v3615, %v3917
      %v3928 = vmul.f32 %v3616, %v3917
      %v3929 = vmul.f32 %v3617, %v3917
      %v3930 = vmul.f32 %v3618, %v3917
      %v3931 = vmul.f32 %v3619, %v3917
      %v3932 = vmul.f32 %v3620, %v3917
      %v3933 = vmul.f32 %v3621, %v3917
      %v3934 = vmul.f32 %v3622, %v3917
      %v3935 = vmul.f32 %v3623, %v3917
      %v3936 = vmul.f32 %v3624, %v3917
      %v3937 = vmul.f32 %v3625, %v3917
      %v3938 = vmul.f32 %v3626, %v3917
      %v3939 = vmul.f32 %v3627, %v3917
      %v3940 = vmul.f32 %v3628, %v3917
      %v3941 = vmul.f32 %v3629, %v3917
      %v3942 = vmul.f32 %v3630, %v3917
      %v3943 = vmul.f32 %v3631, %v3917
      %v3944 = vmul.f32 %v3632, %v3917
      %v3945 = vmul.f32 %v3633, %v3917
      %v3946 = vmul.f32 %v3634, %v3917
      %v3947 = vmul.f32 %v3635, %v3917
      %v3948 = vmul.f32 %v3636, %v3917
      %v3949 = vmul.f32 %v3637, %v3917
      %v3950 = vadd.f32 %v3882, %v3918
      %v3951 = vadd.f32 %v3883, %v3919
      %v3952 = vadd.f32 %v3884, %v3920
      %v3953 = vadd.f32 %v3885, %v3921
      %v3954 = vadd.f32 %v3886, %v3922
      %v3955 = vadd.f32 %v3887, %v3923
      %v3956 = vadd.f32 %v3888, %v3924
      %v3957 = vadd.f32 %v3889, %v3925
      %v3958 = vadd.f32 %v3890, %v3926
      %v3959 = vadd.f32 %v3891, %v3927
      %v3960 = vadd.f32 %v3892, %v3928
      %v3961 = vadd.f32 %v3893, %v3929
      %v3962 = vadd.f32 %v3894, %v3930
      %v3963 = vadd.f32 %v3895, %v3931
      %v3964 = vadd.f32 %v3896, %v3932
      %v3965 = vadd.f32 %v3897, %v3933
      %v3966 = vadd.f32 %v3898, %v3934
      %v3967 = vadd.f32 %v3899, %v3935
      %v3968 = vadd.f32 %v3900, %v3936
      %v3969 = vadd.f32 %v3901, %v3937
      %v3970 = vadd.f32 %v3902, %v3938
      %v3971 = vadd.f32 %v3903, %v3939
      %v3972 = vadd.f32 %v3904, %v3940
      %v3973 = vadd.f32 %v3905, %v3941
      %v3974 = vadd.f32 %v3906, %v3942
      %v3975 = vadd.f32 %v3907, %v3943
      %v3976 = vadd.f32 %v3908, %v3944
      %v3977 = vadd.f32 %v3909, %v3945
      %v3978 = vadd.f32 %v3910, %v3946
      %v3979 = vadd.f32 %v3911, %v3947
      %v3980 = vadd.f32 %v3912, %v3948
      %v3981 = vadd.f32 %v3913, %v3949
      %v3982 = vlaneseq
      %v3983 = vshrl.u32 %v3982, 7
      %v3984 = vsub.s32 6, %v3983
      %v3985 = vrot.slane %v469, %v3984
      %v3986 = vmul.f32 %v3608, %v3985
      %v3987 = vmul.f32 %v3609, %v3985
      %v3988 = vmul.f32 %v3610, %v3985
      %v3989 = vmul.f32 %v3611, %v3985
      %v3990 = vmul.f32 %v3612, %v3985
      %v3991 = vmul.f32 %v3613, %v3985
      %v3992 = vmul.f32 %v3614, %v3985
      %v3993 = vmul.f32 %v3615, %v3985
      %v3994 = vmul.f32 %v3616, %v3985
      %v3995 = vmul.f32 %v3617, %v3985
      %v3996 = vmul.f32 %v3618, %v3985
      %v3997 = vmul.f32 %v3619, %v3985
      %v3998 = vmul.f32 %v3620, %v3985
      %v3999 = vmul.f32 %v3621, %v3985
      %v4000 = vmul.f32 %v3622, %v3985
      %v4001 = vmul.f32 %v3623, %v3985
      %v4002 = vmul.f32 %v3624, %v3985
      %v4003 = vmul.f32 %v3625, %v3985
      %v4004 = vmul.f32 %v3626, %v3985
      %v4005 = vmul.f32 %v3627, %v3985
      %v4006 = vmul.f32 %v3628, %v3985
      %v4007 = vmul.f32 %v3629, %v3985
      %v4008 = vmul.f32 %v3630, %v3985
      %v4009 = vmul.f32 %v3631, %v3985
      %v4010 = vmul.f32 %v3632, %v3985
      %v4011 = vmul.f32 %v3633, %v3985
      %v4012 = vmul.f32 %v3634, %v3985
      %v4013 = vmul.f32 %v3635, %v3985
      %v4014 = vmul.f32 %v3636, %v3985
      %v4015 = vmul.f32 %v3637, %v3985
      %v4016 = vmul.f32 %v3638, %v3985
      %v4017 = vmul.f32 %v3639, %v3985
      %v4018 = vadd.f32 %v3950, %v3986
      %v4019 = vadd.f32 %v3951, %v3987
      %v4020 = vadd.f32 %v3952, %v3988
      %v4021 = vadd.f32 %v3953, %v3989
      %v4022 = vadd.f32 %v3954, %v3990
      %v4023 = vadd.f32 %v3955, %v3991
      %v4024 = vadd.f32 %v3956, %v3992
      %v4025 = vadd.f32 %v3957, %v3993
      %v4026 = vadd.f32 %v3958, %v3994
      %v4027 = vadd.f32 %v3959, %v3995
      %v4028 = vadd.f32 %v3960, %v3996
      %v4029 = vadd.f32 %v3961, %v3997
      %v4030 = vadd.f32 %v3962, %v3998
      %v4031 = vadd.f32 %v3963, %v3999
      %v4032 = vadd.f32 %v3964, %v4000
      %v4033 = vadd.f32 %v3965, %v4001
      %v4034 = vadd.f32 %v3966, %v4002
      %v4035 = vadd.f32 %v3967, %v4003
      %v4036 = vadd.f32 %v3968, %v4004
      %v4037 = vadd.f32 %v3969, %v4005
      %v4038 = vadd.f32 %v3970, %v4006
      %v4039 = vadd.f32 %v3971, %v4007
      %v4040 = vadd.f32 %v3972, %v4008
      %v4041 = vadd.f32 %v3973, %v4009
      %v4042 = vadd.f32 %v3974, %v4010
      %v4043 = vadd.f32 %v3975, %v4011
      %v4044 = vadd.f32 %v3976, %v4012
      %v4045 = vadd.f32 %v3977, %v4013
      %v4046 = vadd.f32 %v3978, %v4014
      %v4047 = vadd.f32 %v3979, %v4015
      %v4048 = vadd.f32 %v3980, %v4016
      %v4049 = vadd.f32 %v3981, %v4017
      %v4050 = vlaneseq
      %v4051 = vshrl.u32 %v4050, 7
      %v4052 = vsub.s32 6, %v4051
      %v4053 = vrot.slane %v470, %v4052
      %v4054 = vmul.f32 %v3610, %v4053
      %v4055 = vmul.f32 %v3611, %v4053
      %v4056 = vmul.f32 %v3612, %v4053
      %v4057 = vmul.f32 %v3613, %v4053
      %v4058 = vmul.f32 %v3614, %v4053
      %v4059 = vmul.f32 %v3615, %v4053
      %v4060 = vmul.f32 %v3616, %v4053
      %v4061 = vmul.f32 %v3617, %v4053
      %v4062 = vmul.f32 %v3618, %v4053
      %v4063 = vmul.f32 %v3619, %v4053
      %v4064 = vmul.f32 %v3620, %v4053
      %v4065 = vmul.f32 %v3621, %v4053
      %v4066 = vmul.f32 %v3622, %v4053
      %v4067 = vmul.f32 %v3623, %v4053
      %v4068 = vmul.f32 %v3624, %v4053
      %v4069 = vmul.f32 %v3625, %v4053
      %v4070 = vmul.f32 %v3626, %v4053
      %v4071 = vmul.f32 %v3627, %v4053
      %v4072 = vmul.f32 %v3628, %v4053
      %v4073 = vmul.f32 %v3629, %v4053
      %v4074 = vmul.f32 %v3630, %v4053
      %v4075 = vmul.f32 %v3631, %v4053
      %v4076 = vmul.f32 %v3632, %v4053
      %v4077 = vmul.f32 %v3633, %v4053
      %v4078 = vmul.f32 %v3634, %v4053
      %v4079 = vmul.f32 %v3635, %v4053
      %v4080 = vmul.f32 %v3636, %v4053
      %v4081 = vmul.f32 %v3637, %v4053
      %v4082 = vmul.f32 %v3638, %v4053
      %v4083 = vmul.f32 %v3639, %v4053
      %v4084 = vmul.f32 %v3640, %v4053
      %v4085 = vmul.f32 %v3641, %v4053
      %v4086 = vadd.f32 %v4018, %v4054
      %v4087 = vadd.f32 %v4019, %v4055
      %v4088 = vadd.f32 %v4020, %v4056
      %v4089 = vadd.f32 %v4021, %v4057
      %v4090 = vadd.f32 %v4022, %v4058
      %v4091 = vadd.f32 %v4023, %v4059
      %v4092 = vadd.f32 %v4024, %v4060
      %v4093 = vadd.f32 %v4025, %v4061
      %v4094 = vadd.f32 %v4026, %v4062
      %v4095 = vadd.f32 %v4027, %v4063
      %v4096 = vadd.f32 %v4028, %v4064
      %v4097 = vadd.f32 %v4029, %v4065
      %v4098 = vadd.f32 %v4030, %v4066
      %v4099 = vadd.f32 %v4031, %v4067
      %v4100 = vadd.f32 %v4032, %v4068
      %v4101 = vadd.f32 %v4033, %v4069
      %v4102 = vadd.f32 %v4034, %v4070
      %v4103 = vadd.f32 %v4035, %v4071
      %v4104 = vadd.f32 %v4036, %v4072
      %v4105 = vadd.f32 %v4037, %v4073
      %v4106 = vadd.f32 %v4038, %v4074
      %v4107 = vadd.f32 %v4039, %v4075
      %v4108 = vadd.f32 %v4040, %v4076
      %v4109 = vadd.f32 %v4041, %v4077
      %v4110 = vadd.f32 %v4042, %v4078
      %v4111 = vadd.f32 %v4043, %v4079
      %v4112 = vadd.f32 %v4044, %v4080
      %v4113 = vadd.f32 %v4045, %v4081
      %v4114 = vadd.f32 %v4046, %v4082
      %v4115 = vadd.f32 %v4047, %v4083
      %v4116 = vadd.f32 %v4048, %v4084
      %v4117 = vadd.f32 %v4049, %v4085
      %v4118 = vsel %vm365, %v4086, 0.0
      %v4119 = vsel %vm365, %v4087, 0.0
      %v4120 = vadd.f32 %v4118, %v4119
      %v4121 = vsel %vm365, %v4088, 0.0
      %v4122 = vadd.f32 %v4120, %v4121
      %v4123 = vsel %vm365, %v4089, 0.0
      %v4124 = vadd.f32 %v4122, %v4123
      %v4125 = vsel %vm365, %v4090, 0.0
      %v4126 = vadd.f32 %v4124, %v4125
      %v4127 = vsel %vm365, %v4091, 0.0
      %v4128 = vadd.f32 %v4126, %v4127
      %v4129 = vsel %vm365, %v4092, 0.0
      %v4130 = vadd.f32 %v4128, %v4129
      %v4131 = vsel %vm365, %v4093, 0.0
      %v4132 = vadd.f32 %v4130, %v4131
      %v4133 = vsel %vm365, %v4094, 0.0
      %v4134 = vadd.f32 %v4132, %v4133
      %v4135 = vsel %vm365, %v4095, 0.0
      %v4136 = vadd.f32 %v4134, %v4135
      %v4137 = vsel %vm365, %v4096, 0.0
      %v4138 = vadd.f32 %v4136, %v4137
      %v4139 = vsel %vm365, %v4097, 0.0
      %v4140 = vadd.f32 %v4138, %v4139
      %v4141 = vsel %vm365, %v4098, 0.0
      %v4142 = vadd.f32 %v4140, %v4141
      %v4143 = vsel %vm365, %v4099, 0.0
      %v4144 = vadd.f32 %v4142, %v4143
      %v4145 = vsel %vm365, %v4100, 0.0
      %v4146 = vadd.f32 %v4144, %v4145
      %v4147 = vsel %vm365, %v4101, 0.0
      %v4148 = vadd.f32 %v4146, %v4147
      %v4149 = vsel %vm365, %v4102, 0.0
      %v4150 = vadd.f32 %v4148, %v4149
      %v4151 = vsel %vm365, %v4103, 0.0
      %v4152 = vadd.f32 %v4150, %v4151
      %v4153 = vsel %vm365, %v4104, 0.0
      %v4154 = vadd.f32 %v4152, %v4153
      %v4155 = vsel %vm365, %v4105, 0.0
      %v4156 = vadd.f32 %v4154, %v4155
      %v4157 = vsel %vm365, %v4106, 0.0
      %v4158 = vadd.f32 %v4156, %v4157
      %v4159 = vsel %vm365, %v4107, 0.0
      %v4160 = vadd.f32 %v4158, %v4159
      %v4161 = vsel %vm365, %v4108, 0.0
      %v4162 = vadd.f32 %v4160, %v4161
      %v4163 = vsel %vm365, %v4109, 0.0
      %v4164 = vadd.f32 %v4162, %v4163
      %v4165 = vsel %vm365, %v4110, 0.0
      %v4166 = vadd.f32 %v4164, %v4165
      %v4167 = vsel %vm365, %v4111, 0.0
      %v4168 = vadd.f32 %v4166, %v4167
      %v4169 = vsel %vm365, %v4112, 0.0
      %v4170 = vadd.f32 %v4168, %v4169
      %v4171 = vsel %vm365, %v4113, 0.0
      %v4172 = vadd.f32 %v4170, %v4171
      %v4173 = vsel %vm365, %v4114, 0.0
      %v4174 = vadd.f32 %v4172, %v4173
      %v4175 = vsel %vm365, %v4115, 0.0
      %v4176 = vadd.f32 %v4174, %v4175
      %v4177 = vsel %vm365, %v4116, 0.0
      %v4178 = vadd.f32 %v4176, %v4177
      %v4179 = vsel %vm365, %v4117, 0.0
      %v4180 = vadd.f32 %v4178, %v4179
      %4181 = vadd.xlane.f32.xlu0 %v4180
      %v4182 = vpop.xlane.xlu0 %4181
      %v4183 = vrot.slane %v4182, 4
      %v4184 = vadd.f32 %v4182, %v4183
      %v4185 = vrot.slane %v4184, 2
      %v4186 = vadd.f32 %v4184, %v4185
      %v4187 = vrot.slane %v4186, 1
      %v4188 = vadd.f32 %v4186, %v4187
      %s4189 = vtos %v4188
      %v4190 = vrcp.pop 1024.0
      %s4191 = vtos %v4190
      %s4192 = smul.f32 %s4189, %s4191
      %v4193 = vstv %s4192
      %v4194 = vsub.f32 %v4086, %v4193
      %v4195 = vsub.f32 %v4087, %v4193
      %v4196 = vsub.f32 %v4088, %v4193
      %v4197 = vsub.f32 %v4089, %v4193
      %v4198 = vsub.f32 %v4090, %v4193
      %v4199 = vsub.f32 %v4091, %v4193
      %v4200 = vsub.f32 %v4092, %v4193
      %v4201 = vsub.f32 %v4093, %v4193
      %v4202 = vsub.f32 %v4094, %v4193
      %v4203 = vsub.f32 %v4095, %v4193
      %v4204 = vsub.f32 %v4096, %v4193
      %v4205 = vsub.f32 %v4097, %v4193
      %v4206 = vsub.f32 %v4098, %v4193
      %v4207 = vsub.f32 %v4099, %v4193
      %v4208 = vsub.f32 %v4100, %v4193
      %v4209 = vsub.f32 %v4101, %v4193
      %v4210 = vsub.f32 %v4102, %v4193
      %v4211 = vsub.f32 %v4103, %v4193
      %v4212 = vsub.f32 %v4104, %v4193
      %v4213 = vsub.f32 %v4105, %v4193
      %v4214 = vsub.f32 %v4106, %v4193
      %v4215 = vsub.f32 %v4107, %v4193
      %v4216 = vsub.f32 %v4108, %v4193
      %v4217 = vsub.f32 %v4109, %v4193
      %v4218 = vsub.f32 %v4110, %v4193
      %v4219 = vsub.f32 %v4111, %v4193
      %v4220 = vsub.f32 %v4112, %v4193
      %v4221 = vsub.f32 %v4113, %v4193
      %v4222 = vsub.f32 %v4114, %v4193
      %v4223 = vsub.f32 %v4115, %v4193
      %v4224 = vsub.f32 %v4116, %v4193
      %v4225 = vsub.f32 %v4117, %v4193
      %v4226 = vmul.f32 %v4194, %v4194
      %v4227 = vmul.f32 %v4195, %v4195
      %v4228 = vmul.f32 %v4196, %v4196
      %v4229 = vmul.f32 %v4197, %v4197
      %v4230 = vmul.f32 %v4198, %v4198
      %v4231 = vmul.f32 %v4199, %v4199
      %v4232 = vmul.f32 %v4200, %v4200
      %v4233 = vmul.f32 %v4201, %v4201
      %v4234 = vmul.f32 %v4202, %v4202
      %v4235 = vmul.f32 %v4203, %v4203
      %v4236 = vmul.f32 %v4204, %v4204
      %v4237 = vmul.f32 %v4205, %v4205
      %v4238 = vmul.f32 %v4206, %v4206
      %v4239 = vmul.f32 %v4207, %v4207
      %v4240 = vmul.f32 %v4208, %v4208
      %v4241 = vmul.f32 %v4209, %v4209
      %v4242 = vmul.f32 %v4210, %v4210
      %v4243 = vmul.f32 %v4211, %v4211
      %v4244 = vmul.f32 %v4212, %v4212
      %v4245 = vmul.f32 %v4213, %v4213
      %v4246 = vmul.f32 %v4214, %v4214
      %v4247 = vmul.f32 %v4215, %v4215
      %v4248 = vmul.f32 %v4216, %v4216
      %v4249 = vmul.f32 %v4217, %v4217
      %v4250 = vmul.f32 %v4218, %v4218
      %v4251 = vmul.f32 %v4219, %v4219
      %v4252 = vmul.f32 %v4220, %v4220
      %v4253 = vmul.f32 %v4221, %v4221
      %v4254 = vmul.f32 %v4222, %v4222
      %v4255 = vmul.f32 %v4223, %v4223
      %v4256 = vmul.f32 %v4224, %v4224
      %v4257 = vmul.f32 %v4225, %v4225
      %v4258 = vsel %vm365, %v4226, 0.0
      %v4259 = vsel %vm365, %v4227, 0.0
      %v4260 = vadd.f32 %v4258, %v4259
      %v4261 = vsel %vm365, %v4228, 0.0
      %v4262 = vadd.f32 %v4260, %v4261
      %v4263 = vsel %vm365, %v4229, 0.0
      %v4264 = vadd.f32 %v4262, %v4263
      %v4265 = vsel %vm365, %v4230, 0.0
      %v4266 = vadd.f32 %v4264, %v4265
      %v4267 = vsel %vm365, %v4231, 0.0
      %v4268 = vadd.f32 %v4266, %v4267
      %v4269 = vsel %vm365, %v4232, 0.0
      %v4270 = vadd.f32 %v4268, %v4269
      %v4271 = vsel %vm365, %v4233, 0.0
      %v4272 = vadd.f32 %v4270, %v4271
      %v4273 = vsel %vm365, %v4234, 0.0
      %v4274 = vadd.f32 %v4272, %v4273
      %v4275 = vsel %vm365, %v4235, 0.0
      %v4276 = vadd.f32 %v4274, %v4275
      %v4277 = vsel %vm365, %v4236, 0.0
      %v4278 = vadd.f32 %v4276, %v4277
      %v4279 = vsel %vm365, %v4237, 0.0
      %v4280 = vadd.f32 %v4278, %v4279
      %v4281 = vsel %vm365, %v4238, 0.0
      %v4282 = vadd.f32 %v4280, %v4281
      %v4283 = vsel %vm365, %v4239, 0.0
      %v4284 = vadd.f32 %v4282, %v4283
      %v4285 = vsel %vm365, %v4240, 0.0
      %v4286 = vadd.f32 %v4284, %v4285
      %v4287 = vsel %vm365, %v4241, 0.0
      %v4288 = vadd.f32 %v4286, %v4287
      %v4289 = vsel %vm365, %v4242, 0.0
      %v4290 = vadd.f32 %v4288, %v4289
      %v4291 = vsel %vm365, %v4243, 0.0
      %v4292 = vadd.f32 %v4290, %v4291
      %v4293 = vsel %vm365, %v4244, 0.0
      %v4294 = vadd.f32 %v4292, %v4293
      %v4295 = vsel %vm365, %v4245, 0.0
      %v4296 = vadd.f32 %v4294, %v4295
      %v4297 = vsel %vm365, %v4246, 0.0
      %v4298 = vadd.f32 %v4296, %v4297
      %v4299 = vsel %vm365, %v4247, 0.0
      %v4300 = vadd.f32 %v4298, %v4299
      %v4301 = vsel %vm365, %v4248, 0.0
      %v4302 = vadd.f32 %v4300, %v4301
      %v4303 = vsel %vm365, %v4249, 0.0
      %v4304 = vadd.f32 %v4302, %v4303
      %v4305 = vsel %vm365, %v4250, 0.0
      %v4306 = vadd.f32 %v4304, %v4305
      %v4307 = vsel %vm365, %v4251, 0.0
      %v4308 = vadd.f32 %v4306, %v4307
      %v4309 = vsel %vm365, %v4252, 0.0
      %v4310 = vadd.f32 %v4308, %v4309
      %v4311 = vsel %vm365, %v4253, 0.0
      %v4312 = vadd.f32 %v4310, %v4311
      %v4313 = vsel %vm365, %v4254, 0.0
      %v4314 = vadd.f32 %v4312, %v4313
      %v4315 = vsel %vm365, %v4255, 0.0
      %v4316 = vadd.f32 %v4314, %v4315
      %v4317 = vsel %vm365, %v4256, 0.0
      %v4318 = vadd.f32 %v4316, %v4317
      %v4319 = vsel %vm365, %v4257, 0.0
      %v4320 = vadd.f32 %v4318, %v4319
      %4321 = vadd.xlane.f32.xlu0 %v4320
      %v4322 = vpop.xlane.xlu0 %4321
      %v4323 = vrot.slane %v4322, 4
      %v4324 = vadd.f32 %v4322, %v4323
      %v4325 = vrot.slane %v4324, 2
      %v4326 = vadd.f32 %v4324, %v4325
      %v4327 = vrot.slane %v4326, 1
      %v4328 = vadd.f32 %v4326, %v4327
      %s4329 = vtos %v4328
      %v4330 = vrcp.pop 1024.0
      %s4331 = vtos %v4330
      %s4332 = smul.f32 %s4329, %s4331
      %s4333 = sadd.f32 %s4332, 1e-06
      %v4334 = vstv %s4333
      %v4335 = vrsqrt.pop %v4334
      %s4336 = vtos %v4335
      %v4337 = vld [vmem:[%s3] sm:$0x1]
      %v4338 = vstv %s4336
      %v4339 = vmul.f32 %v4337, %v4338
      %v4340 = vld [vmem:[%s4] sm:$0x1]
      %v4341 = vmul.f32 %v4193, %v4339
      %v4342 = vsub.f32 %v4340, %v4341
      %v4343 = vld [vmem:[%s5] sm:$0xf]
      %v4344 = vlaneseq
      %v4345 = vshrl.u32 %v4344, 7
      %v4346 = vsub.s32 0, %v4345
      %v4347 = vrot.slane %v4339, %v4346
      %4349 = vbcast.lane.b32.xlu0 %v4347, 256
      %v4350 = vpop.permute.xlu0 %4349
      %v4351 = vmul.f32 %v4343, %v4350
      %v4352 = vld [vmem:[%s6] sm:$0x1]
      %v4353 = vlaneseq
      %v4354 = vshrl.u32 %v4353, 7
      %v4355 = vsub.s32 0, %v4354
      %v4356 = vrot.slane %v4342, %v4355
      %4358 = vbcast.lane.b32.xlu0 %v4356, 256
      %v4359 = vpop.permute.xlu0 %4358
      %v4360 = vmul.f32 %v4359, %v4343
      %vm4361 = vcmask 125952
      %v4362 = vsel %vm4361, %v4360, 0.0
      %v4363 = vrot.slane %v4362, 4
      %v4364 = vadd.f32 %v4362, %v4363
      %v4365 = vrot.slane %v4364, 2
      %v4366 = vadd.f32 %v4364, %v4365
      %v4367 = vrot.slane %v4366, 1
      %v4368 = vadd.f32 %v4366, %v4367
      %v4369 = vadd.f32 %v4352, %v4368
      %v4370 = vld [vmem:[%s7] sm:$0xff]
      %v4371 = vld [vmem:[%s7 + $0x8] sm:$0xff]
      %v4372 = vld [vmem:[%s8] sm:$0x1]
      %v4374 = vlaneseq
      %v4375 = vshrl.u32 %v4374, 7
      %v4376 = vsub.s32 0, %v4375
      %v4377 = vrot.slane %v4369, %v4376
      %v4380 = vsel %vm365, %v4086, 0
      %v4383 = vsel %vm365, %v4087, 0
      %v4386 = vsel %vm365, %v4088, 0
      %v4389 = vsel %vm365, %v4089, 0
      %v4392 = vsel %vm365, %v4090, 0
      %v4395 = vsel %vm365, %v4091, 0
      %v4398 = vsel %vm365, %v4092, 0
      %v4401 = vsel %vm365, %v4093, 0
      %v4404 = vsel %vm365, %v4094, 0
      %v4407 = vsel %vm365, %v4095, 0
      %v4410 = vsel %vm365, %v4096, 0
      %v4413 = vsel %vm365, %v4097, 0
      %v4416 = vsel %vm365, %v4098, 0
      %v4419 = vsel %vm365, %v4099, 0
      %v4422 = vsel %vm365, %v4100, 0
      %v4425 = vsel %vm365, %v4101, 0
      %v4428 = vsel %vm365, %v4102, 0
      %v4431 = vsel %vm365, %v4103, 0
      %v4434 = vsel %vm365, %v4104, 0
      %v4437 = vsel %vm365, %v4105, 0
      %v4440 = vsel %vm365, %v4106, 0
      %v4443 = vsel %vm365, %v4107, 0
      %v4446 = vsel %vm365, %v4108, 0
      %v4449 = vsel %vm365, %v4109, 0
      %v4452 = vsel %vm365, %v4110, 0
      %v4455 = vsel %vm365, %v4111, 0
      %v4458 = vsel %vm365, %v4112, 0
      %v4461 = vsel %vm365, %v4113, 0
      %v4464 = vsel %vm365, %v4114, 0
      %v4467 = vsel %vm365, %v4115, 0
      %v4470 = vsel %vm365, %v4116, 0
      %v4473 = vsel %vm365, %v4117, 0
      %vm4475 = vcmask 1043456
      %v4477 = vsel %vm4475, %v4351, 0
      %4479 = vmatprep.subr.mxu0 0.0
      %4480 = vmatpush1.msra.mxu0 %v4477
      %4481 = vmatprep.subr.mxu0 0.0
      %4482 = vmatpush1.msra.mxu0 0.0
      %4483 = vmatprep.subr.mxu0 0.0
      %4484 = vmatpush1.msra.mxu0 0.0
      %4485 = vmatprep.subr.mxu0 0.0
      %4486 = vmatpush1.msra.mxu0 0.0
      %4487 = vmatprep.subr.mxu0 0.0
      %4488 = vmatpush1.msra.mxu0 0.0
      %4489 = vmatprep.subr.mxu0 0.0
      %4490 = vmatpush1.msra.mxu0 0.0
      %4491 = vmatprep.subr.mxu0 0.0
      %4492 = vmatpush1.msra.mxu0 0.0
      %4493 = vmatprep.subr.mxu0 0.0
      %4494 = vmatpush1.msra.mxu0 0.0
      %4495 = vmatprep.subr.mxu0 0.0
      %4496 = vmatpush1.msra.mxu0 0.0
      %4497 = vmatprep.subr.mxu0 0.0
      %4498 = vmatpush1.msra.mxu0 0.0
      %4499 = vmatprep.subr.mxu0 0.0
      %4500 = vmatpush1.msra.mxu0 0.0
      %4501 = vmatprep.subr.mxu0 0.0
      %4502 = vmatpush1.msra.mxu0 0.0
      %4503 = vmatprep.subr.mxu0 0.0
      %4504 = vmatpush1.msra.mxu0 0.0
      %4505 = vmatprep.subr.mxu0 0.0
      %4506 = vmatpush1.msra.mxu0 0.0
      %4507 = vmatprep.subr.mxu0 0.0
      %4508 = vmatpush1.msra.mxu0 0.0
      %4509 = vmatprep.subr.mxu0 0.0
      %4510 = vmatpush1.msra.mxu0 0.0
      %4511 = vmatprep.subr.mxu0 0.0
      %4512 = vmatpush1.msra.mxu0 0.0
      %4513 = vmatprep.subr.mxu0 0.0
      %4514 = vmatpush1.msra.mxu0 0.0
      %4515 = vmatprep.subr.mxu0 0.0
      %4516 = vmatpush1.msra.mxu0 0.0
      %4517 = vmatprep.subr.mxu0 0.0
      %4518 = vmatpush1.msra.mxu0 0.0
      %4519 = vmatprep.subr.mxu0 0.0
      %4520 = vmatpush1.msra.mxu0 0.0
      %4521 = vmatprep.subr.mxu0 0.0
      %4522 = vmatpush1.msra.mxu0 0.0
      %4523 = vmatprep.subr.mxu0 0.0
      %4524 = vmatpush1.msra.mxu0 0.0
      %4525 = vmatprep.subr.mxu0 0.0
      %4526 = vmatpush1.msra.mxu0 0.0
      %4527 = vmatprep.subr.mxu0 0.0
      %4528 = vmatpush1.msra.mxu0 0.0
      %4529 = vmatprep.subr.mxu0 0.0
      %4530 = vmatpush1.msra.mxu0 0.0
      %4531 = vmatprep.subr.mxu0 0.0
      %4532 = vmatpush1.msra.mxu0 0.0
      %4533 = vmatprep.subr.mxu0 0.0
      %4534 = vmatpush1.msra.mxu0 0.0
      %4535 = vmatprep.subr.mxu0 0.0
      %4536 = vmatpush1.msra.mxu0 0.0
      %4537 = vmatprep.subr.mxu0 0.0
      %4538 = vmatpush1.msra.mxu0 0.0
      %4539 = vmatprep.subr.mxu0 0.0
      %4540 = vmatpush1.msra.mxu0 0.0
      %4541 = vmatprep.subr.mxu0 0.0
      %4542 = vmatpush1.msra.mxu0 0.0
      %4543 = vmatprep.mubr.f32.mxu0 0.0
      %4544 = vmatmul.mubr.f32.gmra.mrb[0].mxu0 %v4380
      %v4545 = vpop.f32.mrb[0].mxu0
      %v4546 = vadd.f32 %v4377, %v4545
      %v4547 = vpop.f32.mrb[0].mxu0
      %4548 = vmatprep.mubr.f32.mxu0 0.0
      %4549 = vmatmul.mubr.f32.gmra.mrb[0].mxu0 %v4383
      %v4550 = vpop.f32.mrb[0].mxu0
      %v4551 = vadd.f32 %v4377, %v4550
      %v4552 = vpop.f32.mrb[0].mxu0
      %4553 = vmatprep.mubr.f32.mxu0 0.0
      %4554 = vmatmul.mubr.f32.gmra.mrb[0].mxu0 %v4386
      %v4555 = vpop.f32.mrb[0].mxu0
      %v4556 = vadd.f32 %v4377, %v4555
      %v4557 = vpop.f32.mrb[0].mxu0
      %4558 = vmatprep.mubr.f32.mxu0 0.0
      %4559 = vmatmul.mubr.f32.gmra.mrb[0].mxu0 %v4389
      %v4560 = vpop.f32.mrb[0].mxu0
      %v4561 = vadd.f32 %v4377, %v4560
      %v4562 = vpop.f32.mrb[0].mxu0
      %4563 = vmatprep.mubr.f32.mxu0 0.0
      %4564 = vmatmul.mubr.f32.gmra.mrb[0].mxu0 %v4392
      %v4565 = vpop.f32.mrb[0].mxu0
      %v4566 = vadd.f32 %v4377, %v4565
      %v4567 = vpop.f32.mrb[0].mxu0
      %4568 = vmatprep.mubr.f32.mxu0 0.0
      %4569 = vmatmul.mubr.f32.gmra.mrb[0].mxu0 %v4395
      %v4570 = vpop.f32.mrb[0].mxu0
      %v4571 = vadd.f32 %v4377, %v4570
      %v4572 = vpop.f32.mrb[0].mxu0
      %4573 = vmatprep.mubr.f32.mxu0 0.0
      %4574 = vmatmul.mubr.f32.gmra.mrb[0].mxu0 %v4398
      %v4575 = vpop.f32.mrb[0].mxu0
      %v4576 = vadd.f32 %v4377, %v4575
      %v4577 = vpop.f32.mrb[0].mxu0
      %4578 = vmatprep.mubr.f32.mxu0 0.0
      %4579 = vmatmul.mubr.f32.gmra.mrb[0].mxu0 %v4401
      %v4580 = vpop.f32.mrb[0].mxu0
      %v4581 = vadd.f32 %v4377, %v4580
      %v4582 = vpop.f32.mrb[0].mxu0
      %4583 = vmatprep.mubr.f32.mxu0 0.0
      %4584 = vmatmul.mubr.f32.gmra.mrb[0].mxu0 %v4404
      %v4585 = vpop.f32.mrb[0].mxu0
      %v4586 = vadd.f32 %v4377, %v4585
      %v4587 = vpop.f32.mrb[0].mxu0
      %4588 = vmatprep.mubr.f32.mxu0 0.0
      %4589 = vmatmul.mubr.f32.gmra.mrb[0].mxu0 %v4407
      %v4590 = vpop.f32.mrb[0].mxu0
      %v4591 = vadd.f32 %v4377, %v4590
      %v4592 = vpop.f32.mrb[0].mxu0
      %4593 = vmatprep.mubr.f32.mxu0 0.0
      %4594 = vmatmul.mubr.f32.gmra.mrb[0].mxu0 %v4410
      %v4595 = vpop.f32.mrb[0].mxu0
      %v4596 = vadd.f32 %v4377, %v4595
      %v4597 = vpop.f32.mrb[0].mxu0
      %4598 = vmatprep.mubr.f32.mxu0 0.0
      %4599 = vmatmul.mubr.f32.gmra.mrb[0].mxu0 %v4413
      %v4600 = vpop.f32.mrb[0].mxu0
      %v4601 = vadd.f32 %v4377, %v4600
      %v4602 = vpop.f32.mrb[0].mxu0
      %4603 = vmatprep.mubr.f32.mxu0 0.0
      %4604 = vmatmul.mubr.f32.gmra.mrb[0].mxu0 %v4416
      %v4605 = vpop.f32.mrb[0].mxu0
      %v4606 = vadd.f32 %v4377, %v4605
      %v4607 = vpop.f32.mrb[0].mxu0
      %4608 = vmatprep.mubr.f32.mxu0 0.0
      %4609 = vmatmul.mubr.f32.gmra.mrb[0].mxu0 %v4419
      %v4610 = vpop.f32.mrb[0].mxu0
      %v4611 = vadd.f32 %v4377, %v4610
      %v4612 = vpop.f32.mrb[0].mxu0
      %4613 = vmatprep.mubr.f32.mxu0 0.0
      %4614 = vmatmul.mubr.f32.gmra.mrb[0].mxu0 %v4422
      %v4615 = vpop.f32.mrb[0].mxu0
      %v4616 = vadd.f32 %v4377, %v4615
      %v4617 = vpop.f32.mrb[0].mxu0
      %4618 = vmatprep.mubr.f32.mxu0 0.0
      %4619 = vmatmul.mubr.f32.gmra.mrb[0].mxu0 %v4425
      %v4620 = vpop.f32.mrb[0].mxu0
      %v4621 = vadd.f32 %v4377, %v4620
      %v4622 = vpop.f32.mrb[0].mxu0
      %4623 = vmatprep.mubr.f32.mxu0 0.0
      %4624 = vmatmul.mubr.f32.gmra.mrb[0].mxu0 %v4428
      %v4625 = vpop.f32.mrb[0].mxu0
      %v4626 = vadd.f32 %v4377, %v4625
      %v4627 = vpop.f32.mrb[0].mxu0
      %4628 = vmatprep.mubr.f32.mxu0 0.0
      %4629 = vmatmul.mubr.f32.gmra.mrb[0].mxu0 %v4431
      %v4630 = vpop.f32.mrb[0].mxu0
      %v4631 = vadd.f32 %v4377, %v4630
      %v4632 = vpop.f32.mrb[0].mxu0
      %4633 = vmatprep.mubr.f32.mxu0 0.0
      %4634 = vmatmul.mubr.f32.gmra.mrb[0].mxu0 %v4434
      %v4635 = vpop.f32.mrb[0].mxu0
      %v4636 = vadd.f32 %v4377, %v4635
      %v4637 = vpop.f32.mrb[0].mxu0
      %4638 = vmatprep.mubr.f32.mxu0 0.0
      %4639 = vmatmul.mubr.f32.gmra.mrb[0].mxu0 %v4437
      %v4640 = vpop.f32.mrb[0].mxu0
      %v4641 = vadd.f32 %v4377, %v4640
      %v4642 = vpop.f32.mrb[0].mxu0
      %4643 = vmatprep.mubr.f32.mxu0 0.0
      %4644 = vmatmul.mubr.f32.gmra.mrb[0].mxu0 %v4440
      %v4645 = vpop.f32.mrb[0].mxu0
      %v4646 = vadd.f32 %v4377, %v4645
      %v4647 = vpop.f32.mrb[0].mxu0
      %4648 = vmatprep.mubr.f32.mxu0 0.0
      %4649 = vmatmul.mubr.f32.gmra.mrb[0].mxu0 %v4443
      %v4650 = vpop.f32.mrb[0].mxu0
      %v4651 = vadd.f32 %v4377, %v4650
      %v4652 = vpop.f32.mrb[0].mxu0
      %4653 = vmatprep.mubr.f32.mxu0 0.0
      %4654 = vmatmul.mubr.f32.gmra.mrb[0].mxu0 %v4446
      %v4655 = vpop.f32.mrb[0].mxu0
      %v4656 = vadd.f32 %v4377, %v4655
      %v4657 = vpop.f32.mrb[0].mxu0
      %4658 = vmatprep.mubr.f32.mxu0 0.0
      %4659 = vmatmul.mubr.f32.gmra.mrb[0].mxu0 %v4449
      %v4660 = vpop.f32.mrb[0].mxu0
      %v4661 = vadd.f32 %v4377, %v4660
      %v4662 = vpop.f32.mrb[0].mxu0
      %4663 = vmatprep.mubr.f32.mxu0 0.0
      %4664 = vmatmul.mubr.f32.gmra.mrb[0].mxu0 %v4452
      %v4665 = vpop.f32.mrb[0].mxu0
      %v4666 = vadd.f32 %v4377, %v4665
      %v4667 = vpop.f32.mrb[0].mxu0
      %4668 = vmatprep.mubr.f32.mxu0 0.0
      %4669 = vmatmul.mubr.f32.gmra.mrb[0].mxu0 %v4455
      %v4670 = vpop.f32.mrb[0].mxu0
      %v4671 = vadd.f32 %v4377, %v4670
      %v4672 = vpop.f32.mrb[0].mxu0
      %4673 = vmatprep.mubr.f32.mxu0 0.0
      %4674 = vmatmul.mubr.f32.gmra.mrb[0].mxu0 %v4458
      %v4675 = vpop.f32.mrb[0].mxu0
      %v4676 = vadd.f32 %v4377, %v4675
      %v4677 = vpop.f32.mrb[0].mxu0
      %4678 = vmatprep.mubr.f32.mxu0 0.0
      %4679 = vmatmul.mubr.f32.gmra.mrb[0].mxu0 %v4461
      %v4680 = vpop.f32.mrb[0].mxu0
      %v4681 = vadd.f32 %v4377, %v4680
      %v4682 = vpop.f32.mrb[0].mxu0
      %4683 = vmatprep.mubr.f32.mxu0 0.0
      %4684 = vmatmul.mubr.f32.gmra.mrb[0].mxu0 %v4464
      %v4685 = vpop.f32.mrb[0].mxu0
      %v4686 = vadd.f32 %v4377, %v4685
      %v4687 = vpop.f32.mrb[0].mxu0
      %4688 = vmatprep.mubr.f32.mxu0 0.0
      %4689 = vmatmul.mubr.f32.gmra.mrb[0].mxu0 %v4467
      %v4690 = vpop.f32.mrb[0].mxu0
      %v4691 = vadd.f32 %v4377, %v4690
      %v4692 = vpop.f32.mrb[0].mxu0
      %4693 = vmatprep.mubr.f32.mxu0 0.0
      %4694 = vmatmul.mubr.f32.gmra.mrb[0].mxu0 %v4470
      %v4695 = vpop.f32.mrb[0].mxu0
      %v4696 = vadd.f32 %v4377, %v4695
      %v4697 = vpop.f32.mrb[0].mxu0
      %4698 = vmatprep.mubr.f32.mxu0 0.0
      %4699 = vmatmul.mubr.f32.gmra.mrb[0].mxu0 %v4473
      %v4700 = vpop.f32.mrb[0].mxu0
      %v4701 = vadd.f32 %v4377, %v4700
      %v4702 = vpop.f32.mrb[0].mxu0
      %4703 = vdwg.mxu0
      %v4704 = vmul.f32 %v4546, 0.5
      %v4705 = vmul.f32 %v4551, 0.5
      %v4706 = vmul.f32 %v4556, 0.5
      %v4707 = vmul.f32 %v4561, 0.5
      %v4708 = vmul.f32 %v4566, 0.5
      %v4709 = vmul.f32 %v4571, 0.5
      %v4710 = vmul.f32 %v4576, 0.5
      %v4711 = vmul.f32 %v4581, 0.5
      %v4712 = vmul.f32 %v4586, 0.5
      %v4713 = vmul.f32 %v4591, 0.5
      %v4714 = vmul.f32 %v4596, 0.5
      %v4715 = vmul.f32 %v4601, 0.5
      %v4716 = vmul.f32 %v4606, 0.5
      %v4717 = vmul.f32 %v4611, 0.5
      %v4718 = vmul.f32 %v4616, 0.5
      %v4719 = vmul.f32 %v4621, 0.5
      %v4720 = vmul.f32 %v4626, 0.5
      %v4721 = vmul.f32 %v4631, 0.5
      %v4722 = vmul.f32 %v4636, 0.5
      %v4723 = vmul.f32 %v4641, 0.5
      %v4724 = vmul.f32 %v4646, 0.5
      %v4725 = vmul.f32 %v4651, 0.5
      %v4726 = vmul.f32 %v4656, 0.5
      %v4727 = vmul.f32 %v4661, 0.5
      %v4728 = vmul.f32 %v4666, 0.5
      %v4729 = vmul.f32 %v4671, 0.5
      %v4730 = vmul.f32 %v4676, 0.5
      %v4731 = vmul.f32 %v4681, 0.5
      %v4732 = vmul.f32 %v4686, 0.5
      %v4733 = vmul.f32 %v4691, 0.5
      %v4734 = vmul.f32 %v4696, 0.5
      %v4735 = vmul.f32 %v4701, 0.5
      %v4736 = vmul.f32 %v4546, 0.70710677
      %v4737 = vmul.f32 %v4551, 0.70710677
      %v4738 = vmul.f32 %v4556, 0.70710677
      %v4739 = vmul.f32 %v4561, 0.70710677
      %v4740 = vmul.f32 %v4566, 0.70710677
      %v4741 = vmul.f32 %v4571, 0.70710677
      %v4742 = vmul.f32 %v4576, 0.70710677
      %v4743 = vmul.f32 %v4581, 0.70710677
      %v4744 = vmul.f32 %v4586, 0.70710677
      %v4745 = vmul.f32 %v4591, 0.70710677
      %v4746 = vmul.f32 %v4596, 0.70710677
      %v4747 = vmul.f32 %v4601, 0.70710677
      %v4748 = vmul.f32 %v4606, 0.70710677
      %v4749 = vmul.f32 %v4611, 0.70710677
      %v4750 = vmul.f32 %v4616, 0.70710677
      %v4751 = vmul.f32 %v4621, 0.70710677
      %v4752 = vmul.f32 %v4626, 0.70710677
      %v4753 = vmul.f32 %v4631, 0.70710677
      %v4754 = vmul.f32 %v4636, 0.70710677
      %v4755 = vmul.f32 %v4641, 0.70710677
      %v4756 = vmul.f32 %v4646, 0.70710677
      %v4757 = vmul.f32 %v4651, 0.70710677
      %v4758 = vmul.f32 %v4656, 0.70710677
      %v4759 = vmul.f32 %v4661, 0.70710677
      %v4760 = vmul.f32 %v4666, 0.70710677
      %v4761 = vmul.f32 %v4671, 0.70710677
      %v4762 = vmul.f32 %v4676, 0.70710677
      %v4763 = vmul.f32 %v4681, 0.70710677
      %v4764 = vmul.f32 %v4686, 0.70710677
      %v4765 = vmul.f32 %v4691, 0.70710677
      %v4766 = vmul.f32 %v4696, 0.70710677
      %v4767 = vmul.f32 %v4701, 0.70710677
      %v4768 = verf.f32.pop %v4736
      %v4769 = verf.f32.pop %v4737
      %v4770 = verf.f32.pop %v4738
      %v4771 = verf.f32.pop %v4739
      %v4772 = verf.f32.pop %v4740
      %v4773 = verf.f32.pop %v4741
      %v4774 = verf.f32.pop %v4742
      %v4775 = verf.f32.pop %v4743
      %v4776 = verf.f32.pop %v4744
      %v4777 = verf.f32.pop %v4745
      %v4778 = verf.f32.pop %v4746
      %v4779 = verf.f32.pop %v4747
      %v4780 = verf.f32.pop %v4748
      %v4781 = verf.f32.pop %v4749
      %v4782 = verf.f32.pop %v4750
      %v4783 = verf.f32.pop %v4751
      %v4784 = verf.f32.pop %v4752
      %v4785 = verf.f32.pop %v4753
      %v4786 = verf.f32.pop %v4754
      %v4787 = verf.f32.pop %v4755
      %v4788 = verf.f32.pop %v4756
      %v4789 = verf.f32.pop %v4757
      %v4790 = verf.f32.pop %v4758
      %v4791 = verf.f32.pop %v4759
      %v4792 = verf.f32.pop %v4760
      %v4793 = verf.f32.pop %v4761
      %v4794 = verf.f32.pop %v4762
      %v4795 = verf.f32.pop %v4763
      %v4796 = verf.f32.pop %v4764
      %v4797 = verf.f32.pop %v4765
      %v4798 = verf.f32.pop %v4766
      %v4799 = verf.f32.pop %v4767
      %v4800 = vadd.f32 %v4768, 1.0
      %v4801 = vadd.f32 %v4769, 1.0
      %v4802 = vadd.f32 %v4770, 1.0
      %v4803 = vadd.f32 %v4771, 1.0
      %v4804 = vadd.f32 %v4772, 1.0
      %v4805 = vadd.f32 %v4773, 1.0
      %v4806 = vadd.f32 %v4774, 1.0
      %v4807 = vadd.f32 %v4775, 1.0
      %v4808 = vadd.f32 %v4776, 1.0
      %v4809 = vadd.f32 %v4777, 1.0
      %v4810 = vadd.f32 %v4778, 1.0
      %v4811 = vadd.f32 %v4779, 1.0
      %v4812 = vadd.f32 %v4780, 1.0
      %v4813 = vadd.f32 %v4781, 1.0
      %v4814 = vadd.f32 %v4782, 1.0
      %v4815 = vadd.f32 %v4783, 1.0
      %v4816 = vadd.f32 %v4784, 1.0
      %v4817 = vadd.f32 %v4785, 1.0
      %v4818 = vadd.f32 %v4786, 1.0
      %v4819 = vadd.f32 %v4787, 1.0
      %v4820 = vadd.f32 %v4788, 1.0
      %v4821 = vadd.f32 %v4789, 1.0
      %v4822 = vadd.f32 %v4790, 1.0
      %v4823 = vadd.f32 %v4791, 1.0
      %v4824 = vadd.f32 %v4792, 1.0
      %v4825 = vadd.f32 %v4793, 1.0
      %v4826 = vadd.f32 %v4794, 1.0
      %v4827 = vadd.f32 %v4795, 1.0
      %v4828 = vadd.f32 %v4796, 1.0
      %v4829 = vadd.f32 %v4797, 1.0
      %v4830 = vadd.f32 %v4798, 1.0
      %v4831 = vadd.f32 %v4799, 1.0
      %v4832 = vmul.f32 %v4704, %v4800
      %v4833 = vmul.f32 %v4705, %v4801
      %v4834 = vmul.f32 %v4706, %v4802
      %v4835 = vmul.f32 %v4707, %v4803
      %v4836 = vmul.f32 %v4708, %v4804
      %v4837 = vmul.f32 %v4709, %v4805
      %v4838 = vmul.f32 %v4710, %v4806
      %v4839 = vmul.f32 %v4711, %v4807
      %v4840 = vmul.f32 %v4712, %v4808
      %v4841 = vmul.f32 %v4713, %v4809
      %v4842 = vmul.f32 %v4714, %v4810
      %v4843 = vmul.f32 %v4715, %v4811
      %v4844 = vmul.f32 %v4716, %v4812
      %v4845 = vmul.f32 %v4717, %v4813
      %v4846 = vmul.f32 %v4718, %v4814
      %v4847 = vmul.f32 %v4719, %v4815
      %v4848 = vmul.f32 %v4720, %v4816
      %v4849 = vmul.f32 %v4721, %v4817
      %v4850 = vmul.f32 %v4722, %v4818
      %v4851 = vmul.f32 %v4723, %v4819
      %v4852 = vmul.f32 %v4724, %v4820
      %v4853 = vmul.f32 %v4725, %v4821
      %v4854 = vmul.f32 %v4726, %v4822
      %v4855 = vmul.f32 %v4727, %v4823
      %v4856 = vmul.f32 %v4728, %v4824
      %v4857 = vmul.f32 %v4729, %v4825
      %v4858 = vmul.f32 %v4730, %v4826
      %v4859 = vmul.f32 %v4731, %v4827
      %v4860 = vmul.f32 %v4732, %v4828
      %v4861 = vmul.f32 %v4733, %v4829
      %v4862 = vmul.f32 %v4734, %v4830
      %v4863 = vmul.f32 %v4735, %v4831
      %v4865 = vlaneseq
      %v4866 = vshrl.u32 %v4865, 7
      %v4867 = vsub.s32 0, %v4866
      %v4868 = vrot.slane %v4372, %v4867
      %vm4870 = vcmask 130048
      %v4872 = vsel %vm4870, %v4832, 0
      %v4875 = vsel %vm4870, %v4833, 0
      %v4878 = vsel %vm4870, %v4834, 0
      %v4881 = vsel %vm4870, %v4835, 0
      %v4884 = vsel %vm4870, %v4836, 0
      %v4887 = vsel %vm4870, %v4837, 0
      %v4890 = vsel %vm4870, %v4838, 0
      %v4893 = vsel %vm4870, %v4839, 0
      %v4896 = vsel %vm4870, %v4840, 0
      %v4899 = vsel %vm4870, %v4841, 0
      %v4902 = vsel %vm4870, %v4842, 0
      %v4905 = vsel %vm4870, %v4843, 0
      %v4908 = vsel %vm4870, %v4844, 0
      %v4911 = vsel %vm4870, %v4845, 0
      %v4914 = vsel %vm4870, %v4846, 0
      %v4917 = vsel %vm4870, %v4847, 0
      %v4920 = vsel %vm4870, %v4848, 0
      %v4923 = vsel %vm4870, %v4849, 0
      %v4926 = vsel %vm4870, %v4850, 0
      %v4929 = vsel %vm4870, %v4851, 0
      %v4932 = vsel %vm4870, %v4852, 0
      %v4935 = vsel %vm4870, %v4853, 0
      %v4938 = vsel %vm4870, %v4854, 0
      %v4941 = vsel %vm4870, %v4855, 0
      %v4944 = vsel %vm4870, %v4856, 0
      %v4947 = vsel %vm4870, %v4857, 0
      %v4950 = vsel %vm4870, %v4858, 0
      %v4953 = vsel %vm4870, %v4859, 0
      %v4956 = vsel %vm4870, %v4860, 0
      %v4959 = vsel %vm4870, %v4861, 0
      %v4962 = vsel %vm4870, %v4862, 0
      %v4965 = vsel %vm4870, %v4863, 0
      %4967 = vmatprep.subr.mxu0 0.0
      %4968 = vmatpush1.msra.mxu0 %v4370
      %4969 = vmatprep.subr.mxu0 0.0
      %4970 = vmatpush1.msra.mxu0 %v4371
      %4971 = vmatprep.subr.mxu0 0.0
      %4972 = vmatpush1.msra.mxu0 0.0
      %4973 = vmatprep.subr.mxu0 0.0
      %4974 = vmatpush1.msra.mxu0 0.0
      %4975 = vmatprep.subr.mxu0 0.0
      %4976 = vmatpush1.msra.mxu0 0.0
      %4977 = vmatprep.subr.mxu0 0.0
      %4978 = vmatpush1.msra.mxu0 0.0
      %4979 = vmatprep.subr.mxu0 0.0
      %4980 = vmatpush1.msra.mxu0 0.0
      %4981 = vmatprep.subr.mxu0 0.0
      %4982 = vmatpush1.msra.mxu0 0.0
      %4983 = vmatprep.subr.mxu0 0.0
      %4984 = vmatpush1.msra.mxu0 0.0
      %4985 = vmatprep.subr.mxu0 0.0
      %4986 = vmatpush1.msra.mxu0 0.0
      %4987 = vmatprep.subr.mxu0 0.0
      %4988 = vmatpush1.msra.mxu0 0.0
      %4989 = vmatprep.subr.mxu0 0.0
      %4990 = vmatpush1.msra.mxu0 0.0
      %4991 = vmatprep.subr.mxu0 0.0
      %4992 = vmatpush1.msra.mxu0 0.0
      %4993 = vmatprep.subr.mxu0 0.0
      %4994 = vmatpush1.msra.mxu0 0.0
      %4995 = vmatprep.subr.mxu0 0.0
      %4996 = vmatpush1.msra.mxu0 0.0
      %4997 = vmatprep.subr.mxu0 0.0
      %4998 = vmatpush1.msra.mxu0 0.0
      %4999 = vmatprep.subr.mxu0 0.0
      %5000 = vmatpush1.msra.mxu0 0.0
      %5001 = vmatprep.subr.mxu0 0.0
      %5002 = vmatpush1.msra.mxu0 0.0
      %5003 = vmatprep.subr.mxu0 0.0
      %5004 = vmatpush1.msra.mxu0 0.0
      %5005 = vmatprep.subr.mxu0 0.0
      %5006 = vmatpush1.msra.mxu0 0.0
      %5007 = vmatprep.subr.mxu0 0.0
      %5008 = vmatpush1.msra.mxu0 0.0
      %5009 = vmatprep.subr.mxu0 0.0
      %5010 = vmatpush1.msra.mxu0 0.0
      %5011 = vmatprep.subr.mxu0 0.0
      %5012 = vmatpush1.msra.mxu0 0.0
      %5013 = vmatprep.subr.mxu0 0.0
      %5014 = vmatpush1.msra.mxu0 0.0
      %5015 = vmatprep.subr.mxu0 0.0
      %5016 = vmatpush1.msra.mxu0 0.0
      %5017 = vmatprep.subr.mxu0 0.0
      %5018 = vmatpush1.msra.mxu0 0.0
      %5019 = vmatprep.subr.mxu0 0.0
      %5020 = vmatpush1.msra.mxu0 0.0
      %5021 = vmatprep.subr.mxu0 0.0
      %5022 = vmatpush1.msra.mxu0 0.0
      %5023 = vmatprep.subr.mxu0 0.0
      %5024 = vmatpush1.msra.mxu0 0.0
      %5025 = vmatprep.subr.mxu0 0.0
      %5026 = vmatpush1.msra.mxu0 0.0
      %5027 = vmatprep.subr.mxu0 0.0
      %5028 = vmatpush1.msra.mxu0 0.0
      %5029 = vmatprep.subr.mxu0 0.0
      %5030 = vmatpush1.msra.mxu0 0.0
      %5031 = vmatprep.mubr.f32.mxu0 0.0
      %5032 = vmatmul.mubr.f32.gmra.mrb[0].mxu0 %v4872
      %v5033 = vpop.f32.mrb[0].mxu0
      %v5034 = vadd.f32 %v4868, %v5033
      %v5035 = vpop.f32.mrb[0].mxu0
      %5036 = vmatprep.mubr.f32.mxu0 0.0
      %5037 = vmatmul.mubr.f32.gmra.mrb[0].mxu0 %v4875
      %v5038 = vpop.f32.mrb[0].mxu0
      %v5039 = vadd.f32 %v4868, %v5038
      %v5040 = vpop.f32.mrb[0].mxu0
      %5041 = vmatprep.mubr.f32.mxu0 0.0
      %5042 = vmatmul.mubr.f32.gmra.mrb[0].mxu0 %v4878
      %v5043 = vpop.f32.mrb[0].mxu0
      %v5044 = vadd.f32 %v4868, %v5043
      %v5045 = vpop.f32.mrb[0].mxu0
      %5046 = vmatprep.mubr.f32.mxu0 0.0
      %5047 = vmatmul.mubr.f32.gmra.mrb[0].mxu0 %v4881
      %v5048 = vpop.f32.mrb[0].mxu0
      %v5049 = vadd.f32 %v4868, %v5048
      %v5050 = vpop.f32.mrb[0].mxu0
      %5051 = vmatprep.mubr.f32.mxu0 0.0
      %5052 = vmatmul.mubr.f32.gmra.mrb[0].mxu0 %v4884
      %v5053 = vpop.f32.mrb[0].mxu0
      %v5054 = vadd.f32 %v4868, %v5053
      %v5055 = vpop.f32.mrb[0].mxu0
      %5056 = vmatprep.mubr.f32.mxu0 0.0
      %5057 = vmatmul.mubr.f32.gmra.mrb[0].mxu0 %v4887
      %v5058 = vpop.f32.mrb[0].mxu0
      %v5059 = vadd.f32 %v4868, %v5058
      %v5060 = vpop.f32.mrb[0].mxu0
      %5061 = vmatprep.mubr.f32.mxu0 0.0
      %5062 = vmatmul.mubr.f32.gmra.mrb[0].mxu0 %v4890
      %v5063 = vpop.f32.mrb[0].mxu0
      %v5064 = vadd.f32 %v4868, %v5063
      %v5065 = vpop.f32.mrb[0].mxu0
      %5066 = vmatprep.mubr.f32.mxu0 0.0
      %5067 = vmatmul.mubr.f32.gmra.mrb[0].mxu0 %v4893
      %v5068 = vpop.f32.mrb[0].mxu0
      %v5069 = vadd.f32 %v4868, %v5068
      %v5070 = vpop.f32.mrb[0].mxu0
      %5071 = vmatprep.mubr.f32.mxu0 0.0
      %5072 = vmatmul.mubr.f32.gmra.mrb[0].mxu0 %v4896
      %v5073 = vpop.f32.mrb[0].mxu0
      %v5074 = vadd.f32 %v4868, %v5073
      %v5075 = vpop.f32.mrb[0].mxu0
      %5076 = vmatprep.mubr.f32.mxu0 0.0
      %5077 = vmatmul.mubr.f32.gmra.mrb[0].mxu0 %v4899
      %v5078 = vpop.f32.mrb[0].mxu0
      %v5079 = vadd.f32 %v4868, %v5078
      %v5080 = vpop.f32.mrb[0].mxu0
      %5081 = vmatprep.mubr.f32.mxu0 0.0
      %5082 = vmatmul.mubr.f32.gmra.mrb[0].mxu0 %v4902
      %v5083 = vpop.f32.mrb[0].mxu0
      %v5084 = vadd.f32 %v4868, %v5083
      %v5085 = vpop.f32.mrb[0].mxu0
      %5086 = vmatprep.mubr.f32.mxu0 0.0
      %5087 = vmatmul.mubr.f32.gmra.mrb[0].mxu0 %v4905
      %v5088 = vpop.f32.mrb[0].mxu0
      %v5089 = vadd.f32 %v4868, %v5088
      %v5090 = vpop.f32.mrb[0].mxu0
      %5091 = vmatprep.mubr.f32.mxu0 0.0
      %5092 = vmatmul.mubr.f32.gmra.mrb[0].mxu0 %v4908
      %v5093 = vpop.f32.mrb[0].mxu0
      %v5094 = vadd.f32 %v4868, %v5093
      %v5095 = vpop.f32.mrb[0].mxu0
      %5096 = vmatprep.mubr.f32.mxu0 0.0
      %5097 = vmatmul.mubr.f32.gmra.mrb[0].mxu0 %v4911
      %v5098 = vpop.f32.mrb[0].mxu0
      %v5099 = vadd.f32 %v4868, %v5098
      %v5100 = vpop.f32.mrb[0].mxu0
      %5101 = vmatprep.mubr.f32.mxu0 0.0
      %5102 = vmatmul.mubr.f32.gmra.mrb[0].mxu0 %v4914
      %v5103 = vpop.f32.mrb[0].mxu0
      %v5104 = vadd.f32 %v4868, %v5103
      %v5105 = vpop.f32.mrb[0].mxu0
      %5106 = vmatprep.mubr.f32.mxu0 0.0
      %5107 = vmatmul.mubr.f32.gmra.mrb[0].mxu0 %v4917
      %v5108 = vpop.f32.mrb[0].mxu0
      %v5109 = vadd.f32 %v4868, %v5108
      %v5110 = vpop.f32.mrb[0].mxu0
      %5111 = vmatprep.mubr.f32.mxu0 0.0
      %5112 = vmatmul.mubr.f32.gmra.mrb[0].mxu0 %v4920
      %v5113 = vpop.f32.mrb[0].mxu0
      %v5114 = vadd.f32 %v4868, %v5113
      %v5115 = vpop.f32.mrb[0].mxu0
      %5116 = vmatprep.mubr.f32.mxu0 0.0
      %5117 = vmatmul.mubr.f32.gmra.mrb[0].mxu0 %v4923
      %v5118 = vpop.f32.mrb[0].mxu0
      %v5119 = vadd.f32 %v4868, %v5118
      %v5120 = vpop.f32.mrb[0].mxu0
      %5121 = vmatprep.mubr.f32.mxu0 0.0
      %5122 = vmatmul.mubr.f32.gmra.mrb[0].mxu0 %v4926
      %v5123 = vpop.f32.mrb[0].mxu0
      %v5124 = vadd.f32 %v4868, %v5123
      %v5125 = vpop.f32.mrb[0].mxu0
      %5126 = vmatprep.mubr.f32.mxu0 0.0
      %5127 = vmatmul.mubr.f32.gmra.mrb[0].mxu0 %v4929
      %v5128 = vpop.f32.mrb[0].mxu0
      %v5129 = vadd.f32 %v4868, %v5128
      %v5130 = vpop.f32.mrb[0].mxu0
      %5131 = vmatprep.mubr.f32.mxu0 0.0
      %5132 = vmatmul.mubr.f32.gmra.mrb[0].mxu0 %v4932
      %v5133 = vpop.f32.mrb[0].mxu0
      %v5134 = vadd.f32 %v4868, %v5133
      %v5135 = vpop.f32.mrb[0].mxu0
      %5136 = vmatprep.mubr.f32.mxu0 0.0
      %5137 = vmatmul.mubr.f32.gmra.mrb[0].mxu0 %v4935
      %v5138 = vpop.f32.mrb[0].mxu0
      %v5139 = vadd.f32 %v4868, %v5138
      %v5140 = vpop.f32.mrb[0].mxu0
      %5141 = vmatprep.mubr.f32.mxu0 0.0
      %5142 = vmatmul.mubr.f32.gmra.mrb[0].mxu0 %v4938
      %v5143 = vpop.f32.mrb[0].mxu0
      %v5144 = vadd.f32 %v4868, %v5143
      %v5145 = vpop.f32.mrb[0].mxu0
      %5146 = vmatprep.mubr.f32.mxu0 0.0
      %5147 = vmatmul.mubr.f32.gmra.mrb[0].mxu0 %v4941
      %v5148 = vpop.f32.mrb[0].mxu0
      %v5149 = vadd.f32 %v4868, %v5148
      %v5150 = vpop.f32.mrb[0].mxu0
      %5151 = vmatprep.mubr.f32.mxu0 0.0
      %5152 = vmatmul.mubr.f32.gmra.mrb[0].mxu0 %v4944
      %v5153 = vpop.f32.mrb[0].mxu0
      %v5154 = vadd.f32 %v4868, %v5153
      %v5155 = vpop.f32.mrb[0].mxu0
      %5156 = vmatprep.mubr.f32.mxu0 0.0
      %5157 = vmatmul.mubr.f32.gmra.mrb[0].mxu0 %v4947
      %v5158 = vpop.f32.mrb[0].mxu0
      %v5159 = vadd.f32 %v4868, %v5158
      %v5160 = vpop.f32.mrb[0].mxu0
      %5161 = vmatprep.mubr.f32.mxu0 0.0
      %5162 = vmatmul.mubr.f32.gmra.mrb[0].mxu0 %v4950
      %v5163 = vpop.f32.mrb[0].mxu0
      %v5164 = vadd.f32 %v4868, %v5163
      %v5165 = vpop.f32.mrb[0].mxu0
      %5166 = vmatprep.mubr.f32.mxu0 0.0
      %5167 = vmatmul.mubr.f32.gmra.mrb[0].mxu0 %v4953
      %v5168 = vpop.f32.mrb[0].mxu0
      %v5169 = vadd.f32 %v4868, %v5168
      %v5170 = vpop.f32.mrb[0].mxu0
      %5171 = vmatprep.mubr.f32.mxu0 0.0
      %5172 = vmatmul.mubr.f32.gmra.mrb[0].mxu0 %v4956
      %v5173 = vpop.f32.mrb[0].mxu0
      %v5174 = vadd.f32 %v4868, %v5173
      %v5175 = vpop.f32.mrb[0].mxu0
      %5176 = vmatprep.mubr.f32.mxu0 0.0
      %5177 = vmatmul.mubr.f32.gmra.mrb[0].mxu0 %v4959
      %v5178 = vpop.f32.mrb[0].mxu0
      %v5179 = vadd.f32 %v4868, %v5178
      %v5180 = vpop.f32.mrb[0].mxu0
      %5181 = vmatprep.mubr.f32.mxu0 0.0
      %5182 = vmatmul.mubr.f32.gmra.mrb[0].mxu0 %v4962
      %v5183 = vpop.f32.mrb[0].mxu0
      %v5184 = vadd.f32 %v4868, %v5183
      %v5185 = vpop.f32.mrb[0].mxu0
      %5186 = vmatprep.mubr.f32.mxu0 0.0
      %5187 = vmatmul.mubr.f32.gmra.mrb[0].mxu0 %v4965
      %v5188 = vpop.f32.mrb[0].mxu0
      %v5189 = vadd.f32 %v4868, %v5188
      %v5190 = vpop.f32.mrb[0].mxu0
      %5191 = vdwg.mxu0
      %v5192 = vadd.f32 %v333, %v5034
      %v5193 = vadd.f32 %v334, %v5039
      %v5194 = vadd.f32 %v335, %v5044
      %v5195 = vadd.f32 %v336, %v5049
      %v5196 = vadd.f32 %v337, %v5054
      %v5197 = vadd.f32 %v338, %v5059
      %v5198 = vadd.f32 %v339, %v5064
      %v5199 = vadd.f32 %v340, %v5069
      %v5200 = vadd.f32 %v341, %v5074
      %v5201 = vadd.f32 %v342, %v5079
      %v5202 = vadd.f32 %v343, %v5084
      %v5203 = vadd.f32 %v344, %v5089
      %v5204 = vadd.f32 %v345, %v5094
      %v5205 = vadd.f32 %v346, %v5099
      %v5206 = vadd.f32 %v347, %v5104
      %v5207 = vadd.f32 %v348, %v5109
      %v5208 = vadd.f32 %v349, %v5114
      %v5209 = vadd.f32 %v350, %v5119
      %v5210 = vadd.f32 %v351, %v5124
      %v5211 = vadd.f32 %v352, %v5129
      %v5212 = vadd.f32 %v353, %v5134
      %v5213 = vadd.f32 %v354, %v5139
      %v5214 = vadd.f32 %v355, %v5144
      %v5215 = vadd.f32 %v356, %v5149
      %v5216 = vadd.f32 %v357, %v5154
      %v5217 = vadd.f32 %v358, %v5159
      %v5218 = vadd.f32 %v359, %v5164
      %v5219 = vadd.f32 %v360, %v5169
      %v5220 = vadd.f32 %v361, %v5174
      %v5221 = vadd.f32 %v362, %v5179
      %v5222 = vadd.f32 %v363, %v5184
      %v5223 = vadd.f32 %v364, %v5189
      %5224 = vst.msk [vmem:[%s332] sm:$0xff] %vm365, %v5192
      %5225 = vst.msk [vmem:[%s332 + $0x8] sm:$0xff] %vm365, %v5193
      %5226 = vst.msk [vmem:[%s332 + $0x10] sm:$0xff] %vm365, %v5194
      %5227 = vst.msk [vmem:[%s332 + $0x18] sm:$0xff] %vm365, %v5195
      %5228 = vst.msk [vmem:[%s332 + $0x20] sm:$0xff] %vm365, %v5196
      %5229 = vst.msk [vmem:[%s332 + $0x28] sm:$0xff] %vm365, %v5197
      %5230 = vst.msk [vmem:[%s332 + $0x30] sm:$0xff] %vm365, %v5198
      %5231 = vst.msk [vmem:[%s332 + $0x38] sm:$0xff] %vm365, %v5199
      %5232 = vst.msk [vmem:[%s332 + $0x40] sm:$0xff] %vm365, %v5200
      %5233 = vst.msk [vmem:[%s332 + $0x48] sm:$0xff] %vm365, %v5201
      %5234 = vst.msk [vmem:[%s332 + $0x50] sm:$0xff] %vm365, %v5202
      %5235 = vst.msk [vmem:[%s332 + $0x58] sm:$0xff] %vm365, %v5203
      %5236 = vst.msk [vmem:[%s332 + $0x60] sm:$0xff] %vm365, %v5204
      %5237 = vst.msk [vmem:[%s332 + $0x68] sm:$0xff] %vm365, %v5205
      %5238 = vst.msk [vmem:[%s332 + $0x70] sm:$0xff] %vm365, %v5206
      %5239 = vst.msk [vmem:[%s332 + $0x78] sm:$0xff] %vm365, %v5207
      %5240 = vst.msk [vmem:[%s332 + $0x80] sm:$0xff] %vm365, %v5208
      %5241 = vst.msk [vmem:[%s332 + $0x88] sm:$0xff] %vm365, %v5209
      %5242 = vst.msk [vmem:[%s332 + $0x90] sm:$0xff] %vm365, %v5210
      %5243 = vst.msk [vmem:[%s332 + $0x98] sm:$0xff] %vm365, %v5211
      %5244 = vst.msk [vmem:[%s332 + $0xa0] sm:$0xff] %vm365, %v5212
      %5245 = vst.msk [vmem:[%s332 + $0xa8] sm:$0xff] %vm365, %v5213
      %5246 = vst.msk [vmem:[%s332 + $0xb0] sm:$0xff] %vm365, %v5214
      %5247 = vst.msk [vmem:[%s332 + $0xb8] sm:$0xff] %vm365, %v5215
      %5248 = vst.msk [vmem:[%s332 + $0xc0] sm:$0xff] %vm365, %v5216
      %5249 = vst.msk [vmem:[%s332 + $0xc8] sm:$0xff] %vm365, %v5217
      %5250 = vst.msk [vmem:[%s332 + $0xd0] sm:$0xff] %vm365, %v5218
      %5251 = vst.msk [vmem:[%s332 + $0xd8] sm:$0xff] %vm365, %v5219
      %5252 = vst.msk [vmem:[%s332 + $0xe0] sm:$0xff] %vm365, %v5220
      %5253 = vst.msk [vmem:[%s332 + $0xe8] sm:$0xff] %vm365, %v5221
      %5254 = vst.msk [vmem:[%s332 + $0xf0] sm:$0xff] %vm365, %v5222
      %5255 = vst.msk [vmem:[%s332 + $0xf8] sm:$0xff] %vm365, %v5223
      %p5256 = scmp.lt.s32.totalorder %s20, 1
      %s5257 = scalar_select %p5256, %s20, 1
      %s5258 = smul.addr %s5257, 32
      %s5259 = smul.addr %s5258, 8
      %s5260 = scalar_lea.vmem %s9, %s5259
      // Predicated region
      $region57: #{tpu_custom_call.1} parent=55 // pred_check
        %p5261 = pneg %p232
      $region58: #{tpu_custom_call.1} parent=55 // pred_check_branch
        %5263 = sbr.rel (%p5261) target = $region60
      $region59: #{tpu_custom_call.1} parent=55 // pred_region
        _
      $region60: #{tpu_custom_call.1} parent=55 // pred_fallthru
        _
    $region56: #{tpu_custom_call.1} parent=5 // pred_fallthru
      _
    %p5264 = scmp.le.s32.totalorder 2, %s15
    // Predicated region
    $region61: #{tpu_custom_call.1} parent=5 // pred_check
      %p5265 = pneg %p5264
    $region62: #{tpu_custom_call.1} parent=5 // pred_check_branch
      %5267 = sbr.rel (%p5265) target = $region64
    $region63: #{tpu_custom_call.1} parent=5 // pred_region
      %s5268 = ssub.s32 %s15, 2
      // Predicated region
      $region65: #{tpu_custom_call.1} parent=63 // pred_check
        %p5269 = pneg %p238
      $region66: #{tpu_custom_call.1} parent=63 // pred_check_branch
        %5271 = sbr.rel (%p5269) target = $region68
      $region67: #{tpu_custom_call.1} parent=63 // pred_region
        %p5272 = scmp.lt.s32.totalorder %s21, 1
        %s5273 = scalar_select %p5272, %s21, 1
        %s5274 = smul.addr %s5273, 32
        %s5275 = smul.addr %s5274, 8
        %s5276 = scalar_lea.vmem %s9, %s5275
      $region68: #{tpu_custom_call.1} parent=63 // pred_fallthru
        _
    $region64: #{tpu_custom_call.1} parent=5 // pred_fallthru
      _
  $region6: #{tpu_custom_call.1} parent=0 // loop_footer
    %s19 = sadd.s32 1, %s15
  $region7: #{tpu_custom_call.1} parent=0 // loop_footer_branch
    %14 = sbr.rel target = $region3
  $region8: #{tpu_custom_call.1} parent=0 // loop_exit
    _

</llo_original>
